<compile_context>
chip_gen: v7x
topology: tpu7x:2x2x1
jax: 0.10.0
libtpu: 0.0.40
codegen_flags: <defaults>
</compile_context>

<pallas_src>
import functools

import jax
import jax.numpy as jnp
from jax import lax
from jax.experimental import pallas as pl
from jax.experimental.pallas import tpu as pltpu


# ----------------------------------------------------------------------------
# Pallas kernel: one fused bidirectional LSTM layer over the full sequence
# ----------------------------------------------------------------------------
def bilstm_layer_kernel(x_ref, m_ref, wih_ref, whh_ref, b_ref,
                        outf_ref, outb_ref, hf_ref, hb_ref,
                        gx_sc):
    """Fused bi-directional LSTM layer, whole sequence per invocation.

    x_ref   : (T*B, D)    layer input, time-major rows (row t*B+b = x[t, b])
    m_ref   : (T, B, 1)   validity mask (1.0 iff t < length[b])
    wih_ref : (D, 8H)     [w_ih_fwd.T | w_ih_bwd.T], gate order i,f,g,o
    whh_ref : (2H, 8H)    block-diag(w_hh_fwd.T, w_hh_bwd.T)
    b_ref   : (1, 8H)     [b_ih_f + b_hh_f | b_ih_b + b_hh_b]
    outf_ref: (T, B, H)   forward per-step outputs (zero at padding)
    outb_ref: (T, B, H)   backward per-step outputs, original time order
    hf_ref  : (B, H)      final forward hidden state
    hb_ref  : (B, H)      final backward hidden state
    gx_sc   : (T*B, 8H)   f32 scratch: precomputed input->gates projection
    """
    T, B, H = outf_ref.shape
    G = 4 * H

    # Single big MXU pass: input projection for every timestep, both directions.
    gx_sc[...] = (jnp.dot(x_ref[...], wih_ref[...],
                          preferred_element_type=jnp.float32) + b_ref[...])

    whh = whh_ref[...]                                   # (2H, 8H), VMEM-resident

    def cell(gates, h_prev, c_prev, m):
        i = jax.nn.sigmoid(gates[:, 0 * H:1 * H])
        f = jax.nn.sigmoid(gates[:, 1 * H:2 * H])
        g = jnp.tanh(gates[:, 2 * H:3 * H])
        o = jax.nn.sigmoid(gates[:, 3 * H:4 * H])
        c_new = f * c_prev + i * g
        h_new = o * jnp.tanh(c_new)
        keep = m > 0.5                 # packed-sequence: freeze once t >= length
        c_u = jnp.where(keep, c_new, c_prev)
        h_u = jnp.where(keep, h_new, h_prev)
        return h_u, c_u

    def step(t, carry):
        h_f, c_f, h_b, c_b = carry
        rt = T - 1 - t                 # backward direction walks time reversed

        row_f = pl.multiple_of(t * B, B)
        row_b = pl.multiple_of(rt * B, B)
        gx_f = gx_sc[pl.ds(row_f, B), :]                 # (B, 8H)
        gx_b = gx_sc[pl.ds(row_b, B), :]                 # (B, 8H)
        m_f = m_ref[t]                                   # (B, 1)
        m_b = m_ref[rt]                                  # (B, 1)

        # One recurrent matmul for both directions (block-diagonal weights);
        # gates_f / gates_b slices are 128-lane aligned for H = 32.
        h_cat = jnp.concatenate([h_f, h_b], axis=1)      # (B, 2H)
        gh = jnp.dot(h_cat, whh, preferred_element_type=jnp.float32)  # (B, 8H)

        gates_f = gx_f[:, 0:G] + gh[:, 0:G]
        gates_b = gx_b[:, G:2 * G] + gh[:, G:2 * G]

        h_f, c_f = cell(gates_f, h_f, c_f, m_f)
        h_b, c_b = cell(gates_b, h_b, c_b, m_b)

        outf_ref[t] = h_f * m_f        # pad_packed_sequence zero-pads
        outb_ref[rt] = h_b * m_b       # already in original time order
        return h_f, c_f, h_b, c_b

    z = jnp.zeros((B, H), jnp.float32)
    h_f, c_f, h_b, c_b = lax.fori_loop(0, T, step, (z, z, z, z), unroll=True)

    # Final states written exactly once (not every step).
    hf_ref[...] = h_f
    hb_ref[...] = h_b


# ----------------------------------------------------------------------------
# Wrappers
# ----------------------------------------------------------------------------
def bilstm_layer(x, mask, wih_cat, whh_blk, b_cat, hidden_dim):
    """x: (T, B, D); returns (out_f, out_b, h_f_final, h_b_final)."""
    T, B, D = x.shape
    H = hidden_dim
    x2 = x.reshape(T * B, D)           # free layout glue in the wrapper
    return pl.pallas_call(
        bilstm_layer_kernel,
        out_shape=(
            jax.ShapeDtypeStruct((T, B, H), jnp.float32),
            jax.ShapeDtypeStruct((T, B, H), jnp.float32),
            jax.ShapeDtypeStruct((B, H), jnp.float32),
            jax.ShapeDtypeStruct((B, H), jnp.float32),
        ),
        scratch_shapes=[pltpu.VMEM((T * B, 8 * H), jnp.float32)],
    )(x2, mask, wih_cat, whh_blk, b_cat)


def rnn_forward(params, text, text_lengths, *, hidden_dim, n_layers):
    """Mirrors RNN.forward (eval mode: dropout = identity)."""
    T, B = text.shape
    # embedding gather (glue; pad row is zero => padding_idx semantics)
    emb = params["embedding"][text]                               # (T, B, E)
    # TODO(synk): dropout is identity here (inference semantics); no RNG mask.
    mask = (jnp.arange(T)[:, None] < text_lengths[None, :]).astype(
        jnp.float32)[:, :, None]                                  # (T, B, 1)

    x = emb
    h_f = h_b = None
    for layer in range(n_layers):
        wih_cat, whh_blk, b_cat = params["lstm"][layer]
        out_f, out_b, h_f, h_b = bilstm_layer(x, mask, wih_cat, whh_blk,
                                              b_cat, hidden_dim)
        x = jnp.concatenate([out_f, out_b], axis=-1)              # (T, B, 2H)

    # hidden = cat(hidden[-2], hidden[-1]) = cat(last-layer fwd, bwd) final h
    hidden = jnp.concatenate([h_f, h_b], axis=1)                  # (B, 2H)
    # Tiny (B,2H)x(2H,O) GEMM: left to XLA (pallas_call overhead > compute).
    return hidden @ params["fc_w_t"] + params["fc_b"]             # (B, O)


# ----------------------------------------------------------------------------
# Deterministic parameter init (shapes per the module's __init__), pre-packed
# into the fused-kernel layouts.
# ----------------------------------------------------------------------------
def init_params(key, vocab_size, embedding_dim, hidden_dim, output_dim,
                n_layers, pad_idx):
    H = hidden_dim
    G = 4 * H
    keys = jax.random.split(key, 2 + n_layers)
    k = 1.0 / jnp.sqrt(hidden_dim)

    emb = 0.1 * jax.random.normal(keys[0], (vocab_size, embedding_dim),
                                  jnp.float32)
    emb = emb.at[pad_idx].set(0.0)                    # padding_idx row is zero

    lstm = []
    for layer in range(n_layers):
        d_in = embedding_dim if layer == 0 else 2 * H
        kk = jax.random.split(keys[2 + layer], 8)

        def u(kq, shape):
            return jax.random.uniform(kq, shape, jnp.float32, -k, k)

        w_ih_f = u(kk[0], (G, d_in)); w_hh_f = u(kk[1], (G, H))
        b_f = u(kk[2], (G,)) + u(kk[3], (G,))
        w_ih_b = u(kk[4], (G, d_in)); w_hh_b = u(kk[5], (G, H))
        b_b = u(kk[6], (G,)) + u(kk[7], (G,))

        # Packed layouts consumed by the fused kernel:
        #   wih_cat (d_in, 8H) = [w_ih_f.T | w_ih_b.T]   (gate order i,f,g,o)
        #   whh_blk (2H, 8H)   = block-diag(w_hh_f.T, w_hh_b.T)
        #   b_cat   (1, 8H)    = [b_ih_f+b_hh_f | b_ih_b+b_hh_b]
        wih_cat = jnp.concatenate([w_ih_f.T, w_ih_b.T], axis=1)
        whh_blk = jnp.zeros((2 * H, 2 * G), jnp.float32)
        whh_blk = whh_blk.at[:H, :G].set(w_hh_f.T)
        whh_blk = whh_blk.at[H:, G:].set(w_hh_b.T)
        b_cat = jnp.concatenate([b_f, b_b])[None, :]
        lstm.append((wih_cat, whh_blk, b_cat))

    kk = jax.random.split(keys[1], 2)
    fc_w = jax.random.uniform(kk[0], (output_dim, 2 * H), jnp.float32, -k, k)
    fc_b = jax.random.uniform(kk[1], (output_dim,), jnp.float32, -k, k)

    return {"embedding": emb, "lstm": lstm,
            "fc_w_t": fc_w.T, "fc_b": fc_b[None, :]}


# ----------------------------------------------------------------------------
if __name__ == "__main__":
    VOCAB, EMB, HID, OUT = 100, 16, 32, 4
    N_LAYERS, PAD_IDX = 2, 0
    T, B = 8, 8

    key = jax.random.PRNGKey(0)
    k_p, k_t = jax.random.split(key)
    params = init_params(k_p, VOCAB, EMB, HID, OUT, N_LAYERS, PAD_IDX)

    # lengths sorted descending (pack_padded_sequence convention)
    text_lengths = jnp.array([8, 8, 7, 6, 5, 4, 3, 2], dtype=jnp.int32)
    text = jax.random.randint(k_t, (T, B), 1, VOCAB, dtype=jnp.int32)
    pad_mask = jnp.arange(T)[:, None] < text_lengths[None, :]
    text = jnp.where(pad_mask, text, PAD_IDX)

    fwd = jax.jit(functools.partial(rnn_forward, hidden_dim=HID,
                                    n_layers=N_LAYERS))
    out = fwd(params, text, text_lengths)
    jax.block_until_ready(out)
    assert out.shape == (B, OUT)
    print("KERNEL_OK")
</pallas_src>

<mosaic_0001>
module attributes {stable_mosaic.version = 11 : i64} {
  func.func @bilstm_layer_kernel(%arg0: memref<64x16xf32, #tpu.memory_space<vmem>>, %arg1: memref<8x8x1xf32, #tpu.memory_space<vmem>>, %arg2: memref<16x256xf32, #tpu.memory_space<vmem>>, %arg3: memref<64x256xf32, #tpu.memory_space<vmem>>, %arg4: memref<1x256xf32, #tpu.memory_space<vmem>>, %arg5: memref<8x8x32xf32, #tpu.memory_space<vmem>>, %arg6: memref<8x8x32xf32, #tpu.memory_space<vmem>>, %arg7: memref<8x32xf32, #tpu.memory_space<vmem>>, %arg8: memref<8x32xf32, #tpu.memory_space<vmem>>, %arg9: memref<64x256xf32, #tpu.memory_space<vmem>>) attributes {dimension_semantics = [], scalar_prefetch = 0 : i64, scratch_operands = 1 : i64, tpu.core_type = #tpu.core_type<tc>} {
    %c0 = arith.constant 0 : index
    %c0_0 = arith.constant 0 : index
    %0 = vector.load %arg0[%c0, %c0_0] : memref<64x16xf32, #tpu.memory_space<vmem>>, vector<64x16xf32>
    %c0_1 = arith.constant 0 : index
    %c0_2 = arith.constant 0 : index
    %1 = vector.load %arg2[%c0_1, %c0_2] : memref<16x256xf32, #tpu.memory_space<vmem>>, vector<16x256xf32>
    %cst = arith.constant dense<0.000000e+00> : vector<64x256xf32>
    %2 = tpu.matmul %0, %1, %cst {dimension_numbers = #tpu.dot_dimension_numbers<[1], [0], [0], [1], [0, 0, 1, 1], [], []>} : vector<64x16xf32>, vector<16x256xf32>, vector<64x256xf32> -> vector<64x256xf32>
    %c0_3 = arith.constant 0 : index
    %c0_4 = arith.constant 0 : index
    %3 = vector.load %arg4[%c0_3, %c0_4] : memref<1x256xf32, #tpu.memory_space<vmem>>, vector<1x256xf32>
    %4 = vector.broadcast %3 : vector<1x256xf32> to vector<64x256xf32>
    %5 = arith.addf %2, %4 : vector<64x256xf32>
    %c0_5 = arith.constant 0 : index
    %c0_6 = arith.constant 0 : index
    %6 = vector.load %arg9[%c0_5, %c0_6] : memref<64x256xf32, #tpu.memory_space<vmem>>, vector<64x256xf32>
    tpu.vector_store %arg9[%c0_5, %c0_6], %5 {strides = array<i32>} : memref<64x256xf32, #tpu.memory_space<vmem>>, vector<64x256xf32>,
    %c0_7 = arith.constant 0 : index
    %c0_8 = arith.constant 0 : index
    %7 = vector.load %arg3[%c0_7, %c0_8] : memref<64x256xf32, #tpu.memory_space<vmem>>, vector<64x256xf32>
    %cst_9 = arith.constant 0.000000e+00 : f32
    %8 = vector.broadcast %cst_9 : f32 to vector<8x32xf32>
    %c0_i32 = arith.constant 0 : i32
    %c7_i32 = arith.constant 7 : i32
    %9 = arith.subi %c7_i32, %c0_i32 : i32
    %c8_i32 = arith.constant 8 : i32
    %10 = arith.muli %c0_i32, %c8_i32 : i32
    %11 = tpu.assume_multiple %10, 8 : i32
    %c8_i32_10 = arith.constant 8 : i32
    %12 = arith.muli %9, %c8_i32_10 : i32
    %13 = tpu.assume_multiple %12, 8 : i32
    %14 = arith.index_cast %11 : i32 to index
    %c0_11 = arith.constant 0 : index
    %15 = vector.load %arg9[%14, %c0_11] : memref<64x256xf32, #tpu.memory_space<vmem>>, vector<8x256xf32>
    %16 = arith.index_cast %13 : i32 to index
    %c0_12 = arith.constant 0 : index
    %17 = vector.load %arg9[%16, %c0_12] : memref<64x256xf32, #tpu.memory_space<vmem>>, vector<8x256xf32>
    %18 = arith.index_cast %c0_i32 : i32 to index
    %c0_13 = arith.constant 0 : index
    %c0_14 = arith.constant 0 : index
    %19 = vector.load %arg1[%18, %c0_13, %c0_14] : memref<8x8x1xf32, #tpu.memory_space<vmem>>, vector<1x8x1xf32>
    %20 = vector.shape_cast %19 : vector<1x8x1xf32> to vector<8x1xf32>
    %21 = arith.index_cast %9 : i32 to index
    %c0_15 = arith.constant 0 : index
    %c0_16 = arith.constant 0 : index
    %22 = vector.load %arg1[%21, %c0_15, %c0_16] : memref<8x8x1xf32, #tpu.memory_space<vmem>>, vector<1x8x1xf32>
    %23 = vector.shape_cast %22 : vector<1x8x1xf32> to vector<8x1xf32>
    %24 = tpu.concatenate %8, %8 in 1 : vector<8x32xf32>, vector<8x32xf32> -> vector<8x64xf32>
    %cst_17 = arith.constant dense<0.000000e+00> : vector<8x256xf32>
    %25 = tpu.matmul %24, %7, %cst_17 {dimension_numbers = #tpu.dot_dimension_numbers<[1], [0], [0], [1], [0, 0, 1, 1], [], []>} : vector<8x64xf32>, vector<64x256xf32>, vector<8x256xf32> -> vector<8x256xf32>
    %26 = vector.extract_strided_slice %15 {offsets = [0, 0], sizes = [8, 128], strides = [1, 1]} : vector<8x256xf32> to vector<8x128xf32>
    %27 = vector.extract_strided_slice %25 {offsets = [0, 0], sizes = [8, 128], strides = [1, 1]} : vector<8x256xf32> to vector<8x128xf32>
    %28 = arith.addf %26, %27 : vector<8x128xf32>
    %29 = vector.extract_strided_slice %17 {offsets = [0, 128], sizes = [8, 128], strides = [1, 1]} : vector<8x256xf32> to vector<8x128xf32>
    %30 = vector.extract_strided_slice %25 {offsets = [0, 128], sizes = [8, 128], strides = [1, 1]} : vector<8x256xf32> to vector<8x128xf32>
    %31 = arith.addf %29, %30 : vector<8x128xf32>
    %32 = vector.extract_strided_slice %28 {offsets = [0, 0], sizes = [8, 32], strides = [1, 1]} : vector<8x128xf32> to vector<8x32xf32>
    %33 = arith.negf %32 : vector<8x32xf32>
    %34 = math.exp %33 : vector<8x32xf32>
    %cst_18 = arith.constant 1.000000e+00 : f32
    %35 = vector.broadcast %cst_18 : f32 to vector<8x32xf32>
    %36 = arith.addf %35, %34 : vector<8x32xf32>
    %37 = arith.divf %35, %36 : vector<8x32xf32>
    %38 = vector.extract_strided_slice %28 {offsets = [0, 32], sizes = [8, 32], strides = [1, 1]} : vector<8x128xf32> to vector<8x32xf32>
    %39 = arith.negf %38 : vector<8x32xf32>
    %40 = math.exp %39 : vector<8x32xf32>
    %cst_19 = arith.constant 1.000000e+00 : f32
    %41 = vector.broadcast %cst_19 : f32 to vector<8x32xf32>
    %42 = arith.addf %41, %40 : vector<8x32xf32>
    %43 = arith.divf %41, %42 : vector<8x32xf32>
    %44 = vector.extract_strided_slice %28 {offsets = [0, 64], sizes = [8, 32], strides = [1, 1]} : vector<8x128xf32> to vector<8x32xf32>
    %45 = math.tanh %44 : vector<8x32xf32>
    %46 = vector.extract_strided_slice %28 {offsets = [0, 96], sizes = [8, 32], strides = [1, 1]} : vector<8x128xf32> to vector<8x32xf32>
    %47 = arith.negf %46 : vector<8x32xf32>
    %48 = math.exp %47 : vector<8x32xf32>
    %cst_20 = arith.constant 1.000000e+00 : f32
    %49 = vector.broadcast %cst_20 : f32 to vector<8x32xf32>
    %50 = arith.addf %49, %48 : vector<8x32xf32>
    %51 = arith.divf %49, %50 : vector<8x32xf32>
    %52 = arith.mulf %43, %8 : vector<8x32xf32>
    %53 = arith.mulf %37, %45 : vector<8x32xf32>
    %54 = arith.addf %52, %53 : vector<8x32xf32>
    %55 = math.tanh %54 : vector<8x32xf32>
    %56 = arith.mulf %51, %55 : vector<8x32xf32>
    %cst_21 = arith.constant 5.000000e-01 : f32
    %57 = vector.broadcast %cst_21 : f32 to vector<8x1xf32>
    %58 = arith.cmpf ogt, %20, %57 : vector<8x1xf32>
    %59 = vector.shape_cast %58 : vector<8x1xi1> to vector<8x1xi1>
    %60 = vector.broadcast %59 : vector<8x1xi1> to vector<8x32xi1>
    %61 = arith.select %60, %54, %8 : vector<8x32xi1>, vector<8x32xf32>
    %62 = vector.shape_cast %58 : vector<8x1xi1> to vector<8x1xi1>
    %63 = vector.broadcast %62 : vector<8x1xi1> to vector<8x32xi1>
    %64 = arith.select %63, %56, %8 : vector<8x32xi1>, vector<8x32xf32>
    %65 = vector.extract_strided_slice %31 {offsets = [0, 0], sizes = [8, 32], strides = [1, 1]} : vector<8x128xf32> to vector<8x32xf32>
    %66 = arith.negf %65 : vector<8x32xf32>
    %67 = math.exp %66 : vector<8x32xf32>
    %cst_22 = arith.constant 1.000000e+00 : f32
    %68 = vector.broadcast %cst_22 : f32 to vector<8x32xf32>
    %69 = arith.addf %68, %67 : vector<8x32xf32>
    %70 = arith.divf %68, %69 : vector<8x32xf32>
    %71 = vector.extract_strided_slice %31 {offsets = [0, 32], sizes = [8, 32], strides = [1, 1]} : vector<8x128xf32> to vector<8x32xf32>
    %72 = arith.negf %71 : vector<8x32xf32>
    %73 = math.exp %72 : vector<8x32xf32>
    %cst_23 = arith.constant 1.000000e+00 : f32
    %74 = vector.broadcast %cst_23 : f32 to vector<8x32xf32>
    %75 = arith.addf %74, %73 : vector<8x32xf32>
    %76 = arith.divf %74, %75 : vector<8x32xf32>
    %77 = vector.extract_strided_slice %31 {offsets = [0, 64], sizes = [8, 32], strides = [1, 1]} : vector<8x128xf32> to vector<8x32xf32>
    %78 = math.tanh %77 : vector<8x32xf32>
    %79 = vector.extract_strided_slice %31 {offsets = [0, 96], sizes = [8, 32], strides = [1, 1]} : vector<8x128xf32> to vector<8x32xf32>
    %80 = arith.negf %79 : vector<8x32xf32>
    %81 = math.exp %80 : vector<8x32xf32>
    %cst_24 = arith.constant 1.000000e+00 : f32
    %82 = vector.broadcast %cst_24 : f32 to vector<8x32xf32>
    %83 = arith.addf %82, %81 : vector<8x32xf32>
    %84 = arith.divf %82, %83 : vector<8x32xf32>
    %85 = arith.mulf %76, %8 : vector<8x32xf32>
    %86 = arith.mulf %70, %78 : vector<8x32xf32>
    %87 = arith.addf %85, %86 : vector<8x32xf32>
    %88 = math.tanh %87 : vector<8x32xf32>
    %89 = arith.mulf %84, %88 : vector<8x32xf32>
    %cst_25 = arith.constant 5.000000e-01 : f32
    %90 = vector.broadcast %cst_25 : f32 to vector<8x1xf32>
    %91 = arith.cmpf ogt, %23, %90 : vector<8x1xf32>
    %92 = vector.shape_cast %91 : vector<8x1xi1> to vector<8x1xi1>
    %93 = vector.broadcast %92 : vector<8x1xi1> to vector<8x32xi1>
    %94 = arith.select %93, %87, %8 : vector<8x32xi1>, vector<8x32xf32>
    %95 = vector.shape_cast %91 : vector<8x1xi1> to vector<8x1xi1>
    %96 = vector.broadcast %95 : vector<8x1xi1> to vector<8x32xi1>
    %97 = arith.select %96, %89, %8 : vector<8x32xi1>, vector<8x32xf32>
    %98 = vector.broadcast %20 : vector<8x1xf32> to vector<8x32xf32>
    %99 = arith.mulf %64, %98 : vector<8x32xf32>
    %100 = arith.index_cast %c0_i32 : i32 to index
    %c0_26 = arith.constant 0 : index
    %c0_27 = arith.constant 0 : index
    %101 = vector.load %arg5[%100, %c0_26, %c0_27] : memref<8x8x32xf32, #tpu.memory_space<vmem>>, vector<1x8x32xf32>
    %102 = vector.shape_cast %101 : vector<1x8x32xf32> to vector<8x32xf32>
    %103 = vector.shape_cast %99 : vector<8x32xf32> to vector<1x8x32xf32>
    tpu.vector_store %arg5[%100, %c0_26, %c0_27], %103 {strides = array<i32>} : memref<8x8x32xf32, #tpu.memory_space<vmem>>, vector<1x8x32xf32>,
    %104 = vector.broadcast %23 : vector<8x1xf32> to vector<8x32xf32>
    %105 = arith.mulf %97, %104 : vector<8x32xf32>
    %106 = arith.index_cast %9 : i32 to index
    %c0_28 = arith.constant 0 : index
    %c0_29 = arith.constant 0 : index
    %107 = vector.load %arg6[%106, %c0_28, %c0_29] : memref<8x8x32xf32, #tpu.memory_space<vmem>>, vector<1x8x32xf32>
    %108 = vector.shape_cast %107 : vector<1x8x32xf32> to vector<8x32xf32>
    %109 = vector.shape_cast %105 : vector<8x32xf32> to vector<1x8x32xf32>
    tpu.vector_store %arg6[%106, %c0_28, %c0_29], %109 {strides = array<i32>} : memref<8x8x32xf32, #tpu.memory_space<vmem>>, vector<1x8x32xf32>,
    %c1_i32 = arith.constant 1 : i32
    %c7_i32_30 = arith.constant 7 : i32
    %110 = arith.subi %c7_i32_30, %c1_i32 : i32
    %c8_i32_31 = arith.constant 8 : i32
    %111 = arith.muli %c1_i32, %c8_i32_31 : i32
    %112 = tpu.assume_multiple %111, 8 : i32
    %c8_i32_32 = arith.constant 8 : i32
    %113 = arith.muli %110, %c8_i32_32 : i32
    %114 = tpu.assume_multiple %113, 8 : i32
    %115 = arith.index_cast %112 : i32 to index
    %c0_33 = arith.constant 0 : index
    %116 = vector.load %arg9[%115, %c0_33] : memref<64x256xf32, #tpu.memory_space<vmem>>, vector<8x256xf32>
    %117 = arith.index_cast %114 : i32 to index
    %c0_34 = arith.constant 0 : index
    %118 = vector.load %arg9[%117, %c0_34] : memref<64x256xf32, #tpu.memory_space<vmem>>, vector<8x256xf32>
    %119 = arith.index_cast %c1_i32 : i32 to index
    %c0_35 = arith.constant 0 : index
    %c0_36 = arith.constant 0 : index
    %120 = vector.load %arg1[%119, %c0_35, %c0_36] : memref<8x8x1xf32, #tpu.memory_space<vmem>>, vector<1x8x1xf32>
    %121 = vector.shape_cast %120 : vector<1x8x1xf32> to vector<8x1xf32>
    %122 = arith.index_cast %110 : i32 to index
    %c0_37 = arith.constant 0 : index
    %c0_38 = arith.constant 0 : index
    %123 = vector.load %arg1[%122, %c0_37, %c0_38] : memref<8x8x1xf32, #tpu.memory_space<vmem>>, vector<1x8x1xf32>
    %124 = vector.shape_cast %123 : vector<1x8x1xf32> to vector<8x1xf32>
    %125 = tpu.concatenate %64, %97 in 1 : vector<8x32xf32>, vector<8x32xf32> -> vector<8x64xf32>
    %cst_39 = arith.constant dense<0.000000e+00> : vector<8x256xf32>
    %126 = tpu.matmul %125, %7, %cst_39 {dimension_numbers = #tpu.dot_dimension_numbers<[1], [0], [0], [1], [0, 0, 1, 1], [], []>} : vector<8x64xf32>, vector<64x256xf32>, vector<8x256xf32> -> vector<8x256xf32>
    %127 = vector.extract_strided_slice %116 {offsets = [0, 0], sizes = [8, 128], strides = [1, 1]} : vector<8x256xf32> to vector<8x128xf32>
    %128 = vector.extract_strided_slice %126 {offsets = [0, 0], sizes = [8, 128], strides = [1, 1]} : vector<8x256xf32> to vector<8x128xf32>
    %129 = arith.addf %127, %128 : vector<8x128xf32>
    %130 = vector.extract_strided_slice %118 {offsets = [0, 128], sizes = [8, 128], strides = [1, 1]} : vector<8x256xf32> to vector<8x128xf32>
    %131 = vector.extract_strided_slice %126 {offsets = [0, 128], sizes = [8, 128], strides = [1, 1]} : vector<8x256xf32> to vector<8x128xf32>
    %132 = arith.addf %130, %131 : vector<8x128xf32>
    %133 = vector.extract_strided_slice %129 {offsets = [0, 0], sizes = [8, 32], strides = [1, 1]} : vector<8x128xf32> to vector<8x32xf32>
    %134 = arith.negf %133 : vector<8x32xf32>
    %135 = math.exp %134 : vector<8x32xf32>
    %cst_40 = arith.constant 1.000000e+00 : f32
    %136 = vector.broadcast %cst_40 : f32 to vector<8x32xf32>
    %137 = arith.addf %136, %135 : vector<8x32xf32>
    %138 = arith.divf %136, %137 : vector<8x32xf32>
    %139 = vector.extract_strided_slice %129 {offsets = [0, 32], sizes = [8, 32], strides = [1, 1]} : vector<8x128xf32> to vector<8x32xf32>
    %140 = arith.negf %139 : vector<8x32xf32>
    %141 = math.exp %140 : vector<8x32xf32>
    %cst_41 = arith.constant 1.000000e+00 : f32
    %142 = vector.broadcast %cst_41 : f32 to vector<8x32xf32>
    %143 = arith.addf %142, %141 : vector<8x32xf32>
    %144 = arith.divf %142, %143 : vector<8x32xf32>
    %145 = vector.extract_strided_slice %129 {offsets = [0, 64], sizes = [8, 32], strides = [1, 1]} : vector<8x128xf32> to vector<8x32xf32>
    %146 = math.tanh %145 : vector<8x32xf32>
    %147 = vector.extract_strided_slice %129 {offsets = [0, 96], sizes = [8, 32], strides = [1, 1]} : vector<8x128xf32> to vector<8x32xf32>
    %148 = arith.negf %147 : vector<8x32xf32>
    %149 = math.exp %148 : vector<8x32xf32>
    %cst_42 = arith.constant 1.000000e+00 : f32
    %150 = vector.broadcast %cst_42 : f32 to vector<8x32xf32>
    %151 = arith.addf %150, %149 : vector<8x32xf32>
    %152 = arith.divf %150, %151 : vector<8x32xf32>
    %153 = arith.mulf %144, %61 : vector<8x32xf32>
    %154 = arith.mulf %138, %146 : vector<8x32xf32>
    %155 = arith.addf %153, %154 : vector<8x32xf32>
    %156 = math.tanh %155 : vector<8x32xf32>
    %157 = arith.mulf %152, %156 : vector<8x32xf32>
    %cst_43 = arith.constant 5.000000e-01 : f32
    %158 = vector.broadcast %cst_43 : f32 to vector<8x1xf32>
    %159 = arith.cmpf ogt, %121, %158 : vector<8x1xf32>
    %160 = vector.shape_cast %159 : vector<8x1xi1> to vector<8x1xi1>
    %161 = vector.broadcast %160 : vector<8x1xi1> to vector<8x32xi1>
    %162 = arith.select %161, %155, %61 : vector<8x32xi1>, vector<8x32xf32>
    %163 = vector.shape_cast %159 : vector<8x1xi1> to vector<8x1xi1>
    %164 = vector.broadcast %163 : vector<8x1xi1> to vector<8x32xi1>
    %165 = arith.select %164, %157, %64 : vector<8x32xi1>, vector<8x32xf32>
    %166 = vector.extract_strided_slice %132 {offsets = [0, 0], sizes = [8, 32], strides = [1, 1]} : vector<8x128xf32> to vector<8x32xf32>
    %167 = arith.negf %166 : vector<8x32xf32>
    %168 = math.exp %167 : vector<8x32xf32>
    %cst_44 = arith.constant 1.000000e+00 : f32
    %169 = vector.broadcast %cst_44 : f32 to vector<8x32xf32>
    %170 = arith.addf %169, %168 : vector<8x32xf32>
    %171 = arith.divf %169, %170 : vector<8x32xf32>
    %172 = vector.extract_strided_slice %132 {offsets = [0, 32], sizes = [8, 32], strides = [1, 1]} : vector<8x128xf32> to vector<8x32xf32>
    %173 = arith.negf %172 : vector<8x32xf32>
    %174 = math.exp %173 : vector<8x32xf32>
    %cst_45 = arith.constant 1.000000e+00 : f32
    %175 = vector.broadcast %cst_45 : f32 to vector<8x32xf32>
    %176 = arith.addf %175, %174 : vector<8x32xf32>
    %177 = arith.divf %175, %176 : vector<8x32xf32>
    %178 = vector.extract_strided_slice %132 {offsets = [0, 64], sizes = [8, 32], strides = [1, 1]} : vector<8x128xf32> to vector<8x32xf32>
    %179 = math.tanh %178 : vector<8x32xf32>
    %180 = vector.extract_strided_slice %132 {offsets = [0, 96], sizes = [8, 32], strides = [1, 1]} : vector<8x128xf32> to vector<8x32xf32>
    %181 = arith.negf %180 : vector<8x32xf32>
    %182 = math.exp %181 : vector<8x32xf32>
    %cst_46 = arith.constant 1.000000e+00 : f32
    %183 = vector.broadcast %cst_46 : f32 to vector<8x32xf32>
    %184 = arith.addf %183, %182 : vector<8x32xf32>
    %185 = arith.divf %183, %184 : vector<8x32xf32>
    %186 = arith.mulf %177, %94 : vector<8x32xf32>
    %187 = arith.mulf %171, %179 : vector<8x32xf32>
    %188 = arith.addf %186, %187 : vector<8x32xf32>
    %189 = math.tanh %188 : vector<8x32xf32>
    %190 = arith.mulf %185, %189 : vector<8x32xf32>
    %cst_47 = arith.constant 5.000000e-01 : f32
    %191 = vector.broadcast %cst_47 : f32 to vector<8x1xf32>
    %192 = arith.cmpf ogt, %124, %191 : vector<8x1xf32>
    %193 = vector.shape_cast %192 : vector<8x1xi1> to vector<8x1xi1>
    %194 = vector.broadcast %193 : vector<8x1xi1> to vector<8x32xi1>
    %195 = arith.select %194, %188, %94 : vector<8x32xi1>, vector<8x32xf32>
    %196 = vector.shape_cast %192 : vector<8x1xi1> to vector<8x1xi1>
    %197 = vector.broadcast %196 : vector<8x1xi1> to vector<8x32xi1>
    %198 = arith.select %197, %190, %97 : vector<8x32xi1>, vector<8x32xf32>
    %199 = vector.broadcast %121 : vector<8x1xf32> to vector<8x32xf32>
    %200 = arith.mulf %165, %199 : vector<8x32xf32>
    %201 = arith.index_cast %c1_i32 : i32 to index
    %c0_48 = arith.constant 0 : index
    %c0_49 = arith.constant 0 : index
    %202 = vector.load %arg5[%201, %c0_48, %c0_49] : memref<8x8x32xf32, #tpu.memory_space<vmem>>, vector<1x8x32xf32>
    %203 = vector.shape_cast %202 : vector<1x8x32xf32> to vector<8x32xf32>
    %204 = vector.shape_cast %200 : vector<8x32xf32> to vector<1x8x32xf32>
    tpu.vector_store %arg5[%201, %c0_48, %c0_49], %204 {strides = array<i32>} : memref<8x8x32xf32, #tpu.memory_space<vmem>>, vector<1x8x32xf32>,
    %205 = vector.broadcast %124 : vector<8x1xf32> to vector<8x32xf32>
    %206 = arith.mulf %198, %205 : vector<8x32xf32>
    %207 = arith.index_cast %110 : i32 to index
    %c0_50 = arith.constant 0 : index
    %c0_51 = arith.constant 0 : index
    %208 = vector.load %arg6[%207, %c0_50, %c0_51] : memref<8x8x32xf32, #tpu.memory_space<vmem>>, vector<1x8x32xf32>
    %209 = vector.shape_cast %208 : vector<1x8x32xf32> to vector<8x32xf32>
    %210 = vector.shape_cast %206 : vector<8x32xf32> to vector<1x8x32xf32>
    tpu.vector_store %arg6[%207, %c0_50, %c0_51], %210 {strides = array<i32>} : memref<8x8x32xf32, #tpu.memory_space<vmem>>, vector<1x8x32xf32>,
    %c2_i32 = arith.constant 2 : i32
    %c7_i32_52 = arith.constant 7 : i32
    %211 = arith.subi %c7_i32_52, %c2_i32 : i32
    %c8_i32_53 = arith.constant 8 : i32
    %212 = arith.muli %c2_i32, %c8_i32_53 : i32
    %213 = tpu.assume_multiple %212, 8 : i32
    %c8_i32_54 = arith.constant 8 : i32
    %214 = arith.muli %211, %c8_i32_54 : i32
    %215 = tpu.assume_multiple %214, 8 : i32
    %216 = arith.index_cast %213 : i32 to index
    %c0_55 = arith.constant 0 : index
    %217 = vector.load %arg9[%216, %c0_55] : memref<64x256xf32, #tpu.memory_space<vmem>>, vector<8x256xf32>
    %218 = arith.index_cast %215 : i32 to index
    %c0_56 = arith.constant 0 : index
    %219 = vector.load %arg9[%218, %c0_56] : memref<64x256xf32, #tpu.memory_space<vmem>>, vector<8x256xf32>
    %220 = arith.index_cast %c2_i32 : i32 to index
    %c0_57 = arith.constant 0 : index
    %c0_58 = arith.constant 0 : index
    %221 = vector.load %arg1[%220, %c0_57, %c0_58] : memref<8x8x1xf32, #tpu.memory_space<vmem>>, vector<1x8x1xf32>
    %222 = vector.shape_cast %221 : vector<1x8x1xf32> to vector<8x1xf32>
    %223 = arith.index_cast %211 : i32 to index
    %c0_59 = arith.constant 0 : index
    %c0_60 = arith.constant 0 : index
    %224 = vector.load %arg1[%223, %c0_59, %c0_60] : memref<8x8x1xf32, #tpu.memory_space<vmem>>, vector<1x8x1xf32>
    %225 = vector.shape_cast %224 : vector<1x8x1xf32> to vector<8x1xf32>
    %226 = tpu.concatenate %165, %198 in 1 : vector<8x32xf32>, vector<8x32xf32> -> vector<8x64xf32>
    %cst_61 = arith.constant dense<0.000000e+00> : vector<8x256xf32>
    %227 = tpu.matmul %226, %7, %cst_61 {dimension_numbers = #tpu.dot_dimension_numbers<[1], [0], [0], [1], [0, 0, 1, 1], [], []>} : vector<8x64xf32>, vector<64x256xf32>, vector<8x256xf32> -> vector<8x256xf32>
    %228 = vector.extract_strided_slice %217 {offsets = [0, 0], sizes = [8, 128], strides = [1, 1]} : vector<8x256xf32> to vector<8x128xf32>
    %229 = vector.extract_strided_slice %227 {offsets = [0, 0], sizes = [8, 128], strides = [1, 1]} : vector<8x256xf32> to vector<8x128xf32>
    %230 = arith.addf %228, %229 : vector<8x128xf32>
    %231 = vector.extract_strided_slice %219 {offsets = [0, 128], sizes = [8, 128], strides = [1, 1]} : vector<8x256xf32> to vector<8x128xf32>
    %232 = vector.extract_strided_slice %227 {offsets = [0, 128], sizes = [8, 128], strides = [1, 1]} : vector<8x256xf32> to vector<8x128xf32>
    %233 = arith.addf %231, %232 : vector<8x128xf32>
    %234 = vector.extract_strided_slice %230 {offsets = [0, 0], sizes = [8, 32], strides = [1, 1]} : vector<8x128xf32> to vector<8x32xf32>
    %235 = arith.negf %234 : vector<8x32xf32>
    %236 = math.exp %235 : vector<8x32xf32>
    %cst_62 = arith.constant 1.000000e+00 : f32
    %237 = vector.broadcast %cst_62 : f32 to vector<8x32xf32>
    %238 = arith.addf %237, %236 : vector<8x32xf32>
    %239 = arith.divf %237, %238 : vector<8x32xf32>
    %240 = vector.extract_strided_slice %230 {offsets = [0, 32], sizes = [8, 32], strides = [1, 1]} : vector<8x128xf32> to vector<8x32xf32>
    %241 = arith.negf %240 : vector<8x32xf32>
    %242 = math.exp %241 : vector<8x32xf32>
    %cst_63 = arith.constant 1.000000e+00 : f32
    %243 = vector.broadcast %cst_63 : f32 to vector<8x32xf32>
    %244 = arith.addf %243, %242 : vector<8x32xf32>
    %245 = arith.divf %243, %244 : vector<8x32xf32>
    %246 = vector.extract_strided_slice %230 {offsets = [0, 64], sizes = [8, 32], strides = [1, 1]} : vector<8x128xf32> to vector<8x32xf32>
    %247 = math.tanh %246 : vector<8x32xf32>
    %248 = vector.extract_strided_slice %230 {offsets = [0, 96], sizes = [8, 32], strides = [1, 1]} : vector<8x128xf32> to vector<8x32xf32>
    %249 = arith.negf %248 : vector<8x32xf32>
    %250 = math.exp %249 : vector<8x32xf32>
    %cst_64 = arith.constant 1.000000e+00 : f32
    %251 = vector.broadcast %cst_64 : f32 to vector<8x32xf32>
    %252 = arith.addf %251, %250 : vector<8x32xf32>
    %253 = arith.divf %251, %252 : vector<8x32xf32>
    %254 = arith.mulf %245, %162 : vector<8x32xf32>
    %255 = arith.mulf %239, %247 : vector<8x32xf32>
    %256 = arith.addf %254, %255 : vector<8x32xf32>
    %257 = math.tanh %256 : vector<8x32xf32>
    %258 = arith.mulf %253, %257 : vector<8x32xf32>
    %cst_65 = arith.constant 5.000000e-01 : f32
    %259 = vector.broadcast %cst_65 : f32 to vector<8x1xf32>
    %260 = arith.cmpf ogt, %222, %259 : vector<8x1xf32>
    %261 = vector.shape_cast %260 : vector<8x1xi1> to vector<8x1xi1>
    %262 = vector.broadcast %261 : vector<8x1xi1> to vector<8x32xi1>
    %263 = arith.select %262, %256, %162 : vector<8x32xi1>, vector<8x32xf32>
    %264 = vector.shape_cast %260 : vector<8x1xi1> to vector<8x1xi1>
    %265 = vector.broadcast %264 : vector<8x1xi1> to vector<8x32xi1>
    %266 = arith.select %265, %258, %165 : vector<8x32xi1>, vector<8x32xf32>
    %267 = vector.extract_strided_slice %233 {offsets = [0, 0], sizes = [8, 32], strides = [1, 1]} : vector<8x128xf32> to vector<8x32xf32>
    %268 = arith.negf %267 : vector<8x32xf32>
    %269 = math.exp %268 : vector<8x32xf32>
    %cst_66 = arith.constant 1.000000e+00 : f32
    %270 = vector.broadcast %cst_66 : f32 to vector<8x32xf32>
    %271 = arith.addf %270, %269 : vector<8x32xf32>
    %272 = arith.divf %270, %271 : vector<8x32xf32>
    %273 = vector.extract_strided_slice %233 {offsets = [0, 32], sizes = [8, 32], strides = [1, 1]} : vector<8x128xf32> to vector<8x32xf32>
    %274 = arith.negf %273 : vector<8x32xf32>
    %275 = math.exp %274 : vector<8x32xf32>
    %cst_67 = arith.constant 1.000000e+00 : f32
    %276 = vector.broadcast %cst_67 : f32 to vector<8x32xf32>
    %277 = arith.addf %276, %275 : vector<8x32xf32>
    %278 = arith.divf %276, %277 : vector<8x32xf32>
    %279 = vector.extract_strided_slice %233 {offsets = [0, 64], sizes = [8, 32], strides = [1, 1]} : vector<8x128xf32> to vector<8x32xf32>
    %280 = math.tanh %279 : vector<8x32xf32>
    %281 = vector.extract_strided_slice %233 {offsets = [0, 96], sizes = [8, 32], strides = [1, 1]} : vector<8x128xf32> to vector<8x32xf32>
    %282 = arith.negf %281 : vector<8x32xf32>
    %283 = math.exp %282 : vector<8x32xf32>
    %cst_68 = arith.constant 1.000000e+00 : f32
    %284 = vector.broadcast %cst_68 : f32 to vector<8x32xf32>
    %285 = arith.addf %284, %283 : vector<8x32xf32>
    %286 = arith.divf %284, %285 : vector<8x32xf32>
    %287 = arith.mulf %278, %195 : vector<8x32xf32>
    %288 = arith.mulf %272, %280 : vector<8x32xf32>
    %289 = arith.addf %287, %288 : vector<8x32xf32>
    %290 = math.tanh %289 : vector<8x32xf32>
    %291 = arith.mulf %286, %290 : vector<8x32xf32>
    %cst_69 = arith.constant 5.000000e-01 : f32
    %292 = vector.broadcast %cst_69 : f32 to vector<8x1xf32>
    %293 = arith.cmpf ogt, %225, %292 : vector<8x1xf32>
    %294 = vector.shape_cast %293 : vector<8x1xi1> to vector<8x1xi1>
    %295 = vector.broadcast %294 : vector<8x1xi1> to vector<8x32xi1>
    %296 = arith.select %295, %289, %195 : vector<8x32xi1>, vector<8x32xf32>
    %297 = vector.shape_cast %293 : vector<8x1xi1> to vector<8x1xi1>
    %298 = vector.broadcast %297 : vector<8x1xi1> to vector<8x32xi1>
    %299 = arith.select %298, %291, %198 : vector<8x32xi1>, vector<8x32xf32>
    %300 = vector.broadcast %222 : vector<8x1xf32> to vector<8x32xf32>
    %301 = arith.mulf %266, %300 : vector<8x32xf32>
    %302 = arith.index_cast %c2_i32 : i32 to index
    %c0_70 = arith.constant 0 : index
    %c0_71 = arith.constant 0 : index
    %303 = vector.load %arg5[%302, %c0_70, %c0_71] : memref<8x8x32xf32, #tpu.memory_space<vmem>>, vector<1x8x32xf32>
    %304 = vector.shape_cast %303 : vector<1x8x32xf32> to vector<8x32xf32>
    %305 = vector.shape_cast %301 : vector<8x32xf32> to vector<1x8x32xf32>
    tpu.vector_store %arg5[%302, %c0_70, %c0_71], %305 {strides = array<i32>} : memref<8x8x32xf32, #tpu.memory_space<vmem>>, vector<1x8x32xf32>,
    %306 = vector.broadcast %225 : vector<8x1xf32> to vector<8x32xf32>
    %307 = arith.mulf %299, %306 : vector<8x32xf32>
    %308 = arith.index_cast %211 : i32 to index
    %c0_72 = arith.constant 0 : index
    %c0_73 = arith.constant 0 : index
    %309 = vector.load %arg6[%308, %c0_72, %c0_73] : memref<8x8x32xf32, #tpu.memory_space<vmem>>, vector<1x8x32xf32>
    %310 = vector.shape_cast %309 : vector<1x8x32xf32> to vector<8x32xf32>
    %311 = vector.shape_cast %307 : vector<8x32xf32> to vector<1x8x32xf32>
    tpu.vector_store %arg6[%308, %c0_72, %c0_73], %311 {strides = array<i32>} : memref<8x8x32xf32, #tpu.memory_space<vmem>>, vector<1x8x32xf32>,
    %c3_i32 = arith.constant 3 : i32
    %c7_i32_74 = arith.constant 7 : i32
    %312 = arith.subi %c7_i32_74, %c3_i32 : i32
    %c8_i32_75 = arith.constant 8 : i32
    %313 = arith.muli %c3_i32, %c8_i32_75 : i32
    %314 = tpu.assume_multiple %313, 8 : i32
    %c8_i32_76 = arith.constant 8 : i32
    %315 = arith.muli %312, %c8_i32_76 : i32
    %316 = tpu.assume_multiple %315, 8 : i32
    %317 = arith.index_cast %314 : i32 to index
    %c0_77 = arith.constant 0 : index
    %318 = vector.load %arg9[%317, %c0_77] : memref<64x256xf32, #tpu.memory_space<vmem>>, vector<8x256xf32>
    %319 = arith.index_cast %316 : i32 to index
    %c0_78 = arith.constant 0 : index
    %320 = vector.load %arg9[%319, %c0_78] : memref<64x256xf32, #tpu.memory_space<vmem>>, vector<8x256xf32>
    %321 = arith.index_cast %c3_i32 : i32 to index
    %c0_79 = arith.constant 0 : index
    %c0_80 = arith.constant 0 : index
    %322 = vector.load %arg1[%321, %c0_79, %c0_80] : memref<8x8x1xf32, #tpu.memory_space<vmem>>, vector<1x8x1xf32>
    %323 = vector.shape_cast %322 : vector<1x8x1xf32> to vector<8x1xf32>
    %324 = arith.index_cast %312 : i32 to index
    %c0_81 = arith.constant 0 : index
    %c0_82 = arith.constant 0 : index
    %325 = vector.load %arg1[%324, %c0_81, %c0_82] : memref<8x8x1xf32, #tpu.memory_space<vmem>>, vector<1x8x1xf32>
    %326 = vector.shape_cast %325 : vector<1x8x1xf32> to vector<8x1xf32>
    %327 = tpu.concatenate %266, %299 in 1 : vector<8x32xf32>, vector<8x32xf32> -> vector<8x64xf32>
    %cst_83 = arith.constant dense<0.000000e+00> : vector<8x256xf32>
    %328 = tpu.matmul %327, %7, %cst_83 {dimension_numbers = #tpu.dot_dimension_numbers<[1], [0], [0], [1], [0, 0, 1, 1], [], []>} : vector<8x64xf32>, vector<64x256xf32>, vector<8x256xf32> -> vector<8x256xf32>
    %329 = vector.extract_strided_slice %318 {offsets = [0, 0], sizes = [8, 128], strides = [1, 1]} : vector<8x256xf32> to vector<8x128xf32>
    %330 = vector.extract_strided_slice %328 {offsets = [0, 0], sizes = [8, 128], strides = [1, 1]} : vector<8x256xf32> to vector<8x128xf32>
    %331 = arith.addf %329, %330 : vector<8x128xf32>
    %332 = vector.extract_strided_slice %320 {offsets = [0, 128], sizes = [8, 128], strides = [1, 1]} : vector<8x256xf32> to vector<8x128xf32>
    %333 = vector.extract_strided_slice %328 {offsets = [0, 128], sizes = [8, 128], strides = [1, 1]} : vector<8x256xf32> to vector<8x128xf32>
    %334 = arith.addf %332, %333 : vector<8x128xf32>
    %335 = vector.extract_strided_slice %331 {offsets = [0, 0], sizes = [8, 32], strides = [1, 1]} : vector<8x128xf32> to vector<8x32xf32>
    %336 = arith.negf %335 : vector<8x32xf32>
    %337 = math.exp %336 : vector<8x32xf32>
    %cst_84 = arith.constant 1.000000e+00 : f32
    %338 = vector.broadcast %cst_84 : f32 to vector<8x32xf32>
    %339 = arith.addf %338, %337 : vector<8x32xf32>
    %340 = arith.divf %338, %339 : vector<8x32xf32>
    %341 = vector.extract_strided_slice %331 {offsets = [0, 32], sizes = [8, 32], strides = [1, 1]} : vector<8x128xf32> to vector<8x32xf32>
    %342 = arith.negf %341 : vector<8x32xf32>
    %343 = math.exp %342 : vector<8x32xf32>
    %cst_85 = arith.constant 1.000000e+00 : f32
    %344 = vector.broadcast %cst_85 : f32 to vector<8x32xf32>
    %345 = arith.addf %344, %343 : vector<8x32xf32>
    %346 = arith.divf %344, %345 : vector<8x32xf32>
    %347 = vector.extract_strided_slice %331 {offsets = [0, 64], sizes = [8, 32], strides = [1, 1]} : vector<8x128xf32> to vector<8x32xf32>
    %348 = math.tanh %347 : vector<8x32xf32>
    %349 = vector.extract_strided_slice %331 {offsets = [0, 96], sizes = [8, 32], strides = [1, 1]} : vector<8x128xf32> to vector<8x32xf32>
    %350 = arith.negf %349 : vector<8x32xf32>
    %351 = math.exp %350 : vector<8x32xf32>
    %cst_86 = arith.constant 1.000000e+00 : f32
    %352 = vector.broadcast %cst_86 : f32 to vector<8x32xf32>
    %353 = arith.addf %352, %351 : vector<8x32xf32>
    %354 = arith.divf %352, %353 : vector<8x32xf32>
    %355 = arith.mulf %346, %263 : vector<8x32xf32>
    %356 = arith.mulf %340, %348 : vector<8x32xf32>
    %357 = arith.addf %355, %356 : vector<8x32xf32>
    %358 = math.tanh %357 : vector<8x32xf32>
    %359 = arith.mulf %354, %358 : vector<8x32xf32>
    %cst_87 = arith.constant 5.000000e-01 : f32
    %360 = vector.broadcast %cst_87 : f32 to vector<8x1xf32>
    %361 = arith.cmpf ogt, %323, %360 : vector<8x1xf32>
    %362 = vector.shape_cast %361 : vector<8x1xi1> to vector<8x1xi1>
    %363 = vector.broadcast %362 : vector<8x1xi1> to vector<8x32xi1>
    %364 = arith.select %363, %357, %263 : vector<8x32xi1>, vector<8x32xf32>
    %365 = vector.shape_cast %361 : vector<8x1xi1> to vector<8x1xi1>
    %366 = vector.broadcast %365 : vector<8x1xi1> to vector<8x32xi1>
    %367 = arith.select %366, %359, %266 : vector<8x32xi1>, vector<8x32xf32>
    %368 = vector.extract_strided_slice %334 {offsets = [0, 0], sizes = [8, 32], strides = [1, 1]} : vector<8x128xf32> to vector<8x32xf32>
    %369 = arith.negf %368 : vector<8x32xf32>
    %370 = math.exp %369 : vector<8x32xf32>
    %cst_88 = arith.constant 1.000000e+00 : f32
    %371 = vector.broadcast %cst_88 : f32 to vector<8x32xf32>
    %372 = arith.addf %371, %370 : vector<8x32xf32>
    %373 = arith.divf %371, %372 : vector<8x32xf32>
    %374 = vector.extract_strided_slice %334 {offsets = [0, 32], sizes = [8, 32], strides = [1, 1]} : vector<8x128xf32> to vector<8x32xf32>
    %375 = arith.negf %374 : vector<8x32xf32>
    %376 = math.exp %375 : vector<8x32xf32>
    %cst_89 = arith.constant 1.000000e+00 : f32
    %377 = vector.broadcast %cst_89 : f32 to vector<8x32xf32>
    %378 = arith.addf %377, %376 : vector<8x32xf32>
    %379 = arith.divf %377, %378 : vector<8x32xf32>
    %380 = vector.extract_strided_slice %334 {offsets = [0, 64], sizes = [8, 32], strides = [1, 1]} : vector<8x128xf32> to vector<8x32xf32>
    %381 = math.tanh %380 : vector<8x32xf32>
    %382 = vector.extract_strided_slice %334 {offsets = [0, 96], sizes = [8, 32], strides = [1, 1]} : vector<8x128xf32> to vector<8x32xf32>
    %383 = arith.negf %382 : vector<8x32xf32>
    %384 = math.exp %383 : vector<8x32xf32>
    %cst_90 = arith.constant 1.000000e+00 : f32
    %385 = vector.broadcast %cst_90 : f32 to vector<8x32xf32>
    %386 = arith.addf %385, %384 : vector<8x32xf32>
    %387 = arith.divf %385, %386 : vector<8x32xf32>
    %388 = arith.mulf %379, %296 : vector<8x32xf32>
    %389 = arith.mulf %373, %381 : vector<8x32xf32>
    %390 = arith.addf %388, %389 : vector<8x32xf32>
    %391 = math.tanh %390 : vector<8x32xf32>
    %392 = arith.mulf %387, %391 : vector<8x32xf32>
    %cst_91 = arith.constant 5.000000e-01 : f32
    %393 = vector.broadcast %cst_91 : f32 to vector<8x1xf32>
    %394 = arith.cmpf ogt, %326, %393 : vector<8x1xf32>
    %395 = vector.shape_cast %394 : vector<8x1xi1> to vector<8x1xi1>
    %396 = vector.broadcast %395 : vector<8x1xi1> to vector<8x32xi1>
    %397 = arith.select %396, %390, %296 : vector<8x32xi1>, vector<8x32xf32>
    %398 = vector.shape_cast %394 : vector<8x1xi1> to vector<8x1xi1>
    %399 = vector.broadcast %398 : vector<8x1xi1> to vector<8x32xi1>
    %400 = arith.select %399, %392, %299 : vector<8x32xi1>, vector<8x32xf32>
    %401 = vector.broadcast %323 : vector<8x1xf32> to vector<8x32xf32>
    %402 = arith.mulf %367, %401 : vector<8x32xf32>
    %403 = arith.index_cast %c3_i32 : i32 to index
    %c0_92 = arith.constant 0 : index
    %c0_93 = arith.constant 0 : index
    %404 = vector.load %arg5[%403, %c0_92, %c0_93] : memref<8x8x32xf32, #tpu.memory_space<vmem>>, vector<1x8x32xf32>
    %405 = vector.shape_cast %404 : vector<1x8x32xf32> to vector<8x32xf32>
    %406 = vector.shape_cast %402 : vector<8x32xf32> to vector<1x8x32xf32>
    tpu.vector_store %arg5[%403, %c0_92, %c0_93], %406 {strides = array<i32>} : memref<8x8x32xf32, #tpu.memory_space<vmem>>, vector<1x8x32xf32>,
    %407 = vector.broadcast %326 : vector<8x1xf32> to vector<8x32xf32>
    %408 = arith.mulf %400, %407 : vector<8x32xf32>
    %409 = arith.index_cast %312 : i32 to index
    %c0_94 = arith.constant 0 : index
    %c0_95 = arith.constant 0 : index
    %410 = vector.load %arg6[%409, %c0_94, %c0_95] : memref<8x8x32xf32, #tpu.memory_space<vmem>>, vector<1x8x32xf32>
    %411 = vector.shape_cast %410 : vector<1x8x32xf32> to vector<8x32xf32>
    %412 = vector.shape_cast %408 : vector<8x32xf32> to vector<1x8x32xf32>
    tpu.vector_store %arg6[%409, %c0_94, %c0_95], %412 {strides = array<i32>} : memref<8x8x32xf32, #tpu.memory_space<vmem>>, vector<1x8x32xf32>,
    %c4_i32 = arith.constant 4 : i32
    %c7_i32_96 = arith.constant 7 : i32
    %413 = arith.subi %c7_i32_96, %c4_i32 : i32
    %c8_i32_97 = arith.constant 8 : i32
    %414 = arith.muli %c4_i32, %c8_i32_97 : i32
    %415 = tpu.assume_multiple %414, 8 : i32
    %c8_i32_98 = arith.constant 8 : i32
    %416 = arith.muli %413, %c8_i32_98 : i32
    %417 = tpu.assume_multiple %416, 8 : i32
    %418 = arith.index_cast %415 : i32 to index
    %c0_99 = arith.constant 0 : index
    %419 = vector.load %arg9[%418, %c0_99] : memref<64x256xf32, #tpu.memory_space<vmem>>, vector<8x256xf32>
    %420 = arith.index_cast %417 : i32 to index
    %c0_100 = arith.constant 0 : index
    %421 = vector.load %arg9[%420, %c0_100] : memref<64x256xf32, #tpu.memory_space<vmem>>, vector<8x256xf32>
    %422 = arith.index_cast %c4_i32 : i32 to index
    %c0_101 = arith.constant 0 : index
    %c0_102 = arith.constant 0 : index
    %423 = vector.load %arg1[%422, %c0_101, %c0_102] : memref<8x8x1xf32, #tpu.memory_space<vmem>>, vector<1x8x1xf32>
    %424 = vector.shape_cast %423 : vector<1x8x1xf32> to vector<8x1xf32>
    %425 = arith.index_cast %413 : i32 to index
    %c0_103 = arith.constant 0 : index
    %c0_104 = arith.constant 0 : index
    %426 = vector.load %arg1[%425, %c0_103, %c0_104] : memref<8x8x1xf32, #tpu.memory_space<vmem>>, vector<1x8x1xf32>
    %427 = vector.shape_cast %426 : vector<1x8x1xf32> to vector<8x1xf32>
    %428 = tpu.concatenate %367, %400 in 1 : vector<8x32xf32>, vector<8x32xf32> -> vector<8x64xf32>
    %cst_105 = arith.constant dense<0.000000e+00> : vector<8x256xf32>
    %429 = tpu.matmul %428, %7, %cst_105 {dimension_numbers = #tpu.dot_dimension_numbers<[1], [0], [0], [1], [0, 0, 1, 1], [], []>} : vector<8x64xf32>, vector<64x256xf32>, vector<8x256xf32> -> vector<8x256xf32>
    %430 = vector.extract_strided_slice %419 {offsets = [0, 0], sizes = [8, 128], strides = [1, 1]} : vector<8x256xf32> to vector<8x128xf32>
    %431 = vector.extract_strided_slice %429 {offsets = [0, 0], sizes = [8, 128], strides = [1, 1]} : vector<8x256xf32> to vector<8x128xf32>
    %432 = arith.addf %430, %431 : vector<8x128xf32>
    %433 = vector.extract_strided_slice %421 {offsets = [0, 128], sizes = [8, 128], strides = [1, 1]} : vector<8x256xf32> to vector<8x128xf32>
    %434 = vector.extract_strided_slice %429 {offsets = [0, 128], sizes = [8, 128], strides = [1, 1]} : vector<8x256xf32> to vector<8x128xf32>
    %435 = arith.addf %433, %434 : vector<8x128xf32>
    %436 = vector.extract_strided_slice %432 {offsets = [0, 0], sizes = [8, 32], strides = [1, 1]} : vector<8x128xf32> to vector<8x32xf32>
    %437 = arith.negf %436 : vector<8x32xf32>
    %438 = math.exp %437 : vector<8x32xf32>
    %cst_106 = arith.constant 1.000000e+00 : f32
    %439 = vector.broadcast %cst_106 : f32 to vector<8x32xf32>
    %440 = arith.addf %439, %438 : vector<8x32xf32>
    %441 = arith.divf %439, %440 : vector<8x32xf32>
    %442 = vector.extract_strided_slice %432 {offsets = [0, 32], sizes = [8, 32], strides = [1, 1]} : vector<8x128xf32> to vector<8x32xf32>
    %443 = arith.negf %442 : vector<8x32xf32>
    %444 = math.exp %443 : vector<8x32xf32>
    %cst_107 = arith.constant 1.000000e+00 : f32
    %445 = vector.broadcast %cst_107 : f32 to vector<8x32xf32>
    %446 = arith.addf %445, %444 : vector<8x32xf32>
    %447 = arith.divf %445, %446 : vector<8x32xf32>
    %448 = vector.extract_strided_slice %432 {offsets = [0, 64], sizes = [8, 32], strides = [1, 1]} : vector<8x128xf32> to vector<8x32xf32>
    %449 = math.tanh %448 : vector<8x32xf32>
    %450 = vector.extract_strided_slice %432 {offsets = [0, 96], sizes = [8, 32], strides = [1, 1]} : vector<8x128xf32> to vector<8x32xf32>
    %451 = arith.negf %450 : vector<8x32xf32>
    %452 = math.exp %451 : vector<8x32xf32>
    %cst_108 = arith.constant 1.000000e+00 : f32
    %453 = vector.broadcast %cst_108 : f32 to vector<8x32xf32>
    %454 = arith.addf %453, %452 : vector<8x32xf32>
    %455 = arith.divf %453, %454 : vector<8x32xf32>
    %456 = arith.mulf %447, %364 : vector<8x32xf32>
    %457 = arith.mulf %441, %449 : vector<8x32xf32>
    %458 = arith.addf %456, %457 : vector<8x32xf32>
    %459 = math.tanh %458 : vector<8x32xf32>
    %460 = arith.mulf %455, %459 : vector<8x32xf32>
    %cst_109 = arith.constant 5.000000e-01 : f32
    %461 = vector.broadcast %cst_109 : f32 to vector<8x1xf32>
    %462 = arith.cmpf ogt, %424, %461 : vector<8x1xf32>
    %463 = vector.shape_cast %462 : vector<8x1xi1> to vector<8x1xi1>
    %464 = vector.broadcast %463 : vector<8x1xi1> to vector<8x32xi1>
    %465 = arith.select %464, %458, %364 : vector<8x32xi1>, vector<8x32xf32>
    %466 = vector.shape_cast %462 : vector<8x1xi1> to vector<8x1xi1>
    %467 = vector.broadcast %466 : vector<8x1xi1> to vector<8x32xi1>
    %468 = arith.select %467, %460, %367 : vector<8x32xi1>, vector<8x32xf32>
    %469 = vector.extract_strided_slice %435 {offsets = [0, 0], sizes = [8, 32], strides = [1, 1]} : vector<8x128xf32> to vector<8x32xf32>
    %470 = arith.negf %469 : vector<8x32xf32>
    %471 = math.exp %470 : vector<8x32xf32>
    %cst_110 = arith.constant 1.000000e+00 : f32
    %472 = vector.broadcast %cst_110 : f32 to vector<8x32xf32>
    %473 = arith.addf %472, %471 : vector<8x32xf32>
    %474 = arith.divf %472, %473 : vector<8x32xf32>
    %475 = vector.extract_strided_slice %435 {offsets = [0, 32], sizes = [8, 32], strides = [1, 1]} : vector<8x128xf32> to vector<8x32xf32>
    %476 = arith.negf %475 : vector<8x32xf32>
    %477 = math.exp %476 : vector<8x32xf32>
    %cst_111 = arith.constant 1.000000e+00 : f32
    %478 = vector.broadcast %cst_111 : f32 to vector<8x32xf32>
    %479 = arith.addf %478, %477 : vector<8x32xf32>
    %480 = arith.divf %478, %479 : vector<8x32xf32>
    %481 = vector.extract_strided_slice %435 {offsets = [0, 64], sizes = [8, 32], strides = [1, 1]} : vector<8x128xf32> to vector<8x32xf32>
    %482 = math.tanh %481 : vector<8x32xf32>
    %483 = vector.extract_strided_slice %435 {offsets = [0, 96], sizes = [8, 32], strides = [1, 1]} : vector<8x128xf32> to vector<8x32xf32>
    %484 = arith.negf %483 : vector<8x32xf32>
    %485 = math.exp %484 : vector<8x32xf32>
    %cst_112 = arith.constant 1.000000e+00 : f32
    %486 = vector.broadcast %cst_112 : f32 to vector<8x32xf32>
    %487 = arith.addf %486, %485 : vector<8x32xf32>
    %488 = arith.divf %486, %487 : vector<8x32xf32>
    %489 = arith.mulf %480, %397 : vector<8x32xf32>
    %490 = arith.mulf %474, %482 : vector<8x32xf32>
    %491 = arith.addf %489, %490 : vector<8x32xf32>
    %492 = math.tanh %491 : vector<8x32xf32>
    %493 = arith.mulf %488, %492 : vector<8x32xf32>
    %cst_113 = arith.constant 5.000000e-01 : f32
    %494 = vector.broadcast %cst_113 : f32 to vector<8x1xf32>
    %495 = arith.cmpf ogt, %427, %494 : vector<8x1xf32>
    %496 = vector.shape_cast %495 : vector<8x1xi1> to vector<8x1xi1>
    %497 = vector.broadcast %496 : vector<8x1xi1> to vector<8x32xi1>
    %498 = arith.select %497, %491, %397 : vector<8x32xi1>, vector<8x32xf32>
    %499 = vector.shape_cast %495 : vector<8x1xi1> to vector<8x1xi1>
    %500 = vector.broadcast %499 : vector<8x1xi1> to vector<8x32xi1>
    %501 = arith.select %500, %493, %400 : vector<8x32xi1>, vector<8x32xf32>
    %502 = vector.broadcast %424 : vector<8x1xf32> to vector<8x32xf32>
    %503 = arith.mulf %468, %502 : vector<8x32xf32>
    %504 = arith.index_cast %c4_i32 : i32 to index
    %c0_114 = arith.constant 0 : index
    %c0_115 = arith.constant 0 : index
    %505 = vector.load %arg5[%504, %c0_114, %c0_115] : memref<8x8x32xf32, #tpu.memory_space<vmem>>, vector<1x8x32xf32>
    %506 = vector.shape_cast %505 : vector<1x8x32xf32> to vector<8x32xf32>
    %507 = vector.shape_cast %503 : vector<8x32xf32> to vector<1x8x32xf32>
    tpu.vector_store %arg5[%504, %c0_114, %c0_115], %507 {strides = array<i32>} : memref<8x8x32xf32, #tpu.memory_space<vmem>>, vector<1x8x32xf32>,
    %508 = vector.broadcast %427 : vector<8x1xf32> to vector<8x32xf32>
    %509 = arith.mulf %501, %508 : vector<8x32xf32>
    %510 = arith.index_cast %413 : i32 to index
    %c0_116 = arith.constant 0 : index
    %c0_117 = arith.constant 0 : index
    %511 = vector.load %arg6[%510, %c0_116, %c0_117] : memref<8x8x32xf32, #tpu.memory_space<vmem>>, vector<1x8x32xf32>
    %512 = vector.shape_cast %511 : vector<1x8x32xf32> to vector<8x32xf32>
    %513 = vector.shape_cast %509 : vector<8x32xf32> to vector<1x8x32xf32>
    tpu.vector_store %arg6[%510, %c0_116, %c0_117], %513 {strides = array<i32>} : memref<8x8x32xf32, #tpu.memory_space<vmem>>, vector<1x8x32xf32>,
    %c5_i32 = arith.constant 5 : i32
    %c7_i32_118 = arith.constant 7 : i32
    %514 = arith.subi %c7_i32_118, %c5_i32 : i32
    %c8_i32_119 = arith.constant 8 : i32
    %515 = arith.muli %c5_i32, %c8_i32_119 : i32
    %516 = tpu.assume_multiple %515, 8 : i32
    %c8_i32_120 = arith.constant 8 : i32
    %517 = arith.muli %514, %c8_i32_120 : i32
    %518 = tpu.assume_multiple %517, 8 : i32
    %519 = arith.index_cast %516 : i32 to index
    %c0_121 = arith.constant 0 : index
    %520 = vector.load %arg9[%519, %c0_121] : memref<64x256xf32, #tpu.memory_space<vmem>>, vector<8x256xf32>
    %521 = arith.index_cast %518 : i32 to index
    %c0_122 = arith.constant 0 : index
    %522 = vector.load %arg9[%521, %c0_122] : memref<64x256xf32, #tpu.memory_space<vmem>>, vector<8x256xf32>
    %523 = arith.index_cast %c5_i32 : i32 to index
    %c0_123 = arith.constant 0 : index
    %c0_124 = arith.constant 0 : index
    %524 = vector.load %arg1[%523, %c0_123, %c0_124] : memref<8x8x1xf32, #tpu.memory_space<vmem>>, vector<1x8x1xf32>
    %525 = vector.shape_cast %524 : vector<1x8x1xf32> to vector<8x1xf32>
    %526 = arith.index_cast %514 : i32 to index
    %c0_125 = arith.constant 0 : index
    %c0_126 = arith.constant 0 : index
    %527 = vector.load %arg1[%526, %c0_125, %c0_126] : memref<8x8x1xf32, #tpu.memory_space<vmem>>, vector<1x8x1xf32>
    %528 = vector.shape_cast %527 : vector<1x8x1xf32> to vector<8x1xf32>
    %529 = tpu.concatenate %468, %501 in 1 : vector<8x32xf32>, vector<8x32xf32> -> vector<8x64xf32>
    %cst_127 = arith.constant dense<0.000000e+00> : vector<8x256xf32>
    %530 = tpu.matmul %529, %7, %cst_127 {dimension_numbers = #tpu.dot_dimension_numbers<[1], [0], [0], [1], [0, 0, 1, 1], [], []>} : vector<8x64xf32>, vector<64x256xf32>, vector<8x256xf32> -> vector<8x256xf32>
    %531 = vector.extract_strided_slice %520 {offsets = [0, 0], sizes = [8, 128], strides = [1, 1]} : vector<8x256xf32> to vector<8x128xf32>
    %532 = vector.extract_strided_slice %530 {offsets = [0, 0], sizes = [8, 128], strides = [1, 1]} : vector<8x256xf32> to vector<8x128xf32>
    %533 = arith.addf %531, %532 : vector<8x128xf32>
    %534 = vector.extract_strided_slice %522 {offsets = [0, 128], sizes = [8, 128], strides = [1, 1]} : vector<8x256xf32> to vector<8x128xf32>
    %535 = vector.extract_strided_slice %530 {offsets = [0, 128], sizes = [8, 128], strides = [1, 1]} : vector<8x256xf32> to vector<8x128xf32>
    %536 = arith.addf %534, %535 : vector<8x128xf32>
    %537 = vector.extract_strided_slice %533 {offsets = [0, 0], sizes = [8, 32], strides = [1, 1]} : vector<8x128xf32> to vector<8x32xf32>
    %538 = arith.negf %537 : vector<8x32xf32>
    %539 = math.exp %538 : vector<8x32xf32>
    %cst_128 = arith.constant 1.000000e+00 : f32
    %540 = vector.broadcast %cst_128 : f32 to vector<8x32xf32>
    %541 = arith.addf %540, %539 : vector<8x32xf32>
    %542 = arith.divf %540, %541 : vector<8x32xf32>
    %543 = vector.extract_strided_slice %533 {offsets = [0, 32], sizes = [8, 32], strides = [1, 1]} : vector<8x128xf32> to vector<8x32xf32>
    %544 = arith.negf %543 : vector<8x32xf32>
    %545 = math.exp %544 : vector<8x32xf32>
    %cst_129 = arith.constant 1.000000e+00 : f32
    %546 = vector.broadcast %cst_129 : f32 to vector<8x32xf32>
    %547 = arith.addf %546, %545 : vector<8x32xf32>
    %548 = arith.divf %546, %547 : vector<8x32xf32>
    %549 = vector.extract_strided_slice %533 {offsets = [0, 64], sizes = [8, 32], strides = [1, 1]} : vector<8x128xf32> to vector<8x32xf32>
    %550 = math.tanh %549 : vector<8x32xf32>
    %551 = vector.extract_strided_slice %533 {offsets = [0, 96], sizes = [8, 32], strides = [1, 1]} : vector<8x128xf32> to vector<8x32xf32>
    %552 = arith.negf %551 : vector<8x32xf32>
    %553 = math.exp %552 : vector<8x32xf32>
    %cst_130 = arith.constant 1.000000e+00 : f32
    %554 = vector.broadcast %cst_130 : f32 to vector<8x32xf32>
    %555 = arith.addf %554, %553 : vector<8x32xf32>
    %556 = arith.divf %554, %555 : vector<8x32xf32>
    %557 = arith.mulf %548, %465 : vector<8x32xf32>
    %558 = arith.mulf %542, %550 : vector<8x32xf32>
    %559 = arith.addf %557, %558 : vector<8x32xf32>
    %560 = math.tanh %559 : vector<8x32xf32>
    %561 = arith.mulf %556, %560 : vector<8x32xf32>
    %cst_131 = arith.constant 5.000000e-01 : f32
    %562 = vector.broadcast %cst_131 : f32 to vector<8x1xf32>
    %563 = arith.cmpf ogt, %525, %562 : vector<8x1xf32>
    %564 = vector.shape_cast %563 : vector<8x1xi1> to vector<8x1xi1>
    %565 = vector.broadcast %564 : vector<8x1xi1> to vector<8x32xi1>
    %566 = arith.select %565, %559, %465 : vector<8x32xi1>, vector<8x32xf32>
    %567 = vector.shape_cast %563 : vector<8x1xi1> to vector<8x1xi1>
    %568 = vector.broadcast %567 : vector<8x1xi1> to vector<8x32xi1>
    %569 = arith.select %568, %561, %468 : vector<8x32xi1>, vector<8x32xf32>
    %570 = vector.extract_strided_slice %536 {offsets = [0, 0], sizes = [8, 32], strides = [1, 1]} : vector<8x128xf32> to vector<8x32xf32>
    %571 = arith.negf %570 : vector<8x32xf32>
    %572 = math.exp %571 : vector<8x32xf32>
    %cst_132 = arith.constant 1.000000e+00 : f32
    %573 = vector.broadcast %cst_132 : f32 to vector<8x32xf32>
    %574 = arith.addf %573, %572 : vector<8x32xf32>
    %575 = arith.divf %573, %574 : vector<8x32xf32>
    %576 = vector.extract_strided_slice %536 {offsets = [0, 32], sizes = [8, 32], strides = [1, 1]} : vector<8x128xf32> to vector<8x32xf32>
    %577 = arith.negf %576 : vector<8x32xf32>
    %578 = math.exp %577 : vector<8x32xf32>
    %cst_133 = arith.constant 1.000000e+00 : f32
    %579 = vector.broadcast %cst_133 : f32 to vector<8x32xf32>
    %580 = arith.addf %579, %578 : vector<8x32xf32>
    %581 = arith.divf %579, %580 : vector<8x32xf32>
    %582 = vector.extract_strided_slice %536 {offsets = [0, 64], sizes = [8, 32], strides = [1, 1]} : vector<8x128xf32> to vector<8x32xf32>
    %583 = math.tanh %582 : vector<8x32xf32>
    %584 = vector.extract_strided_slice %536 {offsets = [0, 96], sizes = [8, 32], strides = [1, 1]} : vector<8x128xf32> to vector<8x32xf32>
    %585 = arith.negf %584 : vector<8x32xf32>
    %586 = math.exp %585 : vector<8x32xf32>
    %cst_134 = arith.constant 1.000000e+00 : f32
    %587 = vector.broadcast %cst_134 : f32 to vector<8x32xf32>
    %588 = arith.addf %587, %586 : vector<8x32xf32>
    %589 = arith.divf %587, %588 : vector<8x32xf32>
    %590 = arith.mulf %581, %498 : vector<8x32xf32>
    %591 = arith.mulf %575, %583 : vector<8x32xf32>
    %592 = arith.addf %590, %591 : vector<8x32xf32>
    %593 = math.tanh %592 : vector<8x32xf32>
    %594 = arith.mulf %589, %593 : vector<8x32xf32>
    %cst_135 = arith.constant 5.000000e-01 : f32
    %595 = vector.broadcast %cst_135 : f32 to vector<8x1xf32>
    %596 = arith.cmpf ogt, %528, %595 : vector<8x1xf32>
    %597 = vector.shape_cast %596 : vector<8x1xi1> to vector<8x1xi1>
    %598 = vector.broadcast %597 : vector<8x1xi1> to vector<8x32xi1>
    %599 = arith.select %598, %592, %498 : vector<8x32xi1>, vector<8x32xf32>
    %600 = vector.shape_cast %596 : vector<8x1xi1> to vector<8x1xi1>
    %601 = vector.broadcast %600 : vector<8x1xi1> to vector<8x32xi1>
    %602 = arith.select %601, %594, %501 : vector<8x32xi1>, vector<8x32xf32>
    %603 = vector.broadcast %525 : vector<8x1xf32> to vector<8x32xf32>
    %604 = arith.mulf %569, %603 : vector<8x32xf32>
    %605 = arith.index_cast %c5_i32 : i32 to index
    %c0_136 = arith.constant 0 : index
    %c0_137 = arith.constant 0 : index
    %606 = vector.load %arg5[%605, %c0_136, %c0_137] : memref<8x8x32xf32, #tpu.memory_space<vmem>>, vector<1x8x32xf32>
    %607 = vector.shape_cast %606 : vector<1x8x32xf32> to vector<8x32xf32>
    %608 = vector.shape_cast %604 : vector<8x32xf32> to vector<1x8x32xf32>
    tpu.vector_store %arg5[%605, %c0_136, %c0_137], %608 {strides = array<i32>} : memref<8x8x32xf32, #tpu.memory_space<vmem>>, vector<1x8x32xf32>,
    %609 = vector.broadcast %528 : vector<8x1xf32> to vector<8x32xf32>
    %610 = arith.mulf %602, %609 : vector<8x32xf32>
    %611 = arith.index_cast %514 : i32 to index
    %c0_138 = arith.constant 0 : index
    %c0_139 = arith.constant 0 : index
    %612 = vector.load %arg6[%611, %c0_138, %c0_139] : memref<8x8x32xf32, #tpu.memory_space<vmem>>, vector<1x8x32xf32>
    %613 = vector.shape_cast %612 : vector<1x8x32xf32> to vector<8x32xf32>
    %614 = vector.shape_cast %610 : vector<8x32xf32> to vector<1x8x32xf32>
    tpu.vector_store %arg6[%611, %c0_138, %c0_139], %614 {strides = array<i32>} : memref<8x8x32xf32, #tpu.memory_space<vmem>>, vector<1x8x32xf32>,
    %c6_i32 = arith.constant 6 : i32
    %c7_i32_140 = arith.constant 7 : i32
    %615 = arith.subi %c7_i32_140, %c6_i32 : i32
    %c8_i32_141 = arith.constant 8 : i32
    %616 = arith.muli %c6_i32, %c8_i32_141 : i32
    %617 = tpu.assume_multiple %616, 8 : i32
    %c8_i32_142 = arith.constant 8 : i32
    %618 = arith.muli %615, %c8_i32_142 : i32
    %619 = tpu.assume_multiple %618, 8 : i32
    %620 = arith.index_cast %617 : i32 to index
    %c0_143 = arith.constant 0 : index
    %621 = vector.load %arg9[%620, %c0_143] : memref<64x256xf32, #tpu.memory_space<vmem>>, vector<8x256xf32>
    %622 = arith.index_cast %619 : i32 to index
    %c0_144 = arith.constant 0 : index
    %623 = vector.load %arg9[%622, %c0_144] : memref<64x256xf32, #tpu.memory_space<vmem>>, vector<8x256xf32>
    %624 = arith.index_cast %c6_i32 : i32 to index
    %c0_145 = arith.constant 0 : index
    %c0_146 = arith.constant 0 : index
    %625 = vector.load %arg1[%624, %c0_145, %c0_146] : memref<8x8x1xf32, #tpu.memory_space<vmem>>, vector<1x8x1xf32>
    %626 = vector.shape_cast %625 : vector<1x8x1xf32> to vector<8x1xf32>
    %627 = arith.index_cast %615 : i32 to index
    %c0_147 = arith.constant 0 : index
    %c0_148 = arith.constant 0 : index
    %628 = vector.load %arg1[%627, %c0_147, %c0_148] : memref<8x8x1xf32, #tpu.memory_space<vmem>>, vector<1x8x1xf32>
    %629 = vector.shape_cast %628 : vector<1x8x1xf32> to vector<8x1xf32>
    %630 = tpu.concatenate %569, %602 in 1 : vector<8x32xf32>, vector<8x32xf32> -> vector<8x64xf32>
    %cst_149 = arith.constant dense<0.000000e+00> : vector<8x256xf32>
    %631 = tpu.matmul %630, %7, %cst_149 {dimension_numbers = #tpu.dot_dimension_numbers<[1], [0], [0], [1], [0, 0, 1, 1], [], []>} : vector<8x64xf32>, vector<64x256xf32>, vector<8x256xf32> -> vector<8x256xf32>
    %632 = vector.extract_strided_slice %621 {offsets = [0, 0], sizes = [8, 128], strides = [1, 1]} : vector<8x256xf32> to vector<8x128xf32>
    %633 = vector.extract_strided_slice %631 {offsets = [0, 0], sizes = [8, 128], strides = [1, 1]} : vector<8x256xf32> to vector<8x128xf32>
    %634 = arith.addf %632, %633 : vector<8x128xf32>
    %635 = vector.extract_strided_slice %623 {offsets = [0, 128], sizes = [8, 128], strides = [1, 1]} : vector<8x256xf32> to vector<8x128xf32>
    %636 = vector.extract_strided_slice %631 {offsets = [0, 128], sizes = [8, 128], strides = [1, 1]} : vector<8x256xf32> to vector<8x128xf32>
    %637 = arith.addf %635, %636 : vector<8x128xf32>
    %638 = vector.extract_strided_slice %634 {offsets = [0, 0], sizes = [8, 32], strides = [1, 1]} : vector<8x128xf32> to vector<8x32xf32>
    %639 = arith.negf %638 : vector<8x32xf32>
    %640 = math.exp %639 : vector<8x32xf32>
    %cst_150 = arith.constant 1.000000e+00 : f32
    %641 = vector.broadcast %cst_150 : f32 to vector<8x32xf32>
    %642 = arith.addf %641, %640 : vector<8x32xf32>
    %643 = arith.divf %641, %642 : vector<8x32xf32>
    %644 = vector.extract_strided_slice %634 {offsets = [0, 32], sizes = [8, 32], strides = [1, 1]} : vector<8x128xf32> to vector<8x32xf32>
    %645 = arith.negf %644 : vector<8x32xf32>
    %646 = math.exp %645 : vector<8x32xf32>
    %cst_151 = arith.constant 1.000000e+00 : f32
    %647 = vector.broadcast %cst_151 : f32 to vector<8x32xf32>
    %648 = arith.addf %647, %646 : vector<8x32xf32>
    %649 = arith.divf %647, %648 : vector<8x32xf32>
    %650 = vector.extract_strided_slice %634 {offsets = [0, 64], sizes = [8, 32], strides = [1, 1]} : vector<8x128xf32> to vector<8x32xf32>
    %651 = math.tanh %650 : vector<8x32xf32>
    %652 = vector.extract_strided_slice %634 {offsets = [0, 96], sizes = [8, 32], strides = [1, 1]} : vector<8x128xf32> to vector<8x32xf32>
    %653 = arith.negf %652 : vector<8x32xf32>
    %654 = math.exp %653 : vector<8x32xf32>
    %cst_152 = arith.constant 1.000000e+00 : f32
    %655 = vector.broadcast %cst_152 : f32 to vector<8x32xf32>
    %656 = arith.addf %655, %654 : vector<8x32xf32>
    %657 = arith.divf %655, %656 : vector<8x32xf32>
    %658 = arith.mulf %649, %566 : vector<8x32xf32>
    %659 = arith.mulf %643, %651 : vector<8x32xf32>
    %660 = arith.addf %658, %659 : vector<8x32xf32>
    %661 = math.tanh %660 : vector<8x32xf32>
    %662 = arith.mulf %657, %661 : vector<8x32xf32>
    %cst_153 = arith.constant 5.000000e-01 : f32
    %663 = vector.broadcast %cst_153 : f32 to vector<8x1xf32>
    %664 = arith.cmpf ogt, %626, %663 : vector<8x1xf32>
    %665 = vector.shape_cast %664 : vector<8x1xi1> to vector<8x1xi1>
    %666 = vector.broadcast %665 : vector<8x1xi1> to vector<8x32xi1>
    %667 = arith.select %666, %660, %566 : vector<8x32xi1>, vector<8x32xf32>
    %668 = vector.shape_cast %664 : vector<8x1xi1> to vector<8x1xi1>
    %669 = vector.broadcast %668 : vector<8x1xi1> to vector<8x32xi1>
    %670 = arith.select %669, %662, %569 : vector<8x32xi1>, vector<8x32xf32>
    %671 = vector.extract_strided_slice %637 {offsets = [0, 0], sizes = [8, 32], strides = [1, 1]} : vector<8x128xf32> to vector<8x32xf32>
    %672 = arith.negf %671 : vector<8x32xf32>
    %673 = math.exp %672 : vector<8x32xf32>
    %cst_154 = arith.constant 1.000000e+00 : f32
    %674 = vector.broadcast %cst_154 : f32 to vector<8x32xf32>
    %675 = arith.addf %674, %673 : vector<8x32xf32>
    %676 = arith.divf %674, %675 : vector<8x32xf32>
    %677 = vector.extract_strided_slice %637 {offsets = [0, 32], sizes = [8, 32], strides = [1, 1]} : vector<8x128xf32> to vector<8x32xf32>
    %678 = arith.negf %677 : vector<8x32xf32>
    %679 = math.exp %678 : vector<8x32xf32>
    %cst_155 = arith.constant 1.000000e+00 : f32
    %680 = vector.broadcast %cst_155 : f32 to vector<8x32xf32>
    %681 = arith.addf %680, %679 : vector<8x32xf32>
    %682 = arith.divf %680, %681 : vector<8x32xf32>
    %683 = vector.extract_strided_slice %637 {offsets = [0, 64], sizes = [8, 32], strides = [1, 1]} : vector<8x128xf32> to vector<8x32xf32>
    %684 = math.tanh %683 : vector<8x32xf32>
    %685 = vector.extract_strided_slice %637 {offsets = [0, 96], sizes = [8, 32], strides = [1, 1]} : vector<8x128xf32> to vector<8x32xf32>
    %686 = arith.negf %685 : vector<8x32xf32>
    %687 = math.exp %686 : vector<8x32xf32>
    %cst_156 = arith.constant 1.000000e+00 : f32
    %688 = vector.broadcast %cst_156 : f32 to vector<8x32xf32>
    %689 = arith.addf %688, %687 : vector<8x32xf32>
    %690 = arith.divf %688, %689 : vector<8x32xf32>
    %691 = arith.mulf %682, %599 : vector<8x32xf32>
    %692 = arith.mulf %676, %684 : vector<8x32xf32>
    %693 = arith.addf %691, %692 : vector<8x32xf32>
    %694 = math.tanh %693 : vector<8x32xf32>
    %695 = arith.mulf %690, %694 : vector<8x32xf32>
    %cst_157 = arith.constant 5.000000e-01 : f32
    %696 = vector.broadcast %cst_157 : f32 to vector<8x1xf32>
    %697 = arith.cmpf ogt, %629, %696 : vector<8x1xf32>
    %698 = vector.shape_cast %697 : vector<8x1xi1> to vector<8x1xi1>
    %699 = vector.broadcast %698 : vector<8x1xi1> to vector<8x32xi1>
    %700 = arith.select %699, %693, %599 : vector<8x32xi1>, vector<8x32xf32>
    %701 = vector.shape_cast %697 : vector<8x1xi1> to vector<8x1xi1>
    %702 = vector.broadcast %701 : vector<8x1xi1> to vector<8x32xi1>
    %703 = arith.select %702, %695, %602 : vector<8x32xi1>, vector<8x32xf32>
    %704 = vector.broadcast %626 : vector<8x1xf32> to vector<8x32xf32>
    %705 = arith.mulf %670, %704 : vector<8x32xf32>
    %706 = arith.index_cast %c6_i32 : i32 to index
    %c0_158 = arith.constant 0 : index
    %c0_159 = arith.constant 0 : index
    %707 = vector.load %arg5[%706, %c0_158, %c0_159] : memref<8x8x32xf32, #tpu.memory_space<vmem>>, vector<1x8x32xf32>
    %708 = vector.shape_cast %707 : vector<1x8x32xf32> to vector<8x32xf32>
    %709 = vector.shape_cast %705 : vector<8x32xf32> to vector<1x8x32xf32>
    tpu.vector_store %arg5[%706, %c0_158, %c0_159], %709 {strides = array<i32>} : memref<8x8x32xf32, #tpu.memory_space<vmem>>, vector<1x8x32xf32>,
    %710 = vector.broadcast %629 : vector<8x1xf32> to vector<8x32xf32>
    %711 = arith.mulf %703, %710 : vector<8x32xf32>
    %712 = arith.index_cast %615 : i32 to index
    %c0_160 = arith.constant 0 : index
    %c0_161 = arith.constant 0 : index
    %713 = vector.load %arg6[%712, %c0_160, %c0_161] : memref<8x8x32xf32, #tpu.memory_space<vmem>>, vector<1x8x32xf32>
    %714 = vector.shape_cast %713 : vector<1x8x32xf32> to vector<8x32xf32>
    %715 = vector.shape_cast %711 : vector<8x32xf32> to vector<1x8x32xf32>
    tpu.vector_store %arg6[%712, %c0_160, %c0_161], %715 {strides = array<i32>} : memref<8x8x32xf32, #tpu.memory_space<vmem>>, vector<1x8x32xf32>,
    %c7_i32_162 = arith.constant 7 : i32
    %c7_i32_163 = arith.constant 7 : i32
    %716 = arith.subi %c7_i32_163, %c7_i32_162 : i32
    %c8_i32_164 = arith.constant 8 : i32
    %717 = arith.muli %c7_i32_162, %c8_i32_164 : i32
    %718 = tpu.assume_multiple %717, 8 : i32
    %c8_i32_165 = arith.constant 8 : i32
    %719 = arith.muli %716, %c8_i32_165 : i32
    %720 = tpu.assume_multiple %719, 8 : i32
    %721 = arith.index_cast %718 : i32 to index
    %c0_166 = arith.constant 0 : index
    %722 = vector.load %arg9[%721, %c0_166] : memref<64x256xf32, #tpu.memory_space<vmem>>, vector<8x256xf32>
    %723 = arith.index_cast %720 : i32 to index
    %c0_167 = arith.constant 0 : index
    %724 = vector.load %arg9[%723, %c0_167] : memref<64x256xf32, #tpu.memory_space<vmem>>, vector<8x256xf32>
    %725 = arith.index_cast %c7_i32_162 : i32 to index
    %c0_168 = arith.constant 0 : index
    %c0_169 = arith.constant 0 : index
    %726 = vector.load %arg1[%725, %c0_168, %c0_169] : memref<8x8x1xf32, #tpu.memory_space<vmem>>, vector<1x8x1xf32>
    %727 = vector.shape_cast %726 : vector<1x8x1xf32> to vector<8x1xf32>
    %728 = arith.index_cast %716 : i32 to index
    %c0_170 = arith.constant 0 : index
    %c0_171 = arith.constant 0 : index
    %729 = vector.load %arg1[%728, %c0_170, %c0_171] : memref<8x8x1xf32, #tpu.memory_space<vmem>>, vector<1x8x1xf32>
    %730 = vector.shape_cast %729 : vector<1x8x1xf32> to vector<8x1xf32>
    %731 = tpu.concatenate %670, %703 in 1 : vector<8x32xf32>, vector<8x32xf32> -> vector<8x64xf32>
    %cst_172 = arith.constant dense<0.000000e+00> : vector<8x256xf32>
    %732 = tpu.matmul %731, %7, %cst_172 {dimension_numbers = #tpu.dot_dimension_numbers<[1], [0], [0], [1], [0, 0, 1, 1], [], []>} : vector<8x64xf32>, vector<64x256xf32>, vector<8x256xf32> -> vector<8x256xf32>
    %733 = vector.extract_strided_slice %722 {offsets = [0, 0], sizes = [8, 128], strides = [1, 1]} : vector<8x256xf32> to vector<8x128xf32>
    %734 = vector.extract_strided_slice %732 {offsets = [0, 0], sizes = [8, 128], strides = [1, 1]} : vector<8x256xf32> to vector<8x128xf32>
    %735 = arith.addf %733, %734 : vector<8x128xf32>
    %736 = vector.extract_strided_slice %724 {offsets = [0, 128], sizes = [8, 128], strides = [1, 1]} : vector<8x256xf32> to vector<8x128xf32>
    %737 = vector.extract_strided_slice %732 {offsets = [0, 128], sizes = [8, 128], strides = [1, 1]} : vector<8x256xf32> to vector<8x128xf32>
    %738 = arith.addf %736, %737 : vector<8x128xf32>
    %739 = vector.extract_strided_slice %735 {offsets = [0, 0], sizes = [8, 32], strides = [1, 1]} : vector<8x128xf32> to vector<8x32xf32>
    %740 = arith.negf %739 : vector<8x32xf32>
    %741 = math.exp %740 : vector<8x32xf32>
    %cst_173 = arith.constant 1.000000e+00 : f32
    %742 = vector.broadcast %cst_173 : f32 to vector<8x32xf32>
    %743 = arith.addf %742, %741 : vector<8x32xf32>
    %744 = arith.divf %742, %743 : vector<8x32xf32>
    %745 = vector.extract_strided_slice %735 {offsets = [0, 32], sizes = [8, 32], strides = [1, 1]} : vector<8x128xf32> to vector<8x32xf32>
    %746 = arith.negf %745 : vector<8x32xf32>
    %747 = math.exp %746 : vector<8x32xf32>
    %cst_174 = arith.constant 1.000000e+00 : f32
    %748 = vector.broadcast %cst_174 : f32 to vector<8x32xf32>
    %749 = arith.addf %748, %747 : vector<8x32xf32>
    %750 = arith.divf %748, %749 : vector<8x32xf32>
    %751 = vector.extract_strided_slice %735 {offsets = [0, 64], sizes = [8, 32], strides = [1, 1]} : vector<8x128xf32> to vector<8x32xf32>
    %752 = math.tanh %751 : vector<8x32xf32>
    %753 = vector.extract_strided_slice %735 {offsets = [0, 96], sizes = [8, 32], strides = [1, 1]} : vector<8x128xf32> to vector<8x32xf32>
    %754 = arith.negf %753 : vector<8x32xf32>
    %755 = math.exp %754 : vector<8x32xf32>
    %cst_175 = arith.constant 1.000000e+00 : f32
    %756 = vector.broadcast %cst_175 : f32 to vector<8x32xf32>
    %757 = arith.addf %756, %755 : vector<8x32xf32>
    %758 = arith.divf %756, %757 : vector<8x32xf32>
    %759 = arith.mulf %750, %667 : vector<8x32xf32>
    %760 = arith.mulf %744, %752 : vector<8x32xf32>
    %761 = arith.addf %759, %760 : vector<8x32xf32>
    %762 = math.tanh %761 : vector<8x32xf32>
    %763 = arith.mulf %758, %762 : vector<8x32xf32>
    %cst_176 = arith.constant 5.000000e-01 : f32
    %764 = vector.broadcast %cst_176 : f32 to vector<8x1xf32>
    %765 = arith.cmpf ogt, %727, %764 : vector<8x1xf32>
    %766 = vector.shape_cast %765 : vector<8x1xi1> to vector<8x1xi1>
    %767 = vector.broadcast %766 : vector<8x1xi1> to vector<8x32xi1>
    %768 = arith.select %767, %761, %667 : vector<8x32xi1>, vector<8x32xf32>
    %769 = vector.shape_cast %765 : vector<8x1xi1> to vector<8x1xi1>
    %770 = vector.broadcast %769 : vector<8x1xi1> to vector<8x32xi1>
    %771 = arith.select %770, %763, %670 : vector<8x32xi1>, vector<8x32xf32>
    %772 = vector.extract_strided_slice %738 {offsets = [0, 0], sizes = [8, 32], strides = [1, 1]} : vector<8x128xf32> to vector<8x32xf32>
    %773 = arith.negf %772 : vector<8x32xf32>
    %774 = math.exp %773 : vector<8x32xf32>
    %cst_177 = arith.constant 1.000000e+00 : f32
    %775 = vector.broadcast %cst_177 : f32 to vector<8x32xf32>
    %776 = arith.addf %775, %774 : vector<8x32xf32>
    %777 = arith.divf %775, %776 : vector<8x32xf32>
    %778 = vector.extract_strided_slice %738 {offsets = [0, 32], sizes = [8, 32], strides = [1, 1]} : vector<8x128xf32> to vector<8x32xf32>
    %779 = arith.negf %778 : vector<8x32xf32>
    %780 = math.exp %779 : vector<8x32xf32>
    %cst_178 = arith.constant 1.000000e+00 : f32
    %781 = vector.broadcast %cst_178 : f32 to vector<8x32xf32>
    %782 = arith.addf %781, %780 : vector<8x32xf32>
    %783 = arith.divf %781, %782 : vector<8x32xf32>
    %784 = vector.extract_strided_slice %738 {offsets = [0, 64], sizes = [8, 32], strides = [1, 1]} : vector<8x128xf32> to vector<8x32xf32>
    %785 = math.tanh %784 : vector<8x32xf32>
    %786 = vector.extract_strided_slice %738 {offsets = [0, 96], sizes = [8, 32], strides = [1, 1]} : vector<8x128xf32> to vector<8x32xf32>
    %787 = arith.negf %786 : vector<8x32xf32>
    %788 = math.exp %787 : vector<8x32xf32>
    %cst_179 = arith.constant 1.000000e+00 : f32
    %789 = vector.broadcast %cst_179 : f32 to vector<8x32xf32>
    %790 = arith.addf %789, %788 : vector<8x32xf32>
    %791 = arith.divf %789, %790 : vector<8x32xf32>
    %792 = arith.mulf %783, %700 : vector<8x32xf32>
    %793 = arith.mulf %777, %785 : vector<8x32xf32>
    %794 = arith.addf %792, %793 : vector<8x32xf32>
    %795 = math.tanh %794 : vector<8x32xf32>
    %796 = arith.mulf %791, %795 : vector<8x32xf32>
    %cst_180 = arith.constant 5.000000e-01 : f32
    %797 = vector.broadcast %cst_180 : f32 to vector<8x1xf32>
    %798 = arith.cmpf ogt, %730, %797 : vector<8x1xf32>
    %799 = vector.shape_cast %798 : vector<8x1xi1> to vector<8x1xi1>
    %800 = vector.broadcast %799 : vector<8x1xi1> to vector<8x32xi1>
    %801 = arith.select %800, %794, %700 : vector<8x32xi1>, vector<8x32xf32>
    %802 = vector.shape_cast %798 : vector<8x1xi1> to vector<8x1xi1>
    %803 = vector.broadcast %802 : vector<8x1xi1> to vector<8x32xi1>
    %804 = arith.select %803, %796, %703 : vector<8x32xi1>, vector<8x32xf32>
    %805 = vector.broadcast %727 : vector<8x1xf32> to vector<8x32xf32>
    %806 = arith.mulf %771, %805 : vector<8x32xf32>
    %807 = arith.index_cast %c7_i32_162 : i32 to index
    %c0_181 = arith.constant 0 : index
    %c0_182 = arith.constant 0 : index
    %808 = vector.load %arg5[%807, %c0_181, %c0_182] : memref<8x8x32xf32, #tpu.memory_space<vmem>>, vector<1x8x32xf32>
    %809 = vector.shape_cast %808 : vector<1x8x32xf32> to vector<8x32xf32>
    %810 = vector.shape_cast %806 : vector<8x32xf32> to vector<1x8x32xf32>
    tpu.vector_store %arg5[%807, %c0_181, %c0_182], %810 {strides = array<i32>} : memref<8x8x32xf32, #tpu.memory_space<vmem>>, vector<1x8x32xf32>,
    %811 = vector.broadcast %730 : vector<8x1xf32> to vector<8x32xf32>
    %812 = arith.mulf %804, %811 : vector<8x32xf32>
    %813 = arith.index_cast %716 : i32 to index
    %c0_183 = arith.constant 0 : index
    %c0_184 = arith.constant 0 : index
    %814 = vector.load %arg6[%813, %c0_183, %c0_184] : memref<8x8x32xf32, #tpu.memory_space<vmem>>, vector<1x8x32xf32>
    %815 = vector.shape_cast %814 : vector<1x8x32xf32> to vector<8x32xf32>
    %816 = vector.shape_cast %812 : vector<8x32xf32> to vector<1x8x32xf32>
    tpu.vector_store %arg6[%813, %c0_183, %c0_184], %816 {strides = array<i32>} : memref<8x8x32xf32, #tpu.memory_space<vmem>>, vector<1x8x32xf32>,
    %c8_i32_185 = arith.constant 8 : i32
    %c0_186 = arith.constant 0 : index
    %c0_187 = arith.constant 0 : index
    %817 = vector.load %arg7[%c0_186, %c0_187] : memref<8x32xf32, #tpu.memory_space<vmem>>, vector<8x32xf32>
    tpu.vector_store %arg7[%c0_186, %c0_187], %771 {strides = array<i32>} : memref<8x32xf32, #tpu.memory_space<vmem>>, vector<8x32xf32>,
    %c0_188 = arith.constant 0 : index
    %c0_189 = arith.constant 0 : index
    %818 = vector.load %arg8[%c0_188, %c0_189] : memref<8x32xf32, #tpu.memory_space<vmem>>, vector<8x32xf32>
    tpu.vector_store %arg8[%c0_188, %c0_189], %804 {strides = array<i32>} : memref<8x32xf32, #tpu.memory_space<vmem>>, vector<8x32xf32>,
    return
  }
}

module attributes {stable_mosaic.version = 11 : i64} {
  func.func @bilstm_layer_kernel(%arg0: memref<64x64xf32, #tpu.memory_space<vmem>>, %arg1: memref<8x8x1xf32, #tpu.memory_space<vmem>>, %arg2: memref<64x256xf32, #tpu.memory_space<vmem>>, %arg3: memref<64x256xf32, #tpu.memory_space<vmem>>, %arg4: memref<1x256xf32, #tpu.memory_space<vmem>>, %arg5: memref<8x8x32xf32, #tpu.memory_space<vmem>>, %arg6: memref<8x8x32xf32, #tpu.memory_space<vmem>>, %arg7: memref<8x32xf32, #tpu.memory_space<vmem>>, %arg8: memref<8x32xf32, #tpu.memory_space<vmem>>, %arg9: memref<64x256xf32, #tpu.memory_space<vmem>>) attributes {dimension_semantics = [], scalar_prefetch = 0 : i64, scratch_operands = 1 : i64, tpu.core_type = #tpu.core_type<tc>} {
    %c0 = arith.constant 0 : index
    %c0_0 = arith.constant 0 : index
    %0 = vector.load %arg0[%c0, %c0_0] : memref<64x64xf32, #tpu.memory_space<vmem>>, vector<64x64xf32>
    %c0_1 = arith.constant 0 : index
    %c0_2 = arith.constant 0 : index
    %1 = vector.load %arg2[%c0_1, %c0_2] : memref<64x256xf32, #tpu.memory_space<vmem>>, vector<64x256xf32>
    %cst = arith.constant dense<0.000000e+00> : vector<64x256xf32>
    %2 = tpu.matmul %0, %1, %cst {dimension_numbers = #tpu.dot_dimension_numbers<[1], [0], [0], [1], [0, 0, 1, 1], [], []>} : vector<64x64xf32>, vector<64x256xf32>, vector<64x256xf32> -> vector<64x256xf32>
    %c0_3 = arith.constant 0 : index
    %c0_4 = arith.constant 0 : index
    %3 = vector.load %arg4[%c0_3, %c0_4] : memref<1x256xf32, #tpu.memory_space<vmem>>, vector<1x256xf32>
    %4 = vector.broadcast %3 : vector<1x256xf32> to vector<64x256xf32>
    %5 = arith.addf %2, %4 : vector<64x256xf32>
    %c0_5 = arith.constant 0 : index
    %c0_6 = arith.constant 0 : index
    %6 = vector.load %arg9[%c0_5, %c0_6] : memref<64x256xf32, #tpu.memory_space<vmem>>, vector<64x256xf32>
    tpu.vector_store %arg9[%c0_5, %c0_6], %5 {strides = array<i32>} : memref<64x256xf32, #tpu.memory_space<vmem>>, vector<64x256xf32>,
    %c0_7 = arith.constant 0 : index
    %c0_8 = arith.constant 0 : index
    %7 = vector.load %arg3[%c0_7, %c0_8] : memref<64x256xf32, #tpu.memory_space<vmem>>, vector<64x256xf32>
    %cst_9 = arith.constant 0.000000e+00 : f32
    %8 = vector.broadcast %cst_9 : f32 to vector<8x32xf32>
    %c0_i32 = arith.constant 0 : i32
    %c7_i32 = arith.constant 7 : i32
    %9 = arith.subi %c7_i32, %c0_i32 : i32
    %c8_i32 = arith.constant 8 : i32
    %10 = arith.muli %c0_i32, %c8_i32 : i32
    %11 = tpu.assume_multiple %10, 8 : i32
    %c8_i32_10 = arith.constant 8 : i32
    %12 = arith.muli %9, %c8_i32_10 : i32
    %13 = tpu.assume_multiple %12, 8 : i32
    %14 = arith.index_cast %11 : i32 to index
    %c0_11 = arith.constant 0 : index
    %15 = vector.load %arg9[%14, %c0_11] : memref<64x256xf32, #tpu.memory_space<vmem>>, vector<8x256xf32>
    %16 = arith.index_cast %13 : i32 to index
    %c0_12 = arith.constant 0 : index
    %17 = vector.load %arg9[%16, %c0_12] : memref<64x256xf32, #tpu.memory_space<vmem>>, vector<8x256xf32>
    %18 = arith.index_cast %c0_i32 : i32 to index
    %c0_13 = arith.constant 0 : index
    %c0_14 = arith.constant 0 : index
    %19 = vector.load %arg1[%18, %c0_13, %c0_14] : memref<8x8x1xf32, #tpu.memory_space<vmem>>, vector<1x8x1xf32>
    %20 = vector.shape_cast %19 : vector<1x8x1xf32> to vector<8x1xf32>
    %21 = arith.index_cast %9 : i32 to index
    %c0_15 = arith.constant 0 : index
    %c0_16 = arith.constant 0 : index
    %22 = vector.load %arg1[%21, %c0_15, %c0_16] : memref<8x8x1xf32, #tpu.memory_space<vmem>>, vector<1x8x1xf32>
    %23 = vector.shape_cast %22 : vector<1x8x1xf32> to vector<8x1xf32>
    %24 = tpu.concatenate %8, %8 in 1 : vector<8x32xf32>, vector<8x32xf32> -> vector<8x64xf32>
    %cst_17 = arith.constant dense<0.000000e+00> : vector<8x256xf32>
    %25 = tpu.matmul %24, %7, %cst_17 {dimension_numbers = #tpu.dot_dimension_numbers<[1], [0], [0], [1], [0, 0, 1, 1], [], []>} : vector<8x64xf32>, vector<64x256xf32>, vector<8x256xf32> -> vector<8x256xf32>
    %26 = vector.extract_strided_slice %15 {offsets = [0, 0], sizes = [8, 128], strides = [1, 1]} : vector<8x256xf32> to vector<8x128xf32>
    %27 = vector.extract_strided_slice %25 {offsets = [0, 0], sizes = [8, 128], strides = [1, 1]} : vector<8x256xf32> to vector<8x128xf32>
    %28 = arith.addf %26, %27 : vector<8x128xf32>
    %29 = vector.extract_strided_slice %17 {offsets = [0, 128], sizes = [8, 128], strides = [1, 1]} : vector<8x256xf32> to vector<8x128xf32>
    %30 = vector.extract_strided_slice %25 {offsets = [0, 128], sizes = [8, 128], strides = [1, 1]} : vector<8x256xf32> to vector<8x128xf32>
    %31 = arith.addf %29, %30 : vector<8x128xf32>
    %32 = vector.extract_strided_slice %28 {offsets = [0, 0], sizes = [8, 32], strides = [1, 1]} : vector<8x128xf32> to vector<8x32xf32>
    %33 = arith.negf %32 : vector<8x32xf32>
    %34 = math.exp %33 : vector<8x32xf32>
    %cst_18 = arith.constant 1.000000e+00 : f32
    %35 = vector.broadcast %cst_18 : f32 to vector<8x32xf32>
    %36 = arith.addf %35, %34 : vector<8x32xf32>
    %37 = arith.divf %35, %36 : vector<8x32xf32>
    %38 = vector.extract_strided_slice %28 {offsets = [0, 32], sizes = [8, 32], strides = [1, 1]} : vector<8x128xf32> to vector<8x32xf32>
    %39 = arith.negf %38 : vector<8x32xf32>
    %40 = math.exp %39 : vector<8x32xf32>
    %cst_19 = arith.constant 1.000000e+00 : f32
    %41 = vector.broadcast %cst_19 : f32 to vector<8x32xf32>
    %42 = arith.addf %41, %40 : vector<8x32xf32>
    %43 = arith.divf %41, %42 : vector<8x32xf32>
    %44 = vector.extract_strided_slice %28 {offsets = [0, 64], sizes = [8, 32], strides = [1, 1]} : vector<8x128xf32> to vector<8x32xf32>
    %45 = math.tanh %44 : vector<8x32xf32>
    %46 = vector.extract_strided_slice %28 {offsets = [0, 96], sizes = [8, 32], strides = [1, 1]} : vector<8x128xf32> to vector<8x32xf32>
    %47 = arith.negf %46 : vector<8x32xf32>
    %48 = math.exp %47 : vector<8x32xf32>
    %cst_20 = arith.constant 1.000000e+00 : f32
    %49 = vector.broadcast %cst_20 : f32 to vector<8x32xf32>
    %50 = arith.addf %49, %48 : vector<8x32xf32>
    %51 = arith.divf %49, %50 : vector<8x32xf32>
    %52 = arith.mulf %43, %8 : vector<8x32xf32>
    %53 = arith.mulf %37, %45 : vector<8x32xf32>
    %54 = arith.addf %52, %53 : vector<8x32xf32>
    %55 = math.tanh %54 : vector<8x32xf32>
    %56 = arith.mulf %51, %55 : vector<8x32xf32>
    %cst_21 = arith.constant 5.000000e-01 : f32
    %57 = vector.broadcast %cst_21 : f32 to vector<8x1xf32>
    %58 = arith.cmpf ogt, %20, %57 : vector<8x1xf32>
    %59 = vector.shape_cast %58 : vector<8x1xi1> to vector<8x1xi1>
    %60 = vector.broadcast %59 : vector<8x1xi1> to vector<8x32xi1>
    %61 = arith.select %60, %54, %8 : vector<8x32xi1>, vector<8x32xf32>
    %62 = vector.shape_cast %58 : vector<8x1xi1> to vector<8x1xi1>
    %63 = vector.broadcast %62 : vector<8x1xi1> to vector<8x32xi1>
    %64 = arith.select %63, %56, %8 : vector<8x32xi1>, vector<8x32xf32>
    %65 = vector.extract_strided_slice %31 {offsets = [0, 0], sizes = [8, 32], strides = [1, 1]} : vector<8x128xf32> to vector<8x32xf32>
    %66 = arith.negf %65 : vector<8x32xf32>
    %67 = math.exp %66 : vector<8x32xf32>
    %cst_22 = arith.constant 1.000000e+00 : f32
    %68 = vector.broadcast %cst_22 : f32 to vector<8x32xf32>
    %69 = arith.addf %68, %67 : vector<8x32xf32>
    %70 = arith.divf %68, %69 : vector<8x32xf32>
    %71 = vector.extract_strided_slice %31 {offsets = [0, 32], sizes = [8, 32], strides = [1, 1]} : vector<8x128xf32> to vector<8x32xf32>
    %72 = arith.negf %71 : vector<8x32xf32>
    %73 = math.exp %72 : vector<8x32xf32>
    %cst_23 = arith.constant 1.000000e+00 : f32
    %74 = vector.broadcast %cst_23 : f32 to vector<8x32xf32>
    %75 = arith.addf %74, %73 : vector<8x32xf32>
    %76 = arith.divf %74, %75 : vector<8x32xf32>
    %77 = vector.extract_strided_slice %31 {offsets = [0, 64], sizes = [8, 32], strides = [1, 1]} : vector<8x128xf32> to vector<8x32xf32>
    %78 = math.tanh %77 : vector<8x32xf32>
    %79 = vector.extract_strided_slice %31 {offsets = [0, 96], sizes = [8, 32], strides = [1, 1]} : vector<8x128xf32> to vector<8x32xf32>
    %80 = arith.negf %79 : vector<8x32xf32>
    %81 = math.exp %80 : vector<8x32xf32>
    %cst_24 = arith.constant 1.000000e+00 : f32
    %82 = vector.broadcast %cst_24 : f32 to vector<8x32xf32>
    %83 = arith.addf %82, %81 : vector<8x32xf32>
    %84 = arith.divf %82, %83 : vector<8x32xf32>
    %85 = arith.mulf %76, %8 : vector<8x32xf32>
    %86 = arith.mulf %70, %78 : vector<8x32xf32>
    %87 = arith.addf %85, %86 : vector<8x32xf32>
    %88 = math.tanh %87 : vector<8x32xf32>
    %89 = arith.mulf %84, %88 : vector<8x32xf32>
    %cst_25 = arith.constant 5.000000e-01 : f32
    %90 = vector.broadcast %cst_25 : f32 to vector<8x1xf32>
    %91 = arith.cmpf ogt, %23, %90 : vector<8x1xf32>
    %92 = vector.shape_cast %91 : vector<8x1xi1> to vector<8x1xi1>
    %93 = vector.broadcast %92 : vector<8x1xi1> to vector<8x32xi1>
    %94 = arith.select %93, %87, %8 : vector<8x32xi1>, vector<8x32xf32>
    %95 = vector.shape_cast %91 : vector<8x1xi1> to vector<8x1xi1>
    %96 = vector.broadcast %95 : vector<8x1xi1> to vector<8x32xi1>
    %97 = arith.select %96, %89, %8 : vector<8x32xi1>, vector<8x32xf32>
    %98 = vector.broadcast %20 : vector<8x1xf32> to vector<8x32xf32>
    %99 = arith.mulf %64, %98 : vector<8x32xf32>
    %100 = arith.index_cast %c0_i32 : i32 to index
    %c0_26 = arith.constant 0 : index
    %c0_27 = arith.constant 0 : index
    %101 = vector.load %arg5[%100, %c0_26, %c0_27] : memref<8x8x32xf32, #tpu.memory_space<vmem>>, vector<1x8x32xf32>
    %102 = vector.shape_cast %101 : vector<1x8x32xf32> to vector<8x32xf32>
    %103 = vector.shape_cast %99 : vector<8x32xf32> to vector<1x8x32xf32>
    tpu.vector_store %arg5[%100, %c0_26, %c0_27], %103 {strides = array<i32>} : memref<8x8x32xf32, #tpu.memory_space<vmem>>, vector<1x8x32xf32>,
    %104 = vector.broadcast %23 : vector<8x1xf32> to vector<8x32xf32>
    %105 = arith.mulf %97, %104 : vector<8x32xf32>
    %106 = arith.index_cast %9 : i32 to index
    %c0_28 = arith.constant 0 : index
    %c0_29 = arith.constant 0 : index
    %107 = vector.load %arg6[%106, %c0_28, %c0_29] : memref<8x8x32xf32, #tpu.memory_space<vmem>>, vector<1x8x32xf32>
    %108 = vector.shape_cast %107 : vector<1x8x32xf32> to vector<8x32xf32>
    %109 = vector.shape_cast %105 : vector<8x32xf32> to vector<1x8x32xf32>
    tpu.vector_store %arg6[%106, %c0_28, %c0_29], %109 {strides = array<i32>} : memref<8x8x32xf32, #tpu.memory_space<vmem>>, vector<1x8x32xf32>,
    %c1_i32 = arith.constant 1 : i32
    %c7_i32_30 = arith.constant 7 : i32
    %110 = arith.subi %c7_i32_30, %c1_i32 : i32
    %c8_i32_31 = arith.constant 8 : i32
    %111 = arith.muli %c1_i32, %c8_i32_31 : i32
    %112 = tpu.assume_multiple %111, 8 : i32
    %c8_i32_32 = arith.constant 8 : i32
    %113 = arith.muli %110, %c8_i32_32 : i32
    %114 = tpu.assume_multiple %113, 8 : i32
    %115 = arith.index_cast %112 : i32 to index
    %c0_33 = arith.constant 0 : index
    %116 = vector.load %arg9[%115, %c0_33] : memref<64x256xf32, #tpu.memory_space<vmem>>, vector<8x256xf32>
    %117 = arith.index_cast %114 : i32 to index
    %c0_34 = arith.constant 0 : index
    %118 = vector.load %arg9[%117, %c0_34] : memref<64x256xf32, #tpu.memory_space<vmem>>, vector<8x256xf32>
    %119 = arith.index_cast %c1_i32 : i32 to index
    %c0_35 = arith.constant 0 : index
    %c0_36 = arith.constant 0 : index
    %120 = vector.load %arg1[%119, %c0_35, %c0_36] : memref<8x8x1xf32, #tpu.memory_space<vmem>>, vector<1x8x1xf32>
    %121 = vector.shape_cast %120 : vector<1x8x1xf32> to vector<8x1xf32>
    %122 = arith.index_cast %110 : i32 to index
    %c0_37 = arith.constant 0 : index
    %c0_38 = arith.constant 0 : index
    %123 = vector.load %arg1[%122, %c0_37, %c0_38] : memref<8x8x1xf32, #tpu.memory_space<vmem>>, vector<1x8x1xf32>
    %124 = vector.shape_cast %123 : vector<1x8x1xf32> to vector<8x1xf32>
    %125 = tpu.concatenate %64, %97 in 1 : vector<8x32xf32>, vector<8x32xf32> -> vector<8x64xf32>
    %cst_39 = arith.constant dense<0.000000e+00> : vector<8x256xf32>
    %126 = tpu.matmul %125, %7, %cst_39 {dimension_numbers = #tpu.dot_dimension_numbers<[1], [0], [0], [1], [0, 0, 1, 1], [], []>} : vector<8x64xf32>, vector<64x256xf32>, vector<8x256xf32> -> vector<8x256xf32>
    %127 = vector.extract_strided_slice %116 {offsets = [0, 0], sizes = [8, 128], strides = [1, 1]} : vector<8x256xf32> to vector<8x128xf32>
    %128 = vector.extract_strided_slice %126 {offsets = [0, 0], sizes = [8, 128], strides = [1, 1]} : vector<8x256xf32> to vector<8x128xf32>
    %129 = arith.addf %127, %128 : vector<8x128xf32>
    %130 = vector.extract_strided_slice %118 {offsets = [0, 128], sizes = [8, 128], strides = [1, 1]} : vector<8x256xf32> to vector<8x128xf32>
    %131 = vector.extract_strided_slice %126 {offsets = [0, 128], sizes = [8, 128], strides = [1, 1]} : vector<8x256xf32> to vector<8x128xf32>
    %132 = arith.addf %130, %131 : vector<8x128xf32>
    %133 = vector.extract_strided_slice %129 {offsets = [0, 0], sizes = [8, 32], strides = [1, 1]} : vector<8x128xf32> to vector<8x32xf32>
    %134 = arith.negf %133 : vector<8x32xf32>
    %135 = math.exp %134 : vector<8x32xf32>
    %cst_40 = arith.constant 1.000000e+00 : f32
    %136 = vector.broadcast %cst_40 : f32 to vector<8x32xf32>
    %137 = arith.addf %136, %135 : vector<8x32xf32>
    %138 = arith.divf %136, %137 : vector<8x32xf32>
    %139 = vector.extract_strided_slice %129 {offsets = [0, 32], sizes = [8, 32], strides = [1, 1]} : vector<8x128xf32> to vector<8x32xf32>
    %140 = arith.negf %139 : vector<8x32xf32>
    %141 = math.exp %140 : vector<8x32xf32>
    %cst_41 = arith.constant 1.000000e+00 : f32
    %142 = vector.broadcast %cst_41 : f32 to vector<8x32xf32>
    %143 = arith.addf %142, %141 : vector<8x32xf32>
    %144 = arith.divf %142, %143 : vector<8x32xf32>
    %145 = vector.extract_strided_slice %129 {offsets = [0, 64], sizes = [8, 32], strides = [1, 1]} : vector<8x128xf32> to vector<8x32xf32>
    %146 = math.tanh %145 : vector<8x32xf32>
    %147 = vector.extract_strided_slice %129 {offsets = [0, 96], sizes = [8, 32], strides = [1, 1]} : vector<8x128xf32> to vector<8x32xf32>
    %148 = arith.negf %147 : vector<8x32xf32>
    %149 = math.exp %148 : vector<8x32xf32>
    %cst_42 = arith.constant 1.000000e+00 : f32
    %150 = vector.broadcast %cst_42 : f32 to vector<8x32xf32>
    %151 = arith.addf %150, %149 : vector<8x32xf32>
    %152 = arith.divf %150, %151 : vector<8x32xf32>
    %153 = arith.mulf %144, %61 : vector<8x32xf32>
    %154 = arith.mulf %138, %146 : vector<8x32xf32>
    %155 = arith.addf %153, %154 : vector<8x32xf32>
    %156 = math.tanh %155 : vector<8x32xf32>
    %157 = arith.mulf %152, %156 : vector<8x32xf32>
    %cst_43 = arith.constant 5.000000e-01 : f32
    %158 = vector.broadcast %cst_43 : f32 to vector<8x1xf32>
    %159 = arith.cmpf ogt, %121, %158 : vector<8x1xf32>
    %160 = vector.shape_cast %159 : vector<8x1xi1> to vector<8x1xi1>
    %161 = vector.broadcast %160 : vector<8x1xi1> to vector<8x32xi1>
    %162 = arith.select %161, %155, %61 : vector<8x32xi1>, vector<8x32xf32>
    %163 = vector.shape_cast %159 : vector<8x1xi1> to vector<8x1xi1>
    %164 = vector.broadcast %163 : vector<8x1xi1> to vector<8x32xi1>
    %165 = arith.select %164, %157, %64 : vector<8x32xi1>, vector<8x32xf32>
    %166 = vector.extract_strided_slice %132 {offsets = [0, 0], sizes = [8, 32], strides = [1, 1]} : vector<8x128xf32> to vector<8x32xf32>
    %167 = arith.negf %166 : vector<8x32xf32>
    %168 = math.exp %167 : vector<8x32xf32>
    %cst_44 = arith.constant 1.000000e+00 : f32
    %169 = vector.broadcast %cst_44 : f32 to vector<8x32xf32>
    %170 = arith.addf %169, %168 : vector<8x32xf32>
    %171 = arith.divf %169, %170 : vector<8x32xf32>
    %172 = vector.extract_strided_slice %132 {offsets = [0, 32], sizes = [8, 32], strides = [1, 1]} : vector<8x128xf32> to vector<8x32xf32>
    %173 = arith.negf %172 : vector<8x32xf32>
    %174 = math.exp %173 : vector<8x32xf32>
    %cst_45 = arith.constant 1.000000e+00 : f32
    %175 = vector.broadcast %cst_45 : f32 to vector<8x32xf32>
    %176 = arith.addf %175, %174 : vector<8x32xf32>
    %177 = arith.divf %175, %176 : vector<8x32xf32>
    %178 = vector.extract_strided_slice %132 {offsets = [0, 64], sizes = [8, 32], strides = [1, 1]} : vector<8x128xf32> to vector<8x32xf32>
    %179 = math.tanh %178 : vector<8x32xf32>
    %180 = vector.extract_strided_slice %132 {offsets = [0, 96], sizes = [8, 32], strides = [1, 1]} : vector<8x128xf32> to vector<8x32xf32>
    %181 = arith.negf %180 : vector<8x32xf32>
    %182 = math.exp %181 : vector<8x32xf32>
    %cst_46 = arith.constant 1.000000e+00 : f32
    %183 = vector.broadcast %cst_46 : f32 to vector<8x32xf32>
    %184 = arith.addf %183, %182 : vector<8x32xf32>
    %185 = arith.divf %183, %184 : vector<8x32xf32>
    %186 = arith.mulf %177, %94 : vector<8x32xf32>
    %187 = arith.mulf %171, %179 : vector<8x32xf32>
    %188 = arith.addf %186, %187 : vector<8x32xf32>
    %189 = math.tanh %188 : vector<8x32xf32>
    %190 = arith.mulf %185, %189 : vector<8x32xf32>
    %cst_47 = arith.constant 5.000000e-01 : f32
    %191 = vector.broadcast %cst_47 : f32 to vector<8x1xf32>
    %192 = arith.cmpf ogt, %124, %191 : vector<8x1xf32>
    %193 = vector.shape_cast %192 : vector<8x1xi1> to vector<8x1xi1>
    %194 = vector.broadcast %193 : vector<8x1xi1> to vector<8x32xi1>
    %195 = arith.select %194, %188, %94 : vector<8x32xi1>, vector<8x32xf32>
    %196 = vector.shape_cast %192 : vector<8x1xi1> to vector<8x1xi1>
    %197 = vector.broadcast %196 : vector<8x1xi1> to vector<8x32xi1>
    %198 = arith.select %197, %190, %97 : vector<8x32xi1>, vector<8x32xf32>
    %199 = vector.broadcast %121 : vector<8x1xf32> to vector<8x32xf32>
    %200 = arith.mulf %165, %199 : vector<8x32xf32>
    %201 = arith.index_cast %c1_i32 : i32 to index
    %c0_48 = arith.constant 0 : index
    %c0_49 = arith.constant 0 : index
    %202 = vector.load %arg5[%201, %c0_48, %c0_49] : memref<8x8x32xf32, #tpu.memory_space<vmem>>, vector<1x8x32xf32>
    %203 = vector.shape_cast %202 : vector<1x8x32xf32> to vector<8x32xf32>
    %204 = vector.shape_cast %200 : vector<8x32xf32> to vector<1x8x32xf32>
    tpu.vector_store %arg5[%201, %c0_48, %c0_49], %204 {strides = array<i32>} : memref<8x8x32xf32, #tpu.memory_space<vmem>>, vector<1x8x32xf32>,
    %205 = vector.broadcast %124 : vector<8x1xf32> to vector<8x32xf32>
    %206 = arith.mulf %198, %205 : vector<8x32xf32>
    %207 = arith.index_cast %110 : i32 to index
    %c0_50 = arith.constant 0 : index
    %c0_51 = arith.constant 0 : index
    %208 = vector.load %arg6[%207, %c0_50, %c0_51] : memref<8x8x32xf32, #tpu.memory_space<vmem>>, vector<1x8x32xf32>
    %209 = vector.shape_cast %208 : vector<1x8x32xf32> to vector<8x32xf32>
    %210 = vector.shape_cast %206 : vector<8x32xf32> to vector<1x8x32xf32>
    tpu.vector_store %arg6[%207, %c0_50, %c0_51], %210 {strides = array<i32>} : memref<8x8x32xf32, #tpu.memory_space<vmem>>, vector<1x8x32xf32>,
    %c2_i32 = arith.constant 2 : i32
    %c7_i32_52 = arith.constant 7 : i32
    %211 = arith.subi %c7_i32_52, %c2_i32 : i32
    %c8_i32_53 = arith.constant 8 : i32
    %212 = arith.muli %c2_i32, %c8_i32_53 : i32
    %213 = tpu.assume_multiple %212, 8 : i32
    %c8_i32_54 = arith.constant 8 : i32
    %214 = arith.muli %211, %c8_i32_54 : i32
    %215 = tpu.assume_multiple %214, 8 : i32
    %216 = arith.index_cast %213 : i32 to index
    %c0_55 = arith.constant 0 : index
    %217 = vector.load %arg9[%216, %c0_55] : memref<64x256xf32, #tpu.memory_space<vmem>>, vector<8x256xf32>
    %218 = arith.index_cast %215 : i32 to index
    %c0_56 = arith.constant 0 : index
    %219 = vector.load %arg9[%218, %c0_56] : memref<64x256xf32, #tpu.memory_space<vmem>>, vector<8x256xf32>
    %220 = arith.index_cast %c2_i32 : i32 to index
    %c0_57 = arith.constant 0 : index
    %c0_58 = arith.constant 0 : index
    %221 = vector.load %arg1[%220, %c0_57, %c0_58] : memref<8x8x1xf32, #tpu.memory_space<vmem>>, vector<1x8x1xf32>
    %222 = vector.shape_cast %221 : vector<1x8x1xf32> to vector<8x1xf32>
    %223 = arith.index_cast %211 : i32 to index
    %c0_59 = arith.constant 0 : index
    %c0_60 = arith.constant 0 : index
    %224 = vector.load %arg1[%223, %c0_59, %c0_60] : memref<8x8x1xf32, #tpu.memory_space<vmem>>, vector<1x8x1xf32>
    %225 = vector.shape_cast %224 : vector<1x8x1xf32> to vector<8x1xf32>
    %226 = tpu.concatenate %165, %198 in 1 : vector<8x32xf32>, vector<8x32xf32> -> vector<8x64xf32>
    %cst_61 = arith.constant dense<0.000000e+00> : vector<8x256xf32>
    %227 = tpu.matmul %226, %7, %cst_61 {dimension_numbers = #tpu.dot_dimension_numbers<[1], [0], [0], [1], [0, 0, 1, 1], [], []>} : vector<8x64xf32>, vector<64x256xf32>, vector<8x256xf32> -> vector<8x256xf32>
    %228 = vector.extract_strided_slice %217 {offsets = [0, 0], sizes = [8, 128], strides = [1, 1]} : vector<8x256xf32> to vector<8x128xf32>
    %229 = vector.extract_strided_slice %227 {offsets = [0, 0], sizes = [8, 128], strides = [1, 1]} : vector<8x256xf32> to vector<8x128xf32>
    %230 = arith.addf %228, %229 : vector<8x128xf32>
    %231 = vector.extract_strided_slice %219 {offsets = [0, 128], sizes = [8, 128], strides = [1, 1]} : vector<8x256xf32> to vector<8x128xf32>
    %232 = vector.extract_strided_slice %227 {offsets = [0, 128], sizes = [8, 128], strides = [1, 1]} : vector<8x256xf32> to vector<8x128xf32>
    %233 = arith.addf %231, %232 : vector<8x128xf32>
    %234 = vector.extract_strided_slice %230 {offsets = [0, 0], sizes = [8, 32], strides = [1, 1]} : vector<8x128xf32> to vector<8x32xf32>
    %235 = arith.negf %234 : vector<8x32xf32>
    %236 = math.exp %235 : vector<8x32xf32>
    %cst_62 = arith.constant 1.000000e+00 : f32
    %237 = vector.broadcast %cst_62 : f32 to vector<8x32xf32>
    %238 = arith.addf %237, %236 : vector<8x32xf32>
    %239 = arith.divf %237, %238 : vector<8x32xf32>
    %240 = vector.extract_strided_slice %230 {offsets = [0, 32], sizes = [8, 32], strides = [1, 1]} : vector<8x128xf32> to vector<8x32xf32>
    %241 = arith.negf %240 : vector<8x32xf32>
    %242 = math.exp %241 : vector<8x32xf32>
    %cst_63 = arith.constant 1.000000e+00 : f32
    %243 = vector.broadcast %cst_63 : f32 to vector<8x32xf32>
    %244 = arith.addf %243, %242 : vector<8x32xf32>
    %245 = arith.divf %243, %244 : vector<8x32xf32>
    %246 = vector.extract_strided_slice %230 {offsets = [0, 64], sizes = [8, 32], strides = [1, 1]} : vector<8x128xf32> to vector<8x32xf32>
    %247 = math.tanh %246 : vector<8x32xf32>
    %248 = vector.extract_strided_slice %230 {offsets = [0, 96], sizes = [8, 32], strides = [1, 1]} : vector<8x128xf32> to vector<8x32xf32>
    %249 = arith.negf %248 : vector<8x32xf32>
    %250 = math.exp %249 : vector<8x32xf32>
    %cst_64 = arith.constant 1.000000e+00 : f32
    %251 = vector.broadcast %cst_64 : f32 to vector<8x32xf32>
    %252 = arith.addf %251, %250 : vector<8x32xf32>
    %253 = arith.divf %251, %252 : vector<8x32xf32>
    %254 = arith.mulf %245, %162 : vector<8x32xf32>
    %255 = arith.mulf %239, %247 : vector<8x32xf32>
    %256 = arith.addf %254, %255 : vector<8x32xf32>
    %257 = math.tanh %256 : vector<8x32xf32>
    %258 = arith.mulf %253, %257 : vector<8x32xf32>
    %cst_65 = arith.constant 5.000000e-01 : f32
    %259 = vector.broadcast %cst_65 : f32 to vector<8x1xf32>
    %260 = arith.cmpf ogt, %222, %259 : vector<8x1xf32>
    %261 = vector.shape_cast %260 : vector<8x1xi1> to vector<8x1xi1>
    %262 = vector.broadcast %261 : vector<8x1xi1> to vector<8x32xi1>
    %263 = arith.select %262, %256, %162 : vector<8x32xi1>, vector<8x32xf32>
    %264 = vector.shape_cast %260 : vector<8x1xi1> to vector<8x1xi1>
    %265 = vector.broadcast %264 : vector<8x1xi1> to vector<8x32xi1>
    %266 = arith.select %265, %258, %165 : vector<8x32xi1>, vector<8x32xf32>
    %267 = vector.extract_strided_slice %233 {offsets = [0, 0], sizes = [8, 32], strides = [1, 1]} : vector<8x128xf32> to vector<8x32xf32>
    %268 = arith.negf %267 : vector<8x32xf32>
    %269 = math.exp %268 : vector<8x32xf32>
    %cst_66 = arith.constant 1.000000e+00 : f32
    %270 = vector.broadcast %cst_66 : f32 to vector<8x32xf32>
    %271 = arith.addf %270, %269 : vector<8x32xf32>
    %272 = arith.divf %270, %271 : vector<8x32xf32>
    %273 = vector.extract_strided_slice %233 {offsets = [0, 32], sizes = [8, 32], strides = [1, 1]} : vector<8x128xf32> to vector<8x32xf32>
    %274 = arith.negf %273 : vector<8x32xf32>
    %275 = math.exp %274 : vector<8x32xf32>
    %cst_67 = arith.constant 1.000000e+00 : f32
    %276 = vector.broadcast %cst_67 : f32 to vector<8x32xf32>
    %277 = arith.addf %276, %275 : vector<8x32xf32>
    %278 = arith.divf %276, %277 : vector<8x32xf32>
    %279 = vector.extract_strided_slice %233 {offsets = [0, 64], sizes = [8, 32], strides = [1, 1]} : vector<8x128xf32> to vector<8x32xf32>
    %280 = math.tanh %279 : vector<8x32xf32>
    %281 = vector.extract_strided_slice %233 {offsets = [0, 96], sizes = [8, 32], strides = [1, 1]} : vector<8x128xf32> to vector<8x32xf32>
    %282 = arith.negf %281 : vector<8x32xf32>
    %283 = math.exp %282 : vector<8x32xf32>
    %cst_68 = arith.constant 1.000000e+00 : f32
    %284 = vector.broadcast %cst_68 : f32 to vector<8x32xf32>
    %285 = arith.addf %284, %283 : vector<8x32xf32>
    %286 = arith.divf %284, %285 : vector<8x32xf32>
    %287 = arith.mulf %278, %195 : vector<8x32xf32>
    %288 = arith.mulf %272, %280 : vector<8x32xf32>
    %289 = arith.addf %287, %288 : vector<8x32xf32>
    %290 = math.tanh %289 : vector<8x32xf32>
    %291 = arith.mulf %286, %290 : vector<8x32xf32>
    %cst_69 = arith.constant 5.000000e-01 : f32
    %292 = vector.broadcast %cst_69 : f32 to vector<8x1xf32>
    %293 = arith.cmpf ogt, %225, %292 : vector<8x1xf32>
    %294 = vector.shape_cast %293 : vector<8x1xi1> to vector<8x1xi1>
    %295 = vector.broadcast %294 : vector<8x1xi1> to vector<8x32xi1>
    %296 = arith.select %295, %289, %195 : vector<8x32xi1>, vector<8x32xf32>
    %297 = vector.shape_cast %293 : vector<8x1xi1> to vector<8x1xi1>
    %298 = vector.broadcast %297 : vector<8x1xi1> to vector<8x32xi1>
    %299 = arith.select %298, %291, %198 : vector<8x32xi1>, vector<8x32xf32>
    %300 = vector.broadcast %222 : vector<8x1xf32> to vector<8x32xf32>
    %301 = arith.mulf %266, %300 : vector<8x32xf32>
    %302 = arith.index_cast %c2_i32 : i32 to index
    %c0_70 = arith.constant 0 : index
    %c0_71 = arith.constant 0 : index
    %303 = vector.load %arg5[%302, %c0_70, %c0_71] : memref<8x8x32xf32, #tpu.memory_space<vmem>>, vector<1x8x32xf32>
    %304 = vector.shape_cast %303 : vector<1x8x32xf32> to vector<8x32xf32>
    %305 = vector.shape_cast %301 : vector<8x32xf32> to vector<1x8x32xf32>
    tpu.vector_store %arg5[%302, %c0_70, %c0_71], %305 {strides = array<i32>} : memref<8x8x32xf32, #tpu.memory_space<vmem>>, vector<1x8x32xf32>,
    %306 = vector.broadcast %225 : vector<8x1xf32> to vector<8x32xf32>
    %307 = arith.mulf %299, %306 : vector<8x32xf32>
    %308 = arith.index_cast %211 : i32 to index
    %c0_72 = arith.constant 0 : index
    %c0_73 = arith.constant 0 : index
    %309 = vector.load %arg6[%308, %c0_72, %c0_73] : memref<8x8x32xf32, #tpu.memory_space<vmem>>, vector<1x8x32xf32>
    %310 = vector.shape_cast %309 : vector<1x8x32xf32> to vector<8x32xf32>
    %311 = vector.shape_cast %307 : vector<8x32xf32> to vector<1x8x32xf32>
    tpu.vector_store %arg6[%308, %c0_72, %c0_73], %311 {strides = array<i32>} : memref<8x8x32xf32, #tpu.memory_space<vmem>>, vector<1x8x32xf32>,
    %c3_i32 = arith.constant 3 : i32
    %c7_i32_74 = arith.constant 7 : i32
    %312 = arith.subi %c7_i32_74, %c3_i32 : i32
    %c8_i32_75 = arith.constant 8 : i32
    %313 = arith.muli %c3_i32, %c8_i32_75 : i32
    %314 = tpu.assume_multiple %313, 8 : i32
    %c8_i32_76 = arith.constant 8 : i32
    %315 = arith.muli %312, %c8_i32_76 : i32
    %316 = tpu.assume_multiple %315, 8 : i32
    %317 = arith.index_cast %314 : i32 to index
    %c0_77 = arith.constant 0 : index
    %318 = vector.load %arg9[%317, %c0_77] : memref<64x256xf32, #tpu.memory_space<vmem>>, vector<8x256xf32>
    %319 = arith.index_cast %316 : i32 to index
    %c0_78 = arith.constant 0 : index
    %320 = vector.load %arg9[%319, %c0_78] : memref<64x256xf32, #tpu.memory_space<vmem>>, vector<8x256xf32>
    %321 = arith.index_cast %c3_i32 : i32 to index
    %c0_79 = arith.constant 0 : index
    %c0_80 = arith.constant 0 : index
    %322 = vector.load %arg1[%321, %c0_79, %c0_80] : memref<8x8x1xf32, #tpu.memory_space<vmem>>, vector<1x8x1xf32>
    %323 = vector.shape_cast %322 : vector<1x8x1xf32> to vector<8x1xf32>
    %324 = arith.index_cast %312 : i32 to index
    %c0_81 = arith.constant 0 : index
    %c0_82 = arith.constant 0 : index
    %325 = vector.load %arg1[%324, %c0_81, %c0_82] : memref<8x8x1xf32, #tpu.memory_space<vmem>>, vector<1x8x1xf32>
    %326 = vector.shape_cast %325 : vector<1x8x1xf32> to vector<8x1xf32>
    %327 = tpu.concatenate %266, %299 in 1 : vector<8x32xf32>, vector<8x32xf32> -> vector<8x64xf32>
    %cst_83 = arith.constant dense<0.000000e+00> : vector<8x256xf32>
    %328 = tpu.matmul %327, %7, %cst_83 {dimension_numbers = #tpu.dot_dimension_numbers<[1], [0], [0], [1], [0, 0, 1, 1], [], []>} : vector<8x64xf32>, vector<64x256xf32>, vector<8x256xf32> -> vector<8x256xf32>
    %329 = vector.extract_strided_slice %318 {offsets = [0, 0], sizes = [8, 128], strides = [1, 1]} : vector<8x256xf32> to vector<8x128xf32>
    %330 = vector.extract_strided_slice %328 {offsets = [0, 0], sizes = [8, 128], strides = [1, 1]} : vector<8x256xf32> to vector<8x128xf32>
    %331 = arith.addf %329, %330 : vector<8x128xf32>
    %332 = vector.extract_strided_slice %320 {offsets = [0, 128], sizes = [8, 128], strides = [1, 1]} : vector<8x256xf32> to vector<8x128xf32>
    %333 = vector.extract_strided_slice %328 {offsets = [0, 128], sizes = [8, 128], strides = [1, 1]} : vector<8x256xf32> to vector<8x128xf32>
    %334 = arith.addf %332, %333 : vector<8x128xf32>
    %335 = vector.extract_strided_slice %331 {offsets = [0, 0], sizes = [8, 32], strides = [1, 1]} : vector<8x128xf32> to vector<8x32xf32>
    %336 = arith.negf %335 : vector<8x32xf32>
    %337 = math.exp %336 : vector<8x32xf32>
    %cst_84 = arith.constant 1.000000e+00 : f32
    %338 = vector.broadcast %cst_84 : f32 to vector<8x32xf32>
    %339 = arith.addf %338, %337 : vector<8x32xf32>
    %340 = arith.divf %338, %339 : vector<8x32xf32>
    %341 = vector.extract_strided_slice %331 {offsets = [0, 32], sizes = [8, 32], strides = [1, 1]} : vector<8x128xf32> to vector<8x32xf32>
    %342 = arith.negf %341 : vector<8x32xf32>
    %343 = math.exp %342 : vector<8x32xf32>
    %cst_85 = arith.constant 1.000000e+00 : f32
    %344 = vector.broadcast %cst_85 : f32 to vector<8x32xf32>
    %345 = arith.addf %344, %343 : vector<8x32xf32>
    %346 = arith.divf %344, %345 : vector<8x32xf32>
    %347 = vector.extract_strided_slice %331 {offsets = [0, 64], sizes = [8, 32], strides = [1, 1]} : vector<8x128xf32> to vector<8x32xf32>
    %348 = math.tanh %347 : vector<8x32xf32>
    %349 = vector.extract_strided_slice %331 {offsets = [0, 96], sizes = [8, 32], strides = [1, 1]} : vector<8x128xf32> to vector<8x32xf32>
    %350 = arith.negf %349 : vector<8x32xf32>
    %351 = math.exp %350 : vector<8x32xf32>
    %cst_86 = arith.constant 1.000000e+00 : f32
    %352 = vector.broadcast %cst_86 : f32 to vector<8x32xf32>
    %353 = arith.addf %352, %351 : vector<8x32xf32>
    %354 = arith.divf %352, %353 : vector<8x32xf32>
    %355 = arith.mulf %346, %263 : vector<8x32xf32>
    %356 = arith.mulf %340, %348 : vector<8x32xf32>
    %357 = arith.addf %355, %356 : vector<8x32xf32>
    %358 = math.tanh %357 : vector<8x32xf32>
    %359 = arith.mulf %354, %358 : vector<8x32xf32>
    %cst_87 = arith.constant 5.000000e-01 : f32
    %360 = vector.broadcast %cst_87 : f32 to vector<8x1xf32>
    %361 = arith.cmpf ogt, %323, %360 : vector<8x1xf32>
    %362 = vector.shape_cast %361 : vector<8x1xi1> to vector<8x1xi1>
    %363 = vector.broadcast %362 : vector<8x1xi1> to vector<8x32xi1>
    %364 = arith.select %363, %357, %263 : vector<8x32xi1>, vector<8x32xf32>
    %365 = vector.shape_cast %361 : vector<8x1xi1> to vector<8x1xi1>
    %366 = vector.broadcast %365 : vector<8x1xi1> to vector<8x32xi1>
    %367 = arith.select %366, %359, %266 : vector<8x32xi1>, vector<8x32xf32>
    %368 = vector.extract_strided_slice %334 {offsets = [0, 0], sizes = [8, 32], strides = [1, 1]} : vector<8x128xf32> to vector<8x32xf32>
    %369 = arith.negf %368 : vector<8x32xf32>
    %370 = math.exp %369 : vector<8x32xf32>
    %cst_88 = arith.constant 1.000000e+00 : f32
    %371 = vector.broadcast %cst_88 : f32 to vector<8x32xf32>
    %372 = arith.addf %371, %370 : vector<8x32xf32>
    %373 = arith.divf %371, %372 : vector<8x32xf32>
    %374 = vector.extract_strided_slice %334 {offsets = [0, 32], sizes = [8, 32], strides = [1, 1]} : vector<8x128xf32> to vector<8x32xf32>
    %375 = arith.negf %374 : vector<8x32xf32>
    %376 = math.exp %375 : vector<8x32xf32>
    %cst_89 = arith.constant 1.000000e+00 : f32
    %377 = vector.broadcast %cst_89 : f32 to vector<8x32xf32>
    %378 = arith.addf %377, %376 : vector<8x32xf32>
    %379 = arith.divf %377, %378 : vector<8x32xf32>
    %380 = vector.extract_strided_slice %334 {offsets = [0, 64], sizes = [8, 32], strides = [1, 1]} : vector<8x128xf32> to vector<8x32xf32>
    %381 = math.tanh %380 : vector<8x32xf32>
    %382 = vector.extract_strided_slice %334 {offsets = [0, 96], sizes = [8, 32], strides = [1, 1]} : vector<8x128xf32> to vector<8x32xf32>
    %383 = arith.negf %382 : vector<8x32xf32>
    %384 = math.exp %383 : vector<8x32xf32>
    %cst_90 = arith.constant 1.000000e+00 : f32
    %385 = vector.broadcast %cst_90 : f32 to vector<8x32xf32>
    %386 = arith.addf %385, %384 : vector<8x32xf32>
    %387 = arith.divf %385, %386 : vector<8x32xf32>
    %388 = arith.mulf %379, %296 : vector<8x32xf32>
    %389 = arith.mulf %373, %381 : vector<8x32xf32>
    %390 = arith.addf %388, %389 : vector<8x32xf32>
    %391 = math.tanh %390 : vector<8x32xf32>
    %392 = arith.mulf %387, %391 : vector<8x32xf32>
    %cst_91 = arith.constant 5.000000e-01 : f32
    %393 = vector.broadcast %cst_91 : f32 to vector<8x1xf32>
    %394 = arith.cmpf ogt, %326, %393 : vector<8x1xf32>
    %395 = vector.shape_cast %394 : vector<8x1xi1> to vector<8x1xi1>
    %396 = vector.broadcast %395 : vector<8x1xi1> to vector<8x32xi1>
    %397 = arith.select %396, %390, %296 : vector<8x32xi1>, vector<8x32xf32>
    %398 = vector.shape_cast %394 : vector<8x1xi1> to vector<8x1xi1>
    %399 = vector.broadcast %398 : vector<8x1xi1> to vector<8x32xi1>
    %400 = arith.select %399, %392, %299 : vector<8x32xi1>, vector<8x32xf32>
    %401 = vector.broadcast %323 : vector<8x1xf32> to vector<8x32xf32>
    %402 = arith.mulf %367, %401 : vector<8x32xf32>
    %403 = arith.index_cast %c3_i32 : i32 to index
    %c0_92 = arith.constant 0 : index
    %c0_93 = arith.constant 0 : index
    %404 = vector.load %arg5[%403, %c0_92, %c0_93] : memref<8x8x32xf32, #tpu.memory_space<vmem>>, vector<1x8x32xf32>
    %405 = vector.shape_cast %404 : vector<1x8x32xf32> to vector<8x32xf32>
    %406 = vector.shape_cast %402 : vector<8x32xf32> to vector<1x8x32xf32>
    tpu.vector_store %arg5[%403, %c0_92, %c0_93], %406 {strides = array<i32>} : memref<8x8x32xf32, #tpu.memory_space<vmem>>, vector<1x8x32xf32>,
    %407 = vector.broadcast %326 : vector<8x1xf32> to vector<8x32xf32>
    %408 = arith.mulf %400, %407 : vector<8x32xf32>
    %409 = arith.index_cast %312 : i32 to index
    %c0_94 = arith.constant 0 : index
    %c0_95 = arith.constant 0 : index
    %410 = vector.load %arg6[%409, %c0_94, %c0_95] : memref<8x8x32xf32, #tpu.memory_space<vmem>>, vector<1x8x32xf32>
    %411 = vector.shape_cast %410 : vector<1x8x32xf32> to vector<8x32xf32>
    %412 = vector.shape_cast %408 : vector<8x32xf32> to vector<1x8x32xf32>
    tpu.vector_store %arg6[%409, %c0_94, %c0_95], %412 {strides = array<i32>} : memref<8x8x32xf32, #tpu.memory_space<vmem>>, vector<1x8x32xf32>,
    %c4_i32 = arith.constant 4 : i32
    %c7_i32_96 = arith.constant 7 : i32
    %413 = arith.subi %c7_i32_96, %c4_i32 : i32
    %c8_i32_97 = arith.constant 8 : i32
    %414 = arith.muli %c4_i32, %c8_i32_97 : i32
    %415 = tpu.assume_multiple %414, 8 : i32
    %c8_i32_98 = arith.constant 8 : i32
    %416 = arith.muli %413, %c8_i32_98 : i32
    %417 = tpu.assume_multiple %416, 8 : i32
    %418 = arith.index_cast %415 : i32 to index
    %c0_99 = arith.constant 0 : index
    %419 = vector.load %arg9[%418, %c0_99] : memref<64x256xf32, #tpu.memory_space<vmem>>, vector<8x256xf32>
    %420 = arith.index_cast %417 : i32 to index
    %c0_100 = arith.constant 0 : index
    %421 = vector.load %arg9[%420, %c0_100] : memref<64x256xf32, #tpu.memory_space<vmem>>, vector<8x256xf32>
    %422 = arith.index_cast %c4_i32 : i32 to index
    %c0_101 = arith.constant 0 : index
    %c0_102 = arith.constant 0 : index
    %423 = vector.load %arg1[%422, %c0_101, %c0_102] : memref<8x8x1xf32, #tpu.memory_space<vmem>>, vector<1x8x1xf32>
    %424 = vector.shape_cast %423 : vector<1x8x1xf32> to vector<8x1xf32>
    %425 = arith.index_cast %413 : i32 to index
    %c0_103 = arith.constant 0 : index
    %c0_104 = arith.constant 0 : index
    %426 = vector.load %arg1[%425, %c0_103, %c0_104] : memref<8x8x1xf32, #tpu.memory_space<vmem>>, vector<1x8x1xf32>
    %427 = vector.shape_cast %426 : vector<1x8x1xf32> to vector<8x1xf32>
    %428 = tpu.concatenate %367, %400 in 1 : vector<8x32xf32>, vector<8x32xf32> -> vector<8x64xf32>
    %cst_105 = arith.constant dense<0.000000e+00> : vector<8x256xf32>
    %429 = tpu.matmul %428, %7, %cst_105 {dimension_numbers = #tpu.dot_dimension_numbers<[1], [0], [0], [1], [0, 0, 1, 1], [], []>} : vector<8x64xf32>, vector<64x256xf32>, vector<8x256xf32> -> vector<8x256xf32>
    %430 = vector.extract_strided_slice %419 {offsets = [0, 0], sizes = [8, 128], strides = [1, 1]} : vector<8x256xf32> to vector<8x128xf32>
    %431 = vector.extract_strided_slice %429 {offsets = [0, 0], sizes = [8, 128], strides = [1, 1]} : vector<8x256xf32> to vector<8x128xf32>
    %432 = arith.addf %430, %431 : vector<8x128xf32>
    %433 = vector.extract_strided_slice %421 {offsets = [0, 128], sizes = [8, 128], strides = [1, 1]} : vector<8x256xf32> to vector<8x128xf32>
    %434 = vector.extract_strided_slice %429 {offsets = [0, 128], sizes = [8, 128], strides = [1, 1]} : vector<8x256xf32> to vector<8x128xf32>
    %435 = arith.addf %433, %434 : vector<8x128xf32>
    %436 = vector.extract_strided_slice %432 {offsets = [0, 0], sizes = [8, 32], strides = [1, 1]} : vector<8x128xf32> to vector<8x32xf32>
    %437 = arith.negf %436 : vector<8x32xf32>
    %438 = math.exp %437 : vector<8x32xf32>
    %cst_106 = arith.constant 1.000000e+00 : f32
    %439 = vector.broadcast %cst_106 : f32 to vector<8x32xf32>
    %440 = arith.addf %439, %438 : vector<8x32xf32>
    %441 = arith.divf %439, %440 : vector<8x32xf32>
    %442 = vector.extract_strided_slice %432 {offsets = [0, 32], sizes = [8, 32], strides = [1, 1]} : vector<8x128xf32> to vector<8x32xf32>
    %443 = arith.negf %442 : vector<8x32xf32>
    %444 = math.exp %443 : vector<8x32xf32>
    %cst_107 = arith.constant 1.000000e+00 : f32
    %445 = vector.broadcast %cst_107 : f32 to vector<8x32xf32>
    %446 = arith.addf %445, %444 : vector<8x32xf32>
    %447 = arith.divf %445, %446 : vector<8x32xf32>
    %448 = vector.extract_strided_slice %432 {offsets = [0, 64], sizes = [8, 32], strides = [1, 1]} : vector<8x128xf32> to vector<8x32xf32>
    %449 = math.tanh %448 : vector<8x32xf32>
    %450 = vector.extract_strided_slice %432 {offsets = [0, 96], sizes = [8, 32], strides = [1, 1]} : vector<8x128xf32> to vector<8x32xf32>
    %451 = arith.negf %450 : vector<8x32xf32>
    %452 = math.exp %451 : vector<8x32xf32>
    %cst_108 = arith.constant 1.000000e+00 : f32
    %453 = vector.broadcast %cst_108 : f32 to vector<8x32xf32>
    %454 = arith.addf %453, %452 : vector<8x32xf32>
    %455 = arith.divf %453, %454 : vector<8x32xf32>
    %456 = arith.mulf %447, %364 : vector<8x32xf32>
    %457 = arith.mulf %441, %449 : vector<8x32xf32>
    %458 = arith.addf %456, %457 : vector<8x32xf32>
    %459 = math.tanh %458 : vector<8x32xf32>
    %460 = arith.mulf %455, %459 : vector<8x32xf32>
    %cst_109 = arith.constant 5.000000e-01 : f32
    %461 = vector.broadcast %cst_109 : f32 to vector<8x1xf32>
    %462 = arith.cmpf ogt, %424, %461 : vector<8x1xf32>
    %463 = vector.shape_cast %462 : vector<8x1xi1> to vector<8x1xi1>
    %464 = vector.broadcast %463 : vector<8x1xi1> to vector<8x32xi1>
    %465 = arith.select %464, %458, %364 : vector<8x32xi1>, vector<8x32xf32>
    %466 = vector.shape_cast %462 : vector<8x1xi1> to vector<8x1xi1>
    %467 = vector.broadcast %466 : vector<8x1xi1> to vector<8x32xi1>
    %468 = arith.select %467, %460, %367 : vector<8x32xi1>, vector<8x32xf32>
    %469 = vector.extract_strided_slice %435 {offsets = [0, 0], sizes = [8, 32], strides = [1, 1]} : vector<8x128xf32> to vector<8x32xf32>
    %470 = arith.negf %469 : vector<8x32xf32>
    %471 = math.exp %470 : vector<8x32xf32>
    %cst_110 = arith.constant 1.000000e+00 : f32
    %472 = vector.broadcast %cst_110 : f32 to vector<8x32xf32>
    %473 = arith.addf %472, %471 : vector<8x32xf32>
    %474 = arith.divf %472, %473 : vector<8x32xf32>
    %475 = vector.extract_strided_slice %435 {offsets = [0, 32], sizes = [8, 32], strides = [1, 1]} : vector<8x128xf32> to vector<8x32xf32>
    %476 = arith.negf %475 : vector<8x32xf32>
    %477 = math.exp %476 : vector<8x32xf32>
    %cst_111 = arith.constant 1.000000e+00 : f32
    %478 = vector.broadcast %cst_111 : f32 to vector<8x32xf32>
    %479 = arith.addf %478, %477 : vector<8x32xf32>
    %480 = arith.divf %478, %479 : vector<8x32xf32>
    %481 = vector.extract_strided_slice %435 {offsets = [0, 64], sizes = [8, 32], strides = [1, 1]} : vector<8x128xf32> to vector<8x32xf32>
    %482 = math.tanh %481 : vector<8x32xf32>
    %483 = vector.extract_strided_slice %435 {offsets = [0, 96], sizes = [8, 32], strides = [1, 1]} : vector<8x128xf32> to vector<8x32xf32>
    %484 = arith.negf %483 : vector<8x32xf32>
    %485 = math.exp %484 : vector<8x32xf32>
    %cst_112 = arith.constant 1.000000e+00 : f32
    %486 = vector.broadcast %cst_112 : f32 to vector<8x32xf32>
    %487 = arith.addf %486, %485 : vector<8x32xf32>
    %488 = arith.divf %486, %487 : vector<8x32xf32>
    %489 = arith.mulf %480, %397 : vector<8x32xf32>
    %490 = arith.mulf %474, %482 : vector<8x32xf32>
    %491 = arith.addf %489, %490 : vector<8x32xf32>
    %492 = math.tanh %491 : vector<8x32xf32>
    %493 = arith.mulf %488, %492 : vector<8x32xf32>
    %cst_113 = arith.constant 5.000000e-01 : f32
    %494 = vector.broadcast %cst_113 : f32 to vector<8x1xf32>
    %495 = arith.cmpf ogt, %427, %494 : vector<8x1xf32>
    %496 = vector.shape_cast %495 : vector<8x1xi1> to vector<8x1xi1>
    %497 = vector.broadcast %496 : vector<8x1xi1> to vector<8x32xi1>
    %498 = arith.select %497, %491, %397 : vector<8x32xi1>, vector<8x32xf32>
    %499 = vector.shape_cast %495 : vector<8x1xi1> to vector<8x1xi1>
    %500 = vector.broadcast %499 : vector<8x1xi1> to vector<8x32xi1>
    %501 = arith.select %500, %493, %400 : vector<8x32xi1>, vector<8x32xf32>
    %502 = vector.broadcast %424 : vector<8x1xf32> to vector<8x32xf32>
    %503 = arith.mulf %468, %502 : vector<8x32xf32>
    %504 = arith.index_cast %c4_i32 : i32 to index
    %c0_114 = arith.constant 0 : index
    %c0_115 = arith.constant 0 : index
    %505 = vector.load %arg5[%504, %c0_114, %c0_115] : memref<8x8x32xf32, #tpu.memory_space<vmem>>, vector<1x8x32xf32>
    %506 = vector.shape_cast %505 : vector<1x8x32xf32> to vector<8x32xf32>
    %507 = vector.shape_cast %503 : vector<8x32xf32> to vector<1x8x32xf32>
    tpu.vector_store %arg5[%504, %c0_114, %c0_115], %507 {strides = array<i32>} : memref<8x8x32xf32, #tpu.memory_space<vmem>>, vector<1x8x32xf32>,
    %508 = vector.broadcast %427 : vector<8x1xf32> to vector<8x32xf32>
    %509 = arith.mulf %501, %508 : vector<8x32xf32>
    %510 = arith.index_cast %413 : i32 to index
    %c0_116 = arith.constant 0 : index
    %c0_117 = arith.constant 0 : index
    %511 = vector.load %arg6[%510, %c0_116, %c0_117] : memref<8x8x32xf32, #tpu.memory_space<vmem>>, vector<1x8x32xf32>
    %512 = vector.shape_cast %511 : vector<1x8x32xf32> to vector<8x32xf32>
    %513 = vector.shape_cast %509 : vector<8x32xf32> to vector<1x8x32xf32>
    tpu.vector_store %arg6[%510, %c0_116, %c0_117], %513 {strides = array<i32>} : memref<8x8x32xf32, #tpu.memory_space<vmem>>, vector<1x8x32xf32>,
    %c5_i32 = arith.constant 5 : i32
    %c7_i32_118 = arith.constant 7 : i32
    %514 = arith.subi %c7_i32_118, %c5_i32 : i32
    %c8_i32_119 = arith.constant 8 : i32
    %515 = arith.muli %c5_i32, %c8_i32_119 : i32
    %516 = tpu.assume_multiple %515, 8 : i32
    %c8_i32_120 = arith.constant 8 : i32
    %517 = arith.muli %514, %c8_i32_120 : i32
    %518 = tpu.assume_multiple %517, 8 : i32
    %519 = arith.index_cast %516 : i32 to index
    %c0_121 = arith.constant 0 : index
    %520 = vector.load %arg9[%519, %c0_121] : memref<64x256xf32, #tpu.memory_space<vmem>>, vector<8x256xf32>
    %521 = arith.index_cast %518 : i32 to index
    %c0_122 = arith.constant 0 : index
    %522 = vector.load %arg9[%521, %c0_122] : memref<64x256xf32, #tpu.memory_space<vmem>>, vector<8x256xf32>
    %523 = arith.index_cast %c5_i32 : i32 to index
    %c0_123 = arith.constant 0 : index
    %c0_124 = arith.constant 0 : index
    %524 = vector.load %arg1[%523, %c0_123, %c0_124] : memref<8x8x1xf32, #tpu.memory_space<vmem>>, vector<1x8x1xf32>
    %525 = vector.shape_cast %524 : vector<1x8x1xf32> to vector<8x1xf32>
    %526 = arith.index_cast %514 : i32 to index
    %c0_125 = arith.constant 0 : index
    %c0_126 = arith.constant 0 : index
    %527 = vector.load %arg1[%526, %c0_125, %c0_126] : memref<8x8x1xf32, #tpu.memory_space<vmem>>, vector<1x8x1xf32>
    %528 = vector.shape_cast %527 : vector<1x8x1xf32> to vector<8x1xf32>
    %529 = tpu.concatenate %468, %501 in 1 : vector<8x32xf32>, vector<8x32xf32> -> vector<8x64xf32>
    %cst_127 = arith.constant dense<0.000000e+00> : vector<8x256xf32>
    %530 = tpu.matmul %529, %7, %cst_127 {dimension_numbers = #tpu.dot_dimension_numbers<[1], [0], [0], [1], [0, 0, 1, 1], [], []>} : vector<8x64xf32>, vector<64x256xf32>, vector<8x256xf32> -> vector<8x256xf32>
    %531 = vector.extract_strided_slice %520 {offsets = [0, 0], sizes = [8, 128], strides = [1, 1]} : vector<8x256xf32> to vector<8x128xf32>
    %532 = vector.extract_strided_slice %530 {offsets = [0, 0], sizes = [8, 128], strides = [1, 1]} : vector<8x256xf32> to vector<8x128xf32>
    %533 = arith.addf %531, %532 : vector<8x128xf32>
    %534 = vector.extract_strided_slice %522 {offsets = [0, 128], sizes = [8, 128], strides = [1, 1]} : vector<8x256xf32> to vector<8x128xf32>
    %535 = vector.extract_strided_slice %530 {offsets = [0, 128], sizes = [8, 128], strides = [1, 1]} : vector<8x256xf32> to vector<8x128xf32>
    %536 = arith.addf %534, %535 : vector<8x128xf32>
    %537 = vector.extract_strided_slice %533 {offsets = [0, 0], sizes = [8, 32], strides = [1, 1]} : vector<8x128xf32> to vector<8x32xf32>
    %538 = arith.negf %537 : vector<8x32xf32>
    %539 = math.exp %538 : vector<8x32xf32>
    %cst_128 = arith.constant 1.000000e+00 : f32
    %540 = vector.broadcast %cst_128 : f32 to vector<8x32xf32>
    %541 = arith.addf %540, %539 : vector<8x32xf32>
    %542 = arith.divf %540, %541 : vector<8x32xf32>
    %543 = vector.extract_strided_slice %533 {offsets = [0, 32], sizes = [8, 32], strides = [1, 1]} : vector<8x128xf32> to vector<8x32xf32>
    %544 = arith.negf %543 : vector<8x32xf32>
    %545 = math.exp %544 : vector<8x32xf32>
    %cst_129 = arith.constant 1.000000e+00 : f32
    %546 = vector.broadcast %cst_129 : f32 to vector<8x32xf32>
    %547 = arith.addf %546, %545 : vector<8x32xf32>
    %548 = arith.divf %546, %547 : vector<8x32xf32>
    %549 = vector.extract_strided_slice %533 {offsets = [0, 64], sizes = [8, 32], strides = [1, 1]} : vector<8x128xf32> to vector<8x32xf32>
    %550 = math.tanh %549 : vector<8x32xf32>
    %551 = vector.extract_strided_slice %533 {offsets = [0, 96], sizes = [8, 32], strides = [1, 1]} : vector<8x128xf32> to vector<8x32xf32>
    %552 = arith.negf %551 : vector<8x32xf32>
    %553 = math.exp %552 : vector<8x32xf32>
    %cst_130 = arith.constant 1.000000e+00 : f32
    %554 = vector.broadcast %cst_130 : f32 to vector<8x32xf32>
    %555 = arith.addf %554, %553 : vector<8x32xf32>
    %556 = arith.divf %554, %555 : vector<8x32xf32>
    %557 = arith.mulf %548, %465 : vector<8x32xf32>
    %558 = arith.mulf %542, %550 : vector<8x32xf32>
    %559 = arith.addf %557, %558 : vector<8x32xf32>
    %560 = math.tanh %559 : vector<8x32xf32>
    %561 = arith.mulf %556, %560 : vector<8x32xf32>
    %cst_131 = arith.constant 5.000000e-01 : f32
    %562 = vector.broadcast %cst_131 : f32 to vector<8x1xf32>
    %563 = arith.cmpf ogt, %525, %562 : vector<8x1xf32>
    %564 = vector.shape_cast %563 : vector<8x1xi1> to vector<8x1xi1>
    %565 = vector.broadcast %564 : vector<8x1xi1> to vector<8x32xi1>
    %566 = arith.select %565, %559, %465 : vector<8x32xi1>, vector<8x32xf32>
    %567 = vector.shape_cast %563 : vector<8x1xi1> to vector<8x1xi1>
    %568 = vector.broadcast %567 : vector<8x1xi1> to vector<8x32xi1>
    %569 = arith.select %568, %561, %468 : vector<8x32xi1>, vector<8x32xf32>
    %570 = vector.extract_strided_slice %536 {offsets = [0, 0], sizes = [8, 32], strides = [1, 1]} : vector<8x128xf32> to vector<8x32xf32>
    %571 = arith.negf %570 : vector<8x32xf32>
    %572 = math.exp %571 : vector<8x32xf32>
    %cst_132 = arith.constant 1.000000e+00 : f32
    %573 = vector.broadcast %cst_132 : f32 to vector<8x32xf32>
    %574 = arith.addf %573, %572 : vector<8x32xf32>
    %575 = arith.divf %573, %574 : vector<8x32xf32>
    %576 = vector.extract_strided_slice %536 {offsets = [0, 32], sizes = [8, 32], strides = [1, 1]} : vector<8x128xf32> to vector<8x32xf32>
    %577 = arith.negf %576 : vector<8x32xf32>
    %578 = math.exp %577 : vector<8x32xf32>
    %cst_133 = arith.constant 1.000000e+00 : f32
    %579 = vector.broadcast %cst_133 : f32 to vector<8x32xf32>
    %580 = arith.addf %579, %578 : vector<8x32xf32>
    %581 = arith.divf %579, %580 : vector<8x32xf32>
    %582 = vector.extract_strided_slice %536 {offsets = [0, 64], sizes = [8, 32], strides = [1, 1]} : vector<8x128xf32> to vector<8x32xf32>
    %583 = math.tanh %582 : vector<8x32xf32>
    %584 = vector.extract_strided_slice %536 {offsets = [0, 96], sizes = [8, 32], strides = [1, 1]} : vector<8x128xf32> to vector<8x32xf32>
    %585 = arith.negf %584 : vector<8x32xf32>
    %586 = math.exp %585 : vector<8x32xf32>
    %cst_134 = arith.constant 1.000000e+00 : f32
    %587 = vector.broadcast %cst_134 : f32 to vector<8x32xf32>
    %588 = arith.addf %587, %586 : vector<8x32xf32>
    %589 = arith.divf %587, %588 : vector<8x32xf32>
    %590 = arith.mulf %581, %498 : vector<8x32xf32>
    %591 = arith.mulf %575, %583 : vector<8x32xf32>
    %592 = arith.addf %590, %591 : vector<8x32xf32>
    %593 = math.tanh %592 : vector<8x32xf32>
    %594 = arith.mulf %589, %593 : vector<8x32xf32>
    %cst_135 = arith.constant 5.000000e-01 : f32
    %595 = vector.broadcast %cst_135 : f32 to vector<8x1xf32>
    %596 = arith.cmpf ogt, %528, %595 : vector<8x1xf32>
    %597 = vector.shape_cast %596 : vector<8x1xi1> to vector<8x1xi1>
    %598 = vector.broadcast %597 : vector<8x1xi1> to vector<8x32xi1>
    %599 = arith.select %598, %592, %498 : vector<8x32xi1>, vector<8x32xf32>
    %600 = vector.shape_cast %596 : vector<8x1xi1> to vector<8x1xi1>
    %601 = vector.broadcast %600 : vector<8x1xi1> to vector<8x32xi1>
    %602 = arith.select %601, %594, %501 : vector<8x32xi1>, vector<8x32xf32>
    %603 = vector.broadcast %525 : vector<8x1xf32> to vector<8x32xf32>
    %604 = arith.mulf %569, %603 : vector<8x32xf32>
    %605 = arith.index_cast %c5_i32 : i32 to index
    %c0_136 = arith.constant 0 : index
    %c0_137 = arith.constant 0 : index
    %606 = vector.load %arg5[%605, %c0_136, %c0_137] : memref<8x8x32xf32, #tpu.memory_space<vmem>>, vector<1x8x32xf32>
    %607 = vector.shape_cast %606 : vector<1x8x32xf32> to vector<8x32xf32>
    %608 = vector.shape_cast %604 : vector<8x32xf32> to vector<1x8x32xf32>
    tpu.vector_store %arg5[%605, %c0_136, %c0_137], %608 {strides = array<i32>} : memref<8x8x32xf32, #tpu.memory_space<vmem>>, vector<1x8x32xf32>,
    %609 = vector.broadcast %528 : vector<8x1xf32> to vector<8x32xf32>
    %610 = arith.mulf %602, %609 : vector<8x32xf32>
    %611 = arith.index_cast %514 : i32 to index
    %c0_138 = arith.constant 0 : index
    %c0_139 = arith.constant 0 : index
    %612 = vector.load %arg6[%611, %c0_138, %c0_139] : memref<8x8x32xf32, #tpu.memory_space<vmem>>, vector<1x8x32xf32>
    %613 = vector.shape_cast %612 : vector<1x8x32xf32> to vector<8x32xf32>
    %614 = vector.shape_cast %610 : vector<8x32xf32> to vector<1x8x32xf32>
    tpu.vector_store %arg6[%611, %c0_138, %c0_139], %614 {strides = array<i32>} : memref<8x8x32xf32, #tpu.memory_space<vmem>>, vector<1x8x32xf32>,
    %c6_i32 = arith.constant 6 : i32
    %c7_i32_140 = arith.constant 7 : i32
    %615 = arith.subi %c7_i32_140, %c6_i32 : i32
    %c8_i32_141 = arith.constant 8 : i32
    %616 = arith.muli %c6_i32, %c8_i32_141 : i32
    %617 = tpu.assume_multiple %616, 8 : i32
    %c8_i32_142 = arith.constant 8 : i32
    %618 = arith.muli %615, %c8_i32_142 : i32
    %619 = tpu.assume_multiple %618, 8 : i32
    %620 = arith.index_cast %617 : i32 to index
    %c0_143 = arith.constant 0 : index
    %621 = vector.load %arg9[%620, %c0_143] : memref<64x256xf32, #tpu.memory_space<vmem>>, vector<8x256xf32>
    %622 = arith.index_cast %619 : i32 to index
    %c0_144 = arith.constant 0 : index
    %623 = vector.load %arg9[%622, %c0_144] : memref<64x256xf32, #tpu.memory_space<vmem>>, vector<8x256xf32>
    %624 = arith.index_cast %c6_i32 : i32 to index
    %c0_145 = arith.constant 0 : index
    %c0_146 = arith.constant 0 : index
    %625 = vector.load %arg1[%624, %c0_145, %c0_146] : memref<8x8x1xf32, #tpu.memory_space<vmem>>, vector<1x8x1xf32>
    %626 = vector.shape_cast %625 : vector<1x8x1xf32> to vector<8x1xf32>
    %627 = arith.index_cast %615 : i32 to index
    %c0_147 = arith.constant 0 : index
    %c0_148 = arith.constant 0 : index
    %628 = vector.load %arg1[%627, %c0_147, %c0_148] : memref<8x8x1xf32, #tpu.memory_space<vmem>>, vector<1x8x1xf32>
    %629 = vector.shape_cast %628 : vector<1x8x1xf32> to vector<8x1xf32>
    %630 = tpu.concatenate %569, %602 in 1 : vector<8x32xf32>, vector<8x32xf32> -> vector<8x64xf32>
    %cst_149 = arith.constant dense<0.000000e+00> : vector<8x256xf32>
    %631 = tpu.matmul %630, %7, %cst_149 {dimension_numbers = #tpu.dot_dimension_numbers<[1], [0], [0], [1], [0, 0, 1, 1], [], []>} : vector<8x64xf32>, vector<64x256xf32>, vector<8x256xf32> -> vector<8x256xf32>
    %632 = vector.extract_strided_slice %621 {offsets = [0, 0], sizes = [8, 128], strides = [1, 1]} : vector<8x256xf32> to vector<8x128xf32>
    %633 = vector.extract_strided_slice %631 {offsets = [0, 0], sizes = [8, 128], strides = [1, 1]} : vector<8x256xf32> to vector<8x128xf32>
    %634 = arith.addf %632, %633 : vector<8x128xf32>
    %635 = vector.extract_strided_slice %623 {offsets = [0, 128], sizes = [8, 128], strides = [1, 1]} : vector<8x256xf32> to vector<8x128xf32>
    %636 = vector.extract_strided_slice %631 {offsets = [0, 128], sizes = [8, 128], strides = [1, 1]} : vector<8x256xf32> to vector<8x128xf32>
    %637 = arith.addf %635, %636 : vector<8x128xf32>
    %638 = vector.extract_strided_slice %634 {offsets = [0, 0], sizes = [8, 32], strides = [1, 1]} : vector<8x128xf32> to vector<8x32xf32>
    %639 = arith.negf %638 : vector<8x32xf32>
    %640 = math.exp %639 : vector<8x32xf32>
    %cst_150 = arith.constant 1.000000e+00 : f32
    %641 = vector.broadcast %cst_150 : f32 to vector<8x32xf32>
    %642 = arith.addf %641, %640 : vector<8x32xf32>
    %643 = arith.divf %641, %642 : vector<8x32xf32>
    %644 = vector.extract_strided_slice %634 {offsets = [0, 32], sizes = [8, 32], strides = [1, 1]} : vector<8x128xf32> to vector<8x32xf32>
    %645 = arith.negf %644 : vector<8x32xf32>
    %646 = math.exp %645 : vector<8x32xf32>
    %cst_151 = arith.constant 1.000000e+00 : f32
    %647 = vector.broadcast %cst_151 : f32 to vector<8x32xf32>
    %648 = arith.addf %647, %646 : vector<8x32xf32>
    %649 = arith.divf %647, %648 : vector<8x32xf32>
    %650 = vector.extract_strided_slice %634 {offsets = [0, 64], sizes = [8, 32], strides = [1, 1]} : vector<8x128xf32> to vector<8x32xf32>
    %651 = math.tanh %650 : vector<8x32xf32>
    %652 = vector.extract_strided_slice %634 {offsets = [0, 96], sizes = [8, 32], strides = [1, 1]} : vector<8x128xf32> to vector<8x32xf32>
    %653 = arith.negf %652 : vector<8x32xf32>
    %654 = math.exp %653 : vector<8x32xf32>
    %cst_152 = arith.constant 1.000000e+00 : f32
    %655 = vector.broadcast %cst_152 : f32 to vector<8x32xf32>
    %656 = arith.addf %655, %654 : vector<8x32xf32>
    %657 = arith.divf %655, %656 : vector<8x32xf32>
    %658 = arith.mulf %649, %566 : vector<8x32xf32>
    %659 = arith.mulf %643, %651 : vector<8x32xf32>
    %660 = arith.addf %658, %659 : vector<8x32xf32>
    %661 = math.tanh %660 : vector<8x32xf32>
    %662 = arith.mulf %657, %661 : vector<8x32xf32>
    %cst_153 = arith.constant 5.000000e-01 : f32
    %663 = vector.broadcast %cst_153 : f32 to vector<8x1xf32>
    %664 = arith.cmpf ogt, %626, %663 : vector<8x1xf32>
    %665 = vector.shape_cast %664 : vector<8x1xi1> to vector<8x1xi1>
    %666 = vector.broadcast %665 : vector<8x1xi1> to vector<8x32xi1>
    %667 = arith.select %666, %660, %566 : vector<8x32xi1>, vector<8x32xf32>
    %668 = vector.shape_cast %664 : vector<8x1xi1> to vector<8x1xi1>
    %669 = vector.broadcast %668 : vector<8x1xi1> to vector<8x32xi1>
    %670 = arith.select %669, %662, %569 : vector<8x32xi1>, vector<8x32xf32>
    %671 = vector.extract_strided_slice %637 {offsets = [0, 0], sizes = [8, 32], strides = [1, 1]} : vector<8x128xf32> to vector<8x32xf32>
    %672 = arith.negf %671 : vector<8x32xf32>
    %673 = math.exp %672 : vector<8x32xf32>
    %cst_154 = arith.constant 1.000000e+00 : f32
    %674 = vector.broadcast %cst_154 : f32 to vector<8x32xf32>
    %675 = arith.addf %674, %673 : vector<8x32xf32>
    %676 = arith.divf %674, %675 : vector<8x32xf32>
    %677 = vector.extract_strided_slice %637 {offsets = [0, 32], sizes = [8, 32], strides = [1, 1]} : vector<8x128xf32> to vector<8x32xf32>
    %678 = arith.negf %677 : vector<8x32xf32>
    %679 = math.exp %678 : vector<8x32xf32>
    %cst_155 = arith.constant 1.000000e+00 : f32
    %680 = vector.broadcast %cst_155 : f32 to vector<8x32xf32>
    %681 = arith.addf %680, %679 : vector<8x32xf32>
    %682 = arith.divf %680, %681 : vector<8x32xf32>
    %683 = vector.extract_strided_slice %637 {offsets = [0, 64], sizes = [8, 32], strides = [1, 1]} : vector<8x128xf32> to vector<8x32xf32>
    %684 = math.tanh %683 : vector<8x32xf32>
    %685 = vector.extract_strided_slice %637 {offsets = [0, 96], sizes = [8, 32], strides = [1, 1]} : vector<8x128xf32> to vector<8x32xf32>
    %686 = arith.negf %685 : vector<8x32xf32>
    %687 = math.exp %686 : vector<8x32xf32>
    %cst_156 = arith.constant 1.000000e+00 : f32
    %688 = vector.broadcast %cst_156 : f32 to vector<8x32xf32>
    %689 = arith.addf %688, %687 : vector<8x32xf32>
    %690 = arith.divf %688, %689 : vector<8x32xf32>
    %691 = arith.mulf %682, %599 : vector<8x32xf32>
    %692 = arith.mulf %676, %684 : vector<8x32xf32>
    %693 = arith.addf %691, %692 : vector<8x32xf32>
    %694 = math.tanh %693 : vector<8x32xf32>
    %695 = arith.mulf %690, %694 : vector<8x32xf32>
    %cst_157 = arith.constant 5.000000e-01 : f32
    %696 = vector.broadcast %cst_157 : f32 to vector<8x1xf32>
    %697 = arith.cmpf ogt, %629, %696 : vector<8x1xf32>
    %698 = vector.shape_cast %697 : vector<8x1xi1> to vector<8x1xi1>
    %699 = vector.broadcast %698 : vector<8x1xi1> to vector<8x32xi1>
    %700 = arith.select %699, %693, %599 : vector<8x32xi1>, vector<8x32xf32>
    %701 = vector.shape_cast %697 : vector<8x1xi1> to vector<8x1xi1>
    %702 = vector.broadcast %701 : vector<8x1xi1> to vector<8x32xi1>
    %703 = arith.select %702, %695, %602 : vector<8x32xi1>, vector<8x32xf32>
    %704 = vector.broadcast %626 : vector<8x1xf32> to vector<8x32xf32>
    %705 = arith.mulf %670, %704 : vector<8x32xf32>
    %706 = arith.index_cast %c6_i32 : i32 to index
    %c0_158 = arith.constant 0 : index
    %c0_159 = arith.constant 0 : index
    %707 = vector.load %arg5[%706, %c0_158, %c0_159] : memref<8x8x32xf32, #tpu.memory_space<vmem>>, vector<1x8x32xf32>
    %708 = vector.shape_cast %707 : vector<1x8x32xf32> to vector<8x32xf32>
    %709 = vector.shape_cast %705 : vector<8x32xf32> to vector<1x8x32xf32>
    tpu.vector_store %arg5[%706, %c0_158, %c0_159], %709 {strides = array<i32>} : memref<8x8x32xf32, #tpu.memory_space<vmem>>, vector<1x8x32xf32>,
    %710 = vector.broadcast %629 : vector<8x1xf32> to vector<8x32xf32>
    %711 = arith.mulf %703, %710 : vector<8x32xf32>
    %712 = arith.index_cast %615 : i32 to index
    %c0_160 = arith.constant 0 : index
    %c0_161 = arith.constant 0 : index
    %713 = vector.load %arg6[%712, %c0_160, %c0_161] : memref<8x8x32xf32, #tpu.memory_space<vmem>>, vector<1x8x32xf32>
    %714 = vector.shape_cast %713 : vector<1x8x32xf32> to vector<8x32xf32>
    %715 = vector.shape_cast %711 : vector<8x32xf32> to vector<1x8x32xf32>
    tpu.vector_store %arg6[%712, %c0_160, %c0_161], %715 {strides = array<i32>} : memref<8x8x32xf32, #tpu.memory_space<vmem>>, vector<1x8x32xf32>,
    %c7_i32_162 = arith.constant 7 : i32
    %c7_i32_163 = arith.constant 7 : i32
    %716 = arith.subi %c7_i32_163, %c7_i32_162 : i32
    %c8_i32_164 = arith.constant 8 : i32
    %717 = arith.muli %c7_i32_162, %c8_i32_164 : i32
    %718 = tpu.assume_multiple %717, 8 : i32
    %c8_i32_165 = arith.constant 8 : i32
    %719 = arith.muli %716, %c8_i32_165 : i32
    %720 = tpu.assume_multiple %719, 8 : i32
    %721 = arith.index_cast %718 : i32 to index
    %c0_166 = arith.constant 0 : index
    %722 = vector.load %arg9[%721, %c0_166] : memref<64x256xf32, #tpu.memory_space<vmem>>, vector<8x256xf32>
    %723 = arith.index_cast %720 : i32 to index
    %c0_167 = arith.constant 0 : index
    %724 = vector.load %arg9[%723, %c0_167] : memref<64x256xf32, #tpu.memory_space<vmem>>, vector<8x256xf32>
    %725 = arith.index_cast %c7_i32_162 : i32 to index
    %c0_168 = arith.constant 0 : index
    %c0_169 = arith.constant 0 : index
    %726 = vector.load %arg1[%725, %c0_168, %c0_169] : memref<8x8x1xf32, #tpu.memory_space<vmem>>, vector<1x8x1xf32>
    %727 = vector.shape_cast %726 : vector<1x8x1xf32> to vector<8x1xf32>
    %728 = arith.index_cast %716 : i32 to index
    %c0_170 = arith.constant 0 : index
    %c0_171 = arith.constant 0 : index
    %729 = vector.load %arg1[%728, %c0_170, %c0_171] : memref<8x8x1xf32, #tpu.memory_space<vmem>>, vector<1x8x1xf32>
    %730 = vector.shape_cast %729 : vector<1x8x1xf32> to vector<8x1xf32>
    %731 = tpu.concatenate %670, %703 in 1 : vector<8x32xf32>, vector<8x32xf32> -> vector<8x64xf32>
    %cst_172 = arith.constant dense<0.000000e+00> : vector<8x256xf32>
    %732 = tpu.matmul %731, %7, %cst_172 {dimension_numbers = #tpu.dot_dimension_numbers<[1], [0], [0], [1], [0, 0, 1, 1], [], []>} : vector<8x64xf32>, vector<64x256xf32>, vector<8x256xf32> -> vector<8x256xf32>
    %733 = vector.extract_strided_slice %722 {offsets = [0, 0], sizes = [8, 128], strides = [1, 1]} : vector<8x256xf32> to vector<8x128xf32>
    %734 = vector.extract_strided_slice %732 {offsets = [0, 0], sizes = [8, 128], strides = [1, 1]} : vector<8x256xf32> to vector<8x128xf32>
    %735 = arith.addf %733, %734 : vector<8x128xf32>
    %736 = vector.extract_strided_slice %724 {offsets = [0, 128], sizes = [8, 128], strides = [1, 1]} : vector<8x256xf32> to vector<8x128xf32>
    %737 = vector.extract_strided_slice %732 {offsets = [0, 128], sizes = [8, 128], strides = [1, 1]} : vector<8x256xf32> to vector<8x128xf32>
    %738 = arith.addf %736, %737 : vector<8x128xf32>
    %739 = vector.extract_strided_slice %735 {offsets = [0, 0], sizes = [8, 32], strides = [1, 1]} : vector<8x128xf32> to vector<8x32xf32>
    %740 = arith.negf %739 : vector<8x32xf32>
    %741 = math.exp %740 : vector<8x32xf32>
    %cst_173 = arith.constant 1.000000e+00 : f32
    %742 = vector.broadcast %cst_173 : f32 to vector<8x32xf32>
    %743 = arith.addf %742, %741 : vector<8x32xf32>
    %744 = arith.divf %742, %743 : vector<8x32xf32>
    %745 = vector.extract_strided_slice %735 {offsets = [0, 32], sizes = [8, 32], strides = [1, 1]} : vector<8x128xf32> to vector<8x32xf32>
    %746 = arith.negf %745 : vector<8x32xf32>
    %747 = math.exp %746 : vector<8x32xf32>
    %cst_174 = arith.constant 1.000000e+00 : f32
    %748 = vector.broadcast %cst_174 : f32 to vector<8x32xf32>
    %749 = arith.addf %748, %747 : vector<8x32xf32>
    %750 = arith.divf %748, %749 : vector<8x32xf32>
    %751 = vector.extract_strided_slice %735 {offsets = [0, 64], sizes = [8, 32], strides = [1, 1]} : vector<8x128xf32> to vector<8x32xf32>
    %752 = math.tanh %751 : vector<8x32xf32>
    %753 = vector.extract_strided_slice %735 {offsets = [0, 96], sizes = [8, 32], strides = [1, 1]} : vector<8x128xf32> to vector<8x32xf32>
    %754 = arith.negf %753 : vector<8x32xf32>
    %755 = math.exp %754 : vector<8x32xf32>
    %cst_175 = arith.constant 1.000000e+00 : f32
    %756 = vector.broadcast %cst_175 : f32 to vector<8x32xf32>
    %757 = arith.addf %756, %755 : vector<8x32xf32>
    %758 = arith.divf %756, %757 : vector<8x32xf32>
    %759 = arith.mulf %750, %667 : vector<8x32xf32>
    %760 = arith.mulf %744, %752 : vector<8x32xf32>
    %761 = arith.addf %759, %760 : vector<8x32xf32>
    %762 = math.tanh %761 : vector<8x32xf32>
    %763 = arith.mulf %758, %762 : vector<8x32xf32>
    %cst_176 = arith.constant 5.000000e-01 : f32
    %764 = vector.broadcast %cst_176 : f32 to vector<8x1xf32>
    %765 = arith.cmpf ogt, %727, %764 : vector<8x1xf32>
    %766 = vector.shape_cast %765 : vector<8x1xi1> to vector<8x1xi1>
    %767 = vector.broadcast %766 : vector<8x1xi1> to vector<8x32xi1>
    %768 = arith.select %767, %761, %667 : vector<8x32xi1>, vector<8x32xf32>
    %769 = vector.shape_cast %765 : vector<8x1xi1> to vector<8x1xi1>
    %770 = vector.broadcast %769 : vector<8x1xi1> to vector<8x32xi1>
    %771 = arith.select %770, %763, %670 : vector<8x32xi1>, vector<8x32xf32>
    %772 = vector.extract_strided_slice %738 {offsets = [0, 0], sizes = [8, 32], strides = [1, 1]} : vector<8x128xf32> to vector<8x32xf32>
    %773 = arith.negf %772 : vector<8x32xf32>
    %774 = math.exp %773 : vector<8x32xf32>
    %cst_177 = arith.constant 1.000000e+00 : f32
    %775 = vector.broadcast %cst_177 : f32 to vector<8x32xf32>
    %776 = arith.addf %775, %774 : vector<8x32xf32>
    %777 = arith.divf %775, %776 : vector<8x32xf32>
    %778 = vector.extract_strided_slice %738 {offsets = [0, 32], sizes = [8, 32], strides = [1, 1]} : vector<8x128xf32> to vector<8x32xf32>
    %779 = arith.negf %778 : vector<8x32xf32>
    %780 = math.exp %779 : vector<8x32xf32>
    %cst_178 = arith.constant 1.000000e+00 : f32
    %781 = vector.broadcast %cst_178 : f32 to vector<8x32xf32>
    %782 = arith.addf %781, %780 : vector<8x32xf32>
    %783 = arith.divf %781, %782 : vector<8x32xf32>
    %784 = vector.extract_strided_slice %738 {offsets = [0, 64], sizes = [8, 32], strides = [1, 1]} : vector<8x128xf32> to vector<8x32xf32>
    %785 = math.tanh %784 : vector<8x32xf32>
    %786 = vector.extract_strided_slice %738 {offsets = [0, 96], sizes = [8, 32], strides = [1, 1]} : vector<8x128xf32> to vector<8x32xf32>
    %787 = arith.negf %786 : vector<8x32xf32>
    %788 = math.exp %787 : vector<8x32xf32>
    %cst_179 = arith.constant 1.000000e+00 : f32
    %789 = vector.broadcast %cst_179 : f32 to vector<8x32xf32>
    %790 = arith.addf %789, %788 : vector<8x32xf32>
    %791 = arith.divf %789, %790 : vector<8x32xf32>
    %792 = arith.mulf %783, %700 : vector<8x32xf32>
    %793 = arith.mulf %777, %785 : vector<8x32xf32>
    %794 = arith.addf %792, %793 : vector<8x32xf32>
    %795 = math.tanh %794 : vector<8x32xf32>
    %796 = arith.mulf %791, %795 : vector<8x32xf32>
    %cst_180 = arith.constant 5.000000e-01 : f32
    %797 = vector.broadcast %cst_180 : f32 to vector<8x1xf32>
    %798 = arith.cmpf ogt, %730, %797 : vector<8x1xf32>
    %799 = vector.shape_cast %798 : vector<8x1xi1> to vector<8x1xi1>
    %800 = vector.broadcast %799 : vector<8x1xi1> to vector<8x32xi1>
    %801 = arith.select %800, %794, %700 : vector<8x32xi1>, vector<8x32xf32>
    %802 = vector.shape_cast %798 : vector<8x1xi1> to vector<8x1xi1>
    %803 = vector.broadcast %802 : vector<8x1xi1> to vector<8x32xi1>
    %804 = arith.select %803, %796, %703 : vector<8x32xi1>, vector<8x32xf32>
    %805 = vector.broadcast %727 : vector<8x1xf32> to vector<8x32xf32>
    %806 = arith.mulf %771, %805 : vector<8x32xf32>
    %807 = arith.index_cast %c7_i32_162 : i32 to index
    %c0_181 = arith.constant 0 : index
    %c0_182 = arith.constant 0 : index
    %808 = vector.load %arg5[%807, %c0_181, %c0_182] : memref<8x8x32xf32, #tpu.memory_space<vmem>>, vector<1x8x32xf32>
    %809 = vector.shape_cast %808 : vector<1x8x32xf32> to vector<8x32xf32>
    %810 = vector.shape_cast %806 : vector<8x32xf32> to vector<1x8x32xf32>
    tpu.vector_store %arg5[%807, %c0_181, %c0_182], %810 {strides = array<i32>} : memref<8x8x32xf32, #tpu.memory_space<vmem>>, vector<1x8x32xf32>,
    %811 = vector.broadcast %730 : vector<8x1xf32> to vector<8x32xf32>
    %812 = arith.mulf %804, %811 : vector<8x32xf32>
    %813 = arith.index_cast %716 : i32 to index
    %c0_183 = arith.constant 0 : index
    %c0_184 = arith.constant 0 : index
    %814 = vector.load %arg6[%813, %c0_183, %c0_184] : memref<8x8x32xf32, #tpu.memory_space<vmem>>, vector<1x8x32xf32>
    %815 = vector.shape_cast %814 : vector<1x8x32xf32> to vector<8x32xf32>
    %816 = vector.shape_cast %812 : vector<8x32xf32> to vector<1x8x32xf32>
    tpu.vector_store %arg6[%813, %c0_183, %c0_184], %816 {strides = array<i32>} : memref<8x8x32xf32, #tpu.memory_space<vmem>>, vector<1x8x32xf32>,
    %c8_i32_185 = arith.constant 8 : i32
    %c0_186 = arith.constant 0 : index
    %c0_187 = arith.constant 0 : index
    %817 = vector.load %arg7[%c0_186, %c0_187] : memref<8x32xf32, #tpu.memory_space<vmem>>, vector<8x32xf32>
    tpu.vector_store %arg7[%c0_186, %c0_187], %771 {strides = array<i32>} : memref<8x32xf32, #tpu.memory_space<vmem>>, vector<8x32xf32>,
    %c0_188 = arith.constant 0 : index
    %c0_189 = arith.constant 0 : index
    %818 = vector.load %arg8[%c0_188, %c0_189] : memref<8x32xf32, #tpu.memory_space<vmem>>, vector<8x32xf32>
    tpu.vector_store %arg8[%c0_188, %c0_189], %804 {strides = array<i32>} : memref<8x32xf32, #tpu.memory_space<vmem>>, vector<8x32xf32>,
    return
  }
}

</mosaic_0001>

<llo_original>
// kernel: rnn_forward.3
$region0: #{rnn_forward.3}
  #allocation0 [shape = 'u32[]', space=smem, size = 0x4, offset = 0x4, fixed_abs, tag = 'smem constant byte address 0x4 - core index']
  #allocation1 [shape = 'u32[144,128]{1,0:T(1,128)}', space=vmem, size = 0x12000, scoped, tag = 'internal scratch']
  #allocation2 [shape = 'f32[64,256]{1,0:T(8,128)}', space=vmem, size = 0x10000, scoped, tag = 'scratch operand']
  %s0 = inlined_call_operand.vmem [shape: f32[64,64], index: 0, kind: input, shape index: {}]
  %s1 = inlined_call_operand.vmem [shape: f32[8,8,1], index: 1, kind: input, shape index: {}]
  %s2 = inlined_call_operand.vmem [shape: f32[64,256], index: 2, kind: input, shape index: {}]
  %s3 = inlined_call_operand.vmem [shape: f32[64,256], index: 3, kind: input, shape index: {}]
  %s4 = inlined_call_operand.vmem [shape: f32[1,256], index: 4, kind: input, shape index: {}]
  %s5 = inlined_call_operand.hbm [shape: f32[8,8,32], index: 5, kind: output, shape index: {0}]
  %s6 = inlined_call_operand.hbm [shape: f32[8,8,32], index: 6, kind: output, shape index: {1}]
  %s7 = inlined_call_operand.vmem [shape: f32[8,32], index: 7, kind: output, shape index: {2}]
  %s8 = inlined_call_operand.vmem [shape: f32[8,32], index: 8, kind: output, shape index: {3}]
  %9 = xla_tuple %s5, %s6, %s7, %s8
  %s10 = sld [smem:[#allocation0]]
  $region54: #{rnn_forward.3} parent=0
    _
  %s12 = ssub.s32 1, %s10
  %s13 = scalar_select 0, %s12, %s10
  $region1: #{rnn_forward.3} parent=0
    #allocation3 [shape = 'u8[32768]{0}', space=vmem, size = 0x8000, scoped, tag = 'output window, operand 0, single buffered']
    #allocation4 [shape = 's32[1]{0}', space=sflag, size = 0x4, scoped, tag = 'scoped memory for rnn_forward.3']
    #allocation5 [shape = 'u8[32768]{0}', space=vmem, size = 0x8000, scoped, tag = 'output window, operand 1, single buffered']
    #allocation6 [shape = 's32[1]{0}', space=sflag, size = 0x4, scoped, tag = 'scoped memory for rnn_forward.3']
    %14 = vsyncpa [#allocation4], 0
    %15 = vsyncpa [#allocation6], 0
    // Predicated region
    $region2: #{rnn_forward.3} parent=1 // pred_check
      _
    $region3: #{rnn_forward.3} parent=1 // pred_check_branch
      %17 = sbr.rel (0) target = $region5
    $region4: #{rnn_forward.3} parent=1 // pred_region
      _
    $region5: #{rnn_forward.3} parent=1 // pred_fallthru
      _
    // Predicated region
    $region6: #{rnn_forward.3} parent=1 // pred_check
      _
    $region7: #{rnn_forward.3} parent=1 // pred_check_branch
      %19 = sbr.rel (0) target = $region9
    $region8: #{rnn_forward.3} parent=1 // pred_region
      _
    $region9: #{rnn_forward.3} parent=1 // pred_fallthru
      _
    // Predicated region
    $region10: #{rnn_forward.3} parent=1 // pred_check
      _
    $region11: #{rnn_forward.3} parent=1 // pred_check_branch
      %21 = sbr.rel (0) target = $region13
    $region12: #{rnn_forward.3} parent=1 // pred_region
      _
    $region13: #{rnn_forward.3} parent=1 // pred_fallthru
      _
    // Predicated region
    $region14: #{rnn_forward.3} parent=1 // pred_check
      _
    $region15: #{rnn_forward.3} parent=1 // pred_check_branch
      %23 = sbr.rel (0) target = $region17
    $region16: #{rnn_forward.3} parent=1 // pred_region
      _
    $region17: #{rnn_forward.3} parent=1 // pred_fallthru
      _
    // Predicated region
    $region18: #{rnn_forward.3} parent=1 // pred_check
      _
    $region19: #{rnn_forward.3} parent=1 // pred_check_branch
      %25 = sbr.rel (0) target = $region21
    $region20: #{rnn_forward.3} parent=1 // pred_region
      _
    $region21: #{rnn_forward.3} parent=1 // pred_fallthru
      _
    %v26 = vld [vmem:[%s0] sm:$0xff]
    %v27 = vld [vmem:[%s0 + $0x8] sm:$0xff]
    %v28 = vld [vmem:[%s0 + $0x10] sm:$0xff]
    %v29 = vld [vmem:[%s0 + $0x18] sm:$0xff]
    %v30 = vld [vmem:[%s0 + $0x20] sm:$0xff]
    %v31 = vld [vmem:[%s0 + $0x28] sm:$0xff]
    %v32 = vld [vmem:[%s0 + $0x30] sm:$0xff]
    %v33 = vld [vmem:[%s0 + $0x38] sm:$0xff]
    %v34 = vld [vmem:[%s2] sm:$0xff]
    %v35 = vld [vmem:[%s2 + $0x8] sm:$0xff]
    %v36 = vld [vmem:[%s2 + $0x10] sm:$0xff]
    %v37 = vld [vmem:[%s2 + $0x18] sm:$0xff]
    %v38 = vld [vmem:[%s2 + $0x20] sm:$0xff]
    %v39 = vld [vmem:[%s2 + $0x28] sm:$0xff]
    %v40 = vld [vmem:[%s2 + $0x30] sm:$0xff]
    %v41 = vld [vmem:[%s2 + $0x38] sm:$0xff]
    %v42 = vld [vmem:[%s2 + $0x40] sm:$0xff]
    %v43 = vld [vmem:[%s2 + $0x48] sm:$0xff]
    %v44 = vld [vmem:[%s2 + $0x50] sm:$0xff]
    %v45 = vld [vmem:[%s2 + $0x58] sm:$0xff]
    %v46 = vld [vmem:[%s2 + $0x60] sm:$0xff]
    %v47 = vld [vmem:[%s2 + $0x68] sm:$0xff]
    %v48 = vld [vmem:[%s2 + $0x70] sm:$0xff]
    %v49 = vld [vmem:[%s2 + $0x78] sm:$0xff]
    %v50 = vld [vmem:[%s4] sm:$0x3]
    %v52 = vlaneseq
    %v53 = vshrl.u32 %v52, 7
    %v54 = vsub.s32 0, %v53
    %v55 = vrot.slane %v50, %v54
    %v56 = vlaneseq
    %v57 = vshrl.u32 %v56, 7
    %v58 = vsub.s32 1, %v57
    %v59 = vrot.slane %v50, %v58
    %vm62 = vcmask 523264
    %v64 = vsel %vm62, %v26, 0
    %v67 = vsel %vm62, %v27, 0
    %v70 = vsel %vm62, %v28, 0
    %v73 = vsel %vm62, %v29, 0
    %v76 = vsel %vm62, %v30, 0
    %v79 = vsel %vm62, %v31, 0
    %v82 = vsel %vm62, %v32, 0
    %v85 = vsel %vm62, %v33, 0
    %87 = vmatprep.subr.mxu0 %v35
    %88 = vmatpush1.msra.mxu0 %v34
    %89 = vmatprep.subr.mxu0 %v37
    %90 = vmatpush1.msra.mxu0 %v36
    %91 = vmatprep.subr.mxu0 %v39
    %92 = vmatpush1.msra.mxu0 %v38
    %93 = vmatprep.subr.mxu0 %v41
    %94 = vmatpush1.msra.mxu0 %v40
    %95 = vmatprep.subr.mxu0 %v43
    %96 = vmatpush1.msra.mxu0 %v42
    %97 = vmatprep.subr.mxu0 %v45
    %98 = vmatpush1.msra.mxu0 %v44
    %99 = vmatprep.subr.mxu0 %v47
    %100 = vmatpush1.msra.mxu0 %v46
    %101 = vmatprep.subr.mxu0 %v49
    %102 = vmatpush1.msra.mxu0 %v48
    %103 = vmatprep.subr.mxu0 0.0
    %104 = vmatpush1.msra.mxu0 0.0
    %105 = vmatprep.subr.mxu0 0.0
    %106 = vmatpush1.msra.mxu0 0.0
    %107 = vmatprep.subr.mxu0 0.0
    %108 = vmatpush1.msra.mxu0 0.0
    %109 = vmatprep.subr.mxu0 0.0
    %110 = vmatpush1.msra.mxu0 0.0
    %111 = vmatprep.subr.mxu0 0.0
    %112 = vmatpush1.msra.mxu0 0.0
    %113 = vmatprep.subr.mxu0 0.0
    %114 = vmatpush1.msra.mxu0 0.0
    %115 = vmatprep.subr.mxu0 0.0
    %116 = vmatpush1.msra.mxu0 0.0
    %117 = vmatprep.subr.mxu0 0.0
    %118 = vmatpush1.msra.mxu0 0.0
    %119 = vmatprep.subr.mxu0 0.0
    %120 = vmatpush1.msra.mxu0 0.0
    %121 = vmatprep.subr.mxu0 0.0
    %122 = vmatpush1.msra.mxu0 0.0
    %123 = vmatprep.subr.mxu0 0.0
    %124 = vmatpush1.msra.mxu0 0.0
    %125 = vmatprep.subr.mxu0 0.0
    %126 = vmatpush1.msra.mxu0 0.0
    %127 = vmatprep.subr.mxu0 0.0
    %128 = vmatpush1.msra.mxu0 0.0
    %129 = vmatprep.subr.mxu0 0.0
    %130 = vmatpush1.msra.mxu0 0.0
    %131 = vmatprep.subr.mxu0 0.0
    %132 = vmatpush1.msra.mxu0 0.0
    %133 = vmatprep.subr.mxu0 0.0
    %134 = vmatpush1.msra.mxu0 0.0
    %135 = vmatprep.subr.mxu0 0.0
    %136 = vmatpush1.msra.mxu0 0.0
    %137 = vmatprep.subr.mxu0 0.0
    %138 = vmatpush1.msra.mxu0 0.0
    %139 = vmatprep.subr.mxu0 0.0
    %140 = vmatpush1.msra.mxu0 0.0
    %141 = vmatprep.subr.mxu0 0.0
    %142 = vmatpush1.msra.mxu0 0.0
    %143 = vmatprep.subr.mxu0 0.0
    %144 = vmatpush1.msra.mxu0 0.0
    %145 = vmatprep.subr.mxu0 0.0
    %146 = vmatpush1.msra.mxu0 0.0
    %147 = vmatprep.subr.mxu0 0.0
    %148 = vmatpush1.msra.mxu0 0.0
    %149 = vmatprep.subr.mxu0 0.0
    %150 = vmatpush1.msra.mxu0 0.0
    %151 = vmatprep.mubr.f32.mxu0 0.0
    %152 = vmatmul.mubr.f32.gmra.mrb[0].mxu0 %v64
    %v153 = vpop.f32.mrb[0].mxu0
    %v154 = vadd.f32 %v55, %v153
    %v155 = vpop.f32.mrb[0].mxu0
    %v156 = vadd.f32 %v59, %v155
    %157 = vmatprep.mubr.f32.mxu0 0.0
    %158 = vmatmul.mubr.f32.gmra.mrb[0].mxu0 %v67
    %v159 = vpop.f32.mrb[0].mxu0
    %v160 = vadd.f32 %v55, %v159
    %v161 = vpop.f32.mrb[0].mxu0
    %v162 = vadd.f32 %v59, %v161
    %163 = vmatprep.mubr.f32.mxu0 0.0
    %164 = vmatmul.mubr.f32.gmra.mrb[0].mxu0 %v70
    %v165 = vpop.f32.mrb[0].mxu0
    %v166 = vadd.f32 %v55, %v165
    %v167 = vpop.f32.mrb[0].mxu0
    %v168 = vadd.f32 %v59, %v167
    %169 = vmatprep.mubr.f32.mxu0 0.0
    %170 = vmatmul.mubr.f32.gmra.mrb[0].mxu0 %v73
    %v171 = vpop.f32.mrb[0].mxu0
    %v172 = vadd.f32 %v55, %v171
    %v173 = vpop.f32.mrb[0].mxu0
    %v174 = vadd.f32 %v59, %v173
    %175 = vmatprep.mubr.f32.mxu0 0.0
    %176 = vmatmul.mubr.f32.gmra.mrb[0].mxu0 %v76
    %v177 = vpop.f32.mrb[0].mxu0
    %v178 = vadd.f32 %v55, %v177
    %v179 = vpop.f32.mrb[0].mxu0
    %v180 = vadd.f32 %v59, %v179
    %181 = vmatprep.mubr.f32.mxu0 0.0
    %182 = vmatmul.mubr.f32.gmra.mrb[0].mxu0 %v79
    %v183 = vpop.f32.mrb[0].mxu0
    %v184 = vadd.f32 %v55, %v183
    %v185 = vpop.f32.mrb[0].mxu0
    %v186 = vadd.f32 %v59, %v185
    %187 = vmatprep.mubr.f32.mxu0 0.0
    %188 = vmatmul.mubr.f32.gmra.mrb[0].mxu0 %v82
    %v189 = vpop.f32.mrb[0].mxu0
    %v190 = vadd.f32 %v55, %v189
    %v191 = vpop.f32.mrb[0].mxu0
    %v192 = vadd.f32 %v59, %v191
    %193 = vmatprep.mubr.f32.mxu0 0.0
    %194 = vmatmul.mubr.f32.gmra.mrb[0].mxu0 %v85
    %v195 = vpop.f32.mrb[0].mxu0
    %v196 = vadd.f32 %v55, %v195
    %v197 = vpop.f32.mrb[0].mxu0
    %v198 = vadd.f32 %v59, %v197
    %199 = vdwg.mxu0
    %200 = vst [vmem:[#allocation2] sm:$0xff] %v154
    %201 = vst [vmem:[#allocation2 + $0x8] sm:$0xff] %v156
    %202 = vst [vmem:[#allocation2 + $0x10] sm:$0xff] %v160
    %203 = vst [vmem:[#allocation2 + $0x18] sm:$0xff] %v162
    %204 = vst [vmem:[#allocation2 + $0x20] sm:$0xff] %v166
    %205 = vst [vmem:[#allocation2 + $0x28] sm:$0xff] %v168
    %206 = vst [vmem:[#allocation2 + $0x30] sm:$0xff] %v172
    %207 = vst [vmem:[#allocation2 + $0x38] sm:$0xff] %v174
    %208 = vst [vmem:[#allocation2 + $0x40] sm:$0xff] %v178
    %209 = vst [vmem:[#allocation2 + $0x48] sm:$0xff] %v180
    %210 = vst [vmem:[#allocation2 + $0x50] sm:$0xff] %v184
    %211 = vst [vmem:[#allocation2 + $0x58] sm:$0xff] %v186
    %212 = vst [vmem:[#allocation2 + $0x60] sm:$0xff] %v190
    %213 = vst [vmem:[#allocation2 + $0x68] sm:$0xff] %v192
    %214 = vst [vmem:[#allocation2 + $0x70] sm:$0xff] %v196
    %215 = vst [vmem:[#allocation2 + $0x78] sm:$0xff] %v198
    %v216 = vld [vmem:[%s3] sm:$0xff]
    %v217 = vld [vmem:[%s3 + $0x8] sm:$0xff]
    %v218 = vld [vmem:[%s3 + $0x10] sm:$0xff]
    %v219 = vld [vmem:[%s3 + $0x18] sm:$0xff]
    %v220 = vld [vmem:[%s3 + $0x20] sm:$0xff]
    %v221 = vld [vmem:[%s3 + $0x28] sm:$0xff]
    %v222 = vld [vmem:[%s3 + $0x30] sm:$0xff]
    %v223 = vld [vmem:[%s3 + $0x38] sm:$0xff]
    %v224 = vld [vmem:[%s3 + $0x40] sm:$0xff]
    %v225 = vld [vmem:[%s3 + $0x48] sm:$0xff]
    %v226 = vld [vmem:[%s3 + $0x50] sm:$0xff]
    %v227 = vld [vmem:[%s3 + $0x58] sm:$0xff]
    %v228 = vld [vmem:[%s3 + $0x60] sm:$0xff]
    %v229 = vld [vmem:[%s3 + $0x68] sm:$0xff]
    %v230 = vld [vmem:[%s3 + $0x70] sm:$0xff]
    %v231 = vld [vmem:[%s3 + $0x78] sm:$0xff]
    %s232 = smul.u32 0, 2
    %s233 = smul.addr %s232, 8
    %s234 = scalar_lea.vmem [#allocation2], %s233
    %v235 = vld [vmem:[%s234] sm:$0xff]
    %s236 = smul.u32 7, 2
    %s237 = smul.addr %s236, 8
    %s238 = scalar_lea.vmem [#allocation2], %s237
    %v239 = vld [vmem:[%s238 + $0x8] sm:$0xff]
    %v240 = vld [vmem:[%s1] sm:$0xff]
    %s241 = scalar_lea.vmem %s1, 56
    %v242 = vld [vmem:[%s241] sm:$0xff]
    %v244 = vsel %vm62, 0.0, 0
    %246 = vmatprep.subr.mxu0 %v217
    %247 = vmatpush1.msra.mxu0 %v216
    %248 = vmatprep.subr.mxu0 %v219
    %249 = vmatpush1.msra.mxu0 %v218
    %250 = vmatprep.subr.mxu0 %v221
    %251 = vmatpush1.msra.mxu0 %v220
    %252 = vmatprep.subr.mxu0 %v223
    %253 = vmatpush1.msra.mxu0 %v222
    %254 = vmatprep.subr.mxu0 %v225
    %255 = vmatpush1.msra.mxu0 %v224
    %256 = vmatprep.subr.mxu0 %v227
    %257 = vmatpush1.msra.mxu0 %v226
    %258 = vmatprep.subr.mxu0 %v229
    %259 = vmatpush1.msra.mxu0 %v228
    %260 = vmatprep.subr.mxu0 %v231
    %261 = vmatpush1.msra.mxu0 %v230
    %262 = vmatprep.subr.mxu0 0.0
    %263 = vmatpush1.msra.mxu0 0.0
    %264 = vmatprep.subr.mxu0 0.0
    %265 = vmatpush1.msra.mxu0 0.0
    %266 = vmatprep.subr.mxu0 0.0
    %267 = vmatpush1.msra.mxu0 0.0
    %268 = vmatprep.subr.mxu0 0.0
    %269 = vmatpush1.msra.mxu0 0.0
    %270 = vmatprep.subr.mxu0 0.0
    %271 = vmatpush1.msra.mxu0 0.0
    %272 = vmatprep.subr.mxu0 0.0
    %273 = vmatpush1.msra.mxu0 0.0
    %274 = vmatprep.subr.mxu0 0.0
    %275 = vmatpush1.msra.mxu0 0.0
    %276 = vmatprep.subr.mxu0 0.0
    %277 = vmatpush1.msra.mxu0 0.0
    %278 = vmatprep.subr.mxu0 0.0
    %279 = vmatpush1.msra.mxu0 0.0
    %280 = vmatprep.subr.mxu0 0.0
    %281 = vmatpush1.msra.mxu0 0.0
    %282 = vmatprep.subr.mxu0 0.0
    %283 = vmatpush1.msra.mxu0 0.0
    %284 = vmatprep.subr.mxu0 0.0
    %285 = vmatpush1.msra.mxu0 0.0
    %286 = vmatprep.subr.mxu0 0.0
    %287 = vmatpush1.msra.mxu0 0.0
    %288 = vmatprep.subr.mxu0 0.0
    %289 = vmatpush1.msra.mxu0 0.0
    %290 = vmatprep.subr.mxu0 0.0
    %291 = vmatpush1.msra.mxu0 0.0
    %292 = vmatprep.subr.mxu0 0.0
    %293 = vmatpush1.msra.mxu0 0.0
    %294 = vmatprep.subr.mxu0 0.0
    %295 = vmatpush1.msra.mxu0 0.0
    %296 = vmatprep.subr.mxu0 0.0
    %297 = vmatpush1.msra.mxu0 0.0
    %298 = vmatprep.subr.mxu0 0.0
    %299 = vmatpush1.msra.mxu0 0.0
    %300 = vmatprep.subr.mxu0 0.0
    %301 = vmatpush1.msra.mxu0 0.0
    %302 = vmatprep.subr.mxu0 0.0
    %303 = vmatpush1.msra.mxu0 0.0
    %304 = vmatprep.subr.mxu0 0.0
    %305 = vmatpush1.msra.mxu0 0.0
    %306 = vmatprep.subr.mxu0 0.0
    %307 = vmatpush1.msra.mxu0 0.0
    %308 = vmatprep.subr.mxu0 0.0
    %309 = vmatpush1.msra.mxu0 0.0
    %310 = vmatprep.mubr.f32.mxu0 0.0
    %311 = vmatmul.mubr.f32.gmra.mrb[0].mxu0 %v244
    %v312 = vpop.f32.mrb[0].mxu0
    %v313 = vadd.f32 0.0, %v312
    %v314 = vpop.f32.mrb[0].mxu0
    %v315 = vadd.f32 0.0, %v314
    %316 = vdwg.mxu0
    %v317 = vadd.f32 %v235, %v313
    %v318 = vadd.f32 %v239, %v315
    %v319 = vxor.u32 %v317, 2147483648
    %v320 = vmul.f32 %v319, 1.442695
    %v321 = vpow.pop %v320
    %v322 = vadd.f32 %v321, 1.0
    %v323 = vrcp.pop %v322
    %v324 = vmul.f32 1.0, %v323
    %v325 = vtanh.pop %v317
    %v326 = vmul.f32 %v324, 0.0
    %328 = vrot.lane.b32.xlu0 %v325, 64
    %v329 = vpop.permute.xlu0 %328
    %v331 = vmul.f32 %v324, %v329
    %333 = vrot.lane.b32.xlu0 %v331, 32
    %v334 = vpop.permute.xlu0 %333
    %v336 = vadd.f32 %v326, %v334
    %v337 = vtanh.pop %v336
    %339 = vrot.lane.b32.xlu0 %v337, 64
    %v340 = vpop.permute.xlu0 %339
    %v342 = vmul.f32 %v324, %v340
    %vm343 = vcmp.gt.f32.partialorder %v240, 0.5
    %v344 = vsel %vm343, 1, 0
    %345 = vset.pattern.permute.xlu0 0
    %346 = vperm.xlu0 %345, %v344
    %v347 = vpop.permute.xlu0 %346
    %vm348 = vcmp.eq.s32.totalorder %v347, 1
    %v349 = vsel %vm348, %v336, 0.0
    %v350 = vsel %vm348, %v342, 0.0
    %v351 = vxor.u32 %v318, 2147483648
    %v352 = vmul.f32 %v351, 1.442695
    %v353 = vpow.pop %v352
    %v354 = vadd.f32 %v353, 1.0
    %v355 = vrcp.pop %v354
    %v356 = vmul.f32 1.0, %v355
    %v357 = vtanh.pop %v318
    %v358 = vmul.f32 %v356, 0.0
    %360 = vrot.lane.b32.xlu0 %v357, 64
    %v361 = vpop.permute.xlu0 %360
    %v363 = vmul.f32 %v356, %v361
    %365 = vrot.lane.b32.xlu0 %v363, 32
    %v366 = vpop.permute.xlu0 %365
    %v368 = vadd.f32 %v358, %v366
    %v369 = vtanh.pop %v368
    %371 = vrot.lane.b32.xlu0 %v369, 64
    %v372 = vpop.permute.xlu0 %371
    %v374 = vmul.f32 %v356, %v372
    %vm375 = vcmp.gt.f32.partialorder %v242, 0.5
    %v376 = vsel %vm375, 1, 0
    %377 = vset.pattern.permute.xlu0 0
    %378 = vperm.xlu0 %377, %v376
    %v379 = vpop.permute.xlu0 %378
    %vm380 = vcmp.eq.s32.totalorder %v379, 1
    %v381 = vsel %vm380, %v368, 0.0
    %v382 = vsel %vm380, %v374, 0.0
    %384 = vset.pattern.permute.xlu0 0
    %385 = vperm.xlu0 %384, %v240
    %v386 = vpop.permute.xlu0 %385
    %v388 = vmul.f32 %v350, %v386
    %390 = vrot.lane.b32.xlu0 %v388, 32
    %v391 = vpop.permute.xlu0 %390
    %vm393 = vcmask 261120
    %394 = vst.msk [vmem:[#allocation3] sm:$0xff] %vm393, %v391
    %396 = vset.pattern.permute.xlu0 0
    %397 = vperm.xlu0 %396, %v242
    %v398 = vpop.permute.xlu0 %397
    %v400 = vmul.f32 %v382, %v398
    %402 = vrot.lane.b32.xlu0 %v400, 32
    %v403 = vpop.permute.xlu0 %402
    %s405 = scalar_lea.vmem [#allocation5], 56
    %406 = vst.msk [vmem:[%s405] sm:$0xff] %vm393, %v403
    %s407 = smul.u32 1, 2
    %s408 = smul.addr %s407, 8
    %s409 = scalar_lea.vmem [#allocation2], %s408
    %v410 = vld [vmem:[%s409] sm:$0xff]
    %s411 = smul.u32 6, 2
    %s412 = smul.addr %s411, 8
    %s413 = scalar_lea.vmem [#allocation2], %s412
    %v414 = vld [vmem:[%s413 + $0x8] sm:$0xff]
    %s415 = scalar_lea.vmem %s1, 8
    %v416 = vld [vmem:[%s415] sm:$0xff]
    %s417 = scalar_lea.vmem %s1, 48
    %v418 = vld [vmem:[%s417] sm:$0xff]
    %420 = vrot.lane.b32.xlu0 %v350, 32
    %v421 = vpop.permute.xlu0 %420
    %424 = vrot.lane.b32.xlu0 %v382, 64
    %v425 = vpop.permute.xlu0 %424
    %v427 = vsel %vm393, %v421, %v425
    %v429 = vsel %vm62, %v427, 0
    %431 = vmatprep.subr.mxu0 %v217
    %432 = vmatpush1.msra.mxu0 %v216
    %433 = vmatprep.subr.mxu0 %v219
    %434 = vmatpush1.msra.mxu0 %v218
    %435 = vmatprep.subr.mxu0 %v221
    %436 = vmatpush1.msra.mxu0 %v220
    %437 = vmatprep.subr.mxu0 %v223
    %438 = vmatpush1.msra.mxu0 %v222
    %439 = vmatprep.subr.mxu0 %v225
    %440 = vmatpush1.msra.mxu0 %v224
    %441 = vmatprep.subr.mxu0 %v227
    %442 = vmatpush1.msra.mxu0 %v226
    %443 = vmatprep.subr.mxu0 %v229
    %444 = vmatpush1.msra.mxu0 %v228
    %445 = vmatprep.subr.mxu0 %v231
    %446 = vmatpush1.msra.mxu0 %v230
    %447 = vmatprep.subr.mxu0 0.0
    %448 = vmatpush1.msra.mxu0 0.0
    %449 = vmatprep.subr.mxu0 0.0
    %450 = vmatpush1.msra.mxu0 0.0
    %451 = vmatprep.subr.mxu0 0.0
    %452 = vmatpush1.msra.mxu0 0.0
    %453 = vmatprep.subr.mxu0 0.0
    %454 = vmatpush1.msra.mxu0 0.0
    %455 = vmatprep.subr.mxu0 0.0
    %456 = vmatpush1.msra.mxu0 0.0
    %457 = vmatprep.subr.mxu0 0.0
    %458 = vmatpush1.msra.mxu0 0.0
    %459 = vmatprep.subr.mxu0 0.0
    %460 = vmatpush1.msra.mxu0 0.0
    %461 = vmatprep.subr.mxu0 0.0
    %462 = vmatpush1.msra.mxu0 0.0
    %463 = vmatprep.subr.mxu0 0.0
    %464 = vmatpush1.msra.mxu0 0.0
    %465 = vmatprep.subr.mxu0 0.0
    %466 = vmatpush1.msra.mxu0 0.0
    %467 = vmatprep.subr.mxu0 0.0
    %468 = vmatpush1.msra.mxu0 0.0
    %469 = vmatprep.subr.mxu0 0.0
    %470 = vmatpush1.msra.mxu0 0.0
    %471 = vmatprep.subr.mxu0 0.0
    %472 = vmatpush1.msra.mxu0 0.0
    %473 = vmatprep.subr.mxu0 0.0
    %474 = vmatpush1.msra.mxu0 0.0
    %475 = vmatprep.subr.mxu0 0.0
    %476 = vmatpush1.msra.mxu0 0.0
    %477 = vmatprep.subr.mxu0 0.0
    %478 = vmatpush1.msra.mxu0 0.0
    %479 = vmatprep.subr.mxu0 0.0
    %480 = vmatpush1.msra.mxu0 0.0
    %481 = vmatprep.subr.mxu0 0.0
    %482 = vmatpush1.msra.mxu0 0.0
    %483 = vmatprep.subr.mxu0 0.0
    %484 = vmatpush1.msra.mxu0 0.0
    %485 = vmatprep.subr.mxu0 0.0
    %486 = vmatpush1.msra.mxu0 0.0
    %487 = vmatprep.subr.mxu0 0.0
    %488 = vmatpush1.msra.mxu0 0.0
    %489 = vmatprep.subr.mxu0 0.0
    %490 = vmatpush1.msra.mxu0 0.0
    %491 = vmatprep.subr.mxu0 0.0
    %492 = vmatpush1.msra.mxu0 0.0
    %493 = vmatprep.subr.mxu0 0.0
    %494 = vmatpush1.msra.mxu0 0.0
    %495 = vmatprep.mubr.f32.mxu0 0.0
    %496 = vmatmul.mubr.f32.gmra.mrb[0].mxu0 %v429
    %v497 = vpop.f32.mrb[0].mxu0
    %v498 = vadd.f32 0.0, %v497
    %v499 = vpop.f32.mrb[0].mxu0
    %v500 = vadd.f32 0.0, %v499
    %501 = vdwg.mxu0
    %v502 = vadd.f32 %v410, %v498
    %v503 = vadd.f32 %v414, %v500
    %v504 = vxor.u32 %v502, 2147483648
    %v505 = vmul.f32 %v504, 1.442695
    %v506 = vpow.pop %v505
    %v507 = vadd.f32 %v506, 1.0
    %v508 = vrcp.pop %v507
    %v509 = vmul.f32 1.0, %v508
    %v510 = vtanh.pop %v502
    %v511 = vmul.f32 %v509, %v349
    %513 = vrot.lane.b32.xlu0 %v510, 64
    %v514 = vpop.permute.xlu0 %513
    %v516 = vmul.f32 %v509, %v514
    %518 = vrot.lane.b32.xlu0 %v516, 32
    %v519 = vpop.permute.xlu0 %518
    %v521 = vadd.f32 %v511, %v519
    %v522 = vtanh.pop %v521
    %524 = vrot.lane.b32.xlu0 %v522, 64
    %v525 = vpop.permute.xlu0 %524
    %v527 = vmul.f32 %v509, %v525
    %vm528 = vcmp.gt.f32.partialorder %v416, 0.5
    %v529 = vsel %vm528, 1, 0
    %530 = vset.pattern.permute.xlu0 0
    %531 = vperm.xlu0 %530, %v529
    %v532 = vpop.permute.xlu0 %531
    %vm533 = vcmp.eq.s32.totalorder %v532, 1
    %v534 = vsel %vm533, %v521, %v349
    %v535 = vsel %vm533, %v527, %v350
    %v536 = vxor.u32 %v503, 2147483648
    %v537 = vmul.f32 %v536, 1.442695
    %v538 = vpow.pop %v537
    %v539 = vadd.f32 %v538, 1.0
    %v540 = vrcp.pop %v539
    %v541 = vmul.f32 1.0, %v540
    %v542 = vtanh.pop %v503
    %v543 = vmul.f32 %v541, %v381
    %545 = vrot.lane.b32.xlu0 %v542, 64
    %v546 = vpop.permute.xlu0 %545
    %v548 = vmul.f32 %v541, %v546
    %550 = vrot.lane.b32.xlu0 %v548, 32
    %v551 = vpop.permute.xlu0 %550
    %v553 = vadd.f32 %v543, %v551
    %v554 = vtanh.pop %v553
    %556 = vrot.lane.b32.xlu0 %v554, 64
    %v557 = vpop.permute.xlu0 %556
    %v559 = vmul.f32 %v541, %v557
    %vm560 = vcmp.gt.f32.partialorder %v418, 0.5
    %v561 = vsel %vm560, 1, 0
    %562 = vset.pattern.permute.xlu0 0
    %563 = vperm.xlu0 %562, %v561
    %v564 = vpop.permute.xlu0 %563
    %vm565 = vcmp.eq.s32.totalorder %v564, 1
    %v566 = vsel %vm565, %v553, %v381
    %v567 = vsel %vm565, %v559, %v382
    %569 = vset.pattern.permute.xlu0 0
    %570 = vperm.xlu0 %569, %v416
    %v571 = vpop.permute.xlu0 %570
    %v573 = vmul.f32 %v535, %v571
    %575 = vrot.lane.b32.xlu0 %v573, 32
    %v576 = vpop.permute.xlu0 %575
    %s578 = scalar_lea.vmem [#allocation3], 8
    %579 = vst.msk [vmem:[%s578] sm:$0xff] %vm393, %v576
    %581 = vset.pattern.permute.xlu0 0
    %582 = vperm.xlu0 %581, %v418
    %v583 = vpop.permute.xlu0 %582
    %v585 = vmul.f32 %v567, %v583
    %587 = vrot.lane.b32.xlu0 %v585, 32
    %v588 = vpop.permute.xlu0 %587
    %s590 = scalar_lea.vmem [#allocation5], 48
    %591 = vst.msk [vmem:[%s590] sm:$0xff] %vm393, %v588
    %s592 = smul.u32 2, 2
    %s593 = smul.addr %s592, 8
    %s594 = scalar_lea.vmem [#allocation2], %s593
    %v595 = vld [vmem:[%s594] sm:$0xff]
    %s596 = smul.u32 5, 2
    %s597 = smul.addr %s596, 8
    %s598 = scalar_lea.vmem [#allocation2], %s597
    %v599 = vld [vmem:[%s598 + $0x8] sm:$0xff]
    %s600 = scalar_lea.vmem %s1, 16
    %v601 = vld [vmem:[%s600] sm:$0xff]
    %s602 = scalar_lea.vmem %s1, 40
    %v603 = vld [vmem:[%s602] sm:$0xff]
    %605 = vrot.lane.b32.xlu0 %v535, 32
    %v606 = vpop.permute.xlu0 %605
    %609 = vrot.lane.b32.xlu0 %v567, 64
    %v610 = vpop.permute.xlu0 %609
    %v612 = vsel %vm393, %v606, %v610
    %v614 = vsel %vm62, %v612, 0
    %616 = vmatprep.subr.mxu0 %v217
    %617 = vmatpush1.msra.mxu0 %v216
    %618 = vmatprep.subr.mxu0 %v219
    %619 = vmatpush1.msra.mxu0 %v218
    %620 = vmatprep.subr.mxu0 %v221
    %621 = vmatpush1.msra.mxu0 %v220
    %622 = vmatprep.subr.mxu0 %v223
    %623 = vmatpush1.msra.mxu0 %v222
    %624 = vmatprep.subr.mxu0 %v225
    %625 = vmatpush1.msra.mxu0 %v224
    %626 = vmatprep.subr.mxu0 %v227
    %627 = vmatpush1.msra.mxu0 %v226
    %628 = vmatprep.subr.mxu0 %v229
    %629 = vmatpush1.msra.mxu0 %v228
    %630 = vmatprep.subr.mxu0 %v231
    %631 = vmatpush1.msra.mxu0 %v230
    %632 = vmatprep.subr.mxu0 0.0
    %633 = vmatpush1.msra.mxu0 0.0
    %634 = vmatprep.subr.mxu0 0.0
    %635 = vmatpush1.msra.mxu0 0.0
    %636 = vmatprep.subr.mxu0 0.0
    %637 = vmatpush1.msra.mxu0 0.0
    %638 = vmatprep.subr.mxu0 0.0
    %639 = vmatpush1.msra.mxu0 0.0
    %640 = vmatprep.subr.mxu0 0.0
    %641 = vmatpush1.msra.mxu0 0.0
    %642 = vmatprep.subr.mxu0 0.0
    %643 = vmatpush1.msra.mxu0 0.0
    %644 = vmatprep.subr.mxu0 0.0
    %645 = vmatpush1.msra.mxu0 0.0
    %646 = vmatprep.subr.mxu0 0.0
    %647 = vmatpush1.msra.mxu0 0.0
    %648 = vmatprep.subr.mxu0 0.0
    %649 = vmatpush1.msra.mxu0 0.0
    %650 = vmatprep.subr.mxu0 0.0
    %651 = vmatpush1.msra.mxu0 0.0
    %652 = vmatprep.subr.mxu0 0.0
    %653 = vmatpush1.msra.mxu0 0.0
    %654 = vmatprep.subr.mxu0 0.0
    %655 = vmatpush1.msra.mxu0 0.0
    %656 = vmatprep.subr.mxu0 0.0
    %657 = vmatpush1.msra.mxu0 0.0
    %658 = vmatprep.subr.mxu0 0.0
    %659 = vmatpush1.msra.mxu0 0.0
    %660 = vmatprep.subr.mxu0 0.0
    %661 = vmatpush1.msra.mxu0 0.0
    %662 = vmatprep.subr.mxu0 0.0
    %663 = vmatpush1.msra.mxu0 0.0
    %664 = vmatprep.subr.mxu0 0.0
    %665 = vmatpush1.msra.mxu0 0.0
    %666 = vmatprep.subr.mxu0 0.0
    %667 = vmatpush1.msra.mxu0 0.0
    %668 = vmatprep.subr.mxu0 0.0
    %669 = vmatpush1.msra.mxu0 0.0
    %670 = vmatprep.subr.mxu0 0.0
    %671 = vmatpush1.msra.mxu0 0.0
    %672 = vmatprep.subr.mxu0 0.0
    %673 = vmatpush1.msra.mxu0 0.0
    %674 = vmatprep.subr.mxu0 0.0
    %675 = vmatpush1.msra.mxu0 0.0
    %676 = vmatprep.subr.mxu0 0.0
    %677 = vmatpush1.msra.mxu0 0.0
    %678 = vmatprep.subr.mxu0 0.0
    %679 = vmatpush1.msra.mxu0 0.0
    %680 = vmatprep.mubr.f32.mxu0 0.0
    %681 = vmatmul.mubr.f32.gmra.mrb[0].mxu0 %v614
    %v682 = vpop.f32.mrb[0].mxu0
    %v683 = vadd.f32 0.0, %v682
    %v684 = vpop.f32.mrb[0].mxu0
    %v685 = vadd.f32 0.0, %v684
    %686 = vdwg.mxu0
    %v687 = vadd.f32 %v595, %v683
    %v688 = vadd.f32 %v599, %v685
    %v689 = vxor.u32 %v687, 2147483648
    %v690 = vmul.f32 %v689, 1.442695
    %v691 = vpow.pop %v690
    %v692 = vadd.f32 %v691, 1.0
    %v693 = vrcp.pop %v692
    %v694 = vmul.f32 1.0, %v693
    %v695 = vtanh.pop %v687
    %v696 = vmul.f32 %v694, %v534
    %698 = vrot.lane.b32.xlu0 %v695, 64
    %v699 = vpop.permute.xlu0 %698
    %v701 = vmul.f32 %v694, %v699
    %703 = vrot.lane.b32.xlu0 %v701, 32
    %v704 = vpop.permute.xlu0 %703
    %v706 = vadd.f32 %v696, %v704
    %v707 = vtanh.pop %v706
    %709 = vrot.lane.b32.xlu0 %v707, 64
    %v710 = vpop.permute.xlu0 %709
    %v712 = vmul.f32 %v694, %v710
    %vm713 = vcmp.gt.f32.partialorder %v601, 0.5
    %v714 = vsel %vm713, 1, 0
    %715 = vset.pattern.permute.xlu0 0
    %716 = vperm.xlu0 %715, %v714
    %v717 = vpop.permute.xlu0 %716
    %vm718 = vcmp.eq.s32.totalorder %v717, 1
    %v719 = vsel %vm718, %v706, %v534
    %v720 = vsel %vm718, %v712, %v535
    %v721 = vxor.u32 %v688, 2147483648
    %v722 = vmul.f32 %v721, 1.442695
    %v723 = vpow.pop %v722
    %v724 = vadd.f32 %v723, 1.0
    %v725 = vrcp.pop %v724
    %v726 = vmul.f32 1.0, %v725
    %v727 = vtanh.pop %v688
    %v728 = vmul.f32 %v726, %v566
    %730 = vrot.lane.b32.xlu0 %v727, 64
    %v731 = vpop.permute.xlu0 %730
    %v733 = vmul.f32 %v726, %v731
    %735 = vrot.lane.b32.xlu0 %v733, 32
    %v736 = vpop.permute.xlu0 %735
    %v738 = vadd.f32 %v728, %v736
    %v739 = vtanh.pop %v738
    %741 = vrot.lane.b32.xlu0 %v739, 64
    %v742 = vpop.permute.xlu0 %741
    %v744 = vmul.f32 %v726, %v742
    %vm745 = vcmp.gt.f32.partialorder %v603, 0.5
    %v746 = vsel %vm745, 1, 0
    %747 = vset.pattern.permute.xlu0 0
    %748 = vperm.xlu0 %747, %v746
    %v749 = vpop.permute.xlu0 %748
    %vm750 = vcmp.eq.s32.totalorder %v749, 1
    %v751 = vsel %vm750, %v738, %v566
    %v752 = vsel %vm750, %v744, %v567
    %754 = vset.pattern.permute.xlu0 0
    %755 = vperm.xlu0 %754, %v601
    %v756 = vpop.permute.xlu0 %755
    %v758 = vmul.f32 %v720, %v756
    %760 = vrot.lane.b32.xlu0 %v758, 32
    %v761 = vpop.permute.xlu0 %760
    %s763 = scalar_lea.vmem [#allocation3], 16
    %764 = vst.msk [vmem:[%s763] sm:$0xff] %vm393, %v761
    %766 = vset.pattern.permute.xlu0 0
    %767 = vperm.xlu0 %766, %v603
    %v768 = vpop.permute.xlu0 %767
    %v770 = vmul.f32 %v752, %v768
    %772 = vrot.lane.b32.xlu0 %v770, 32
    %v773 = vpop.permute.xlu0 %772
    %s775 = scalar_lea.vmem [#allocation5], 40
    %776 = vst.msk [vmem:[%s775] sm:$0xff] %vm393, %v773
    %s777 = smul.u32 3, 2
    %s778 = smul.addr %s777, 8
    %s779 = scalar_lea.vmem [#allocation2], %s778
    %v780 = vld [vmem:[%s779] sm:$0xff]
    %s781 = smul.u32 4, 2
    %s782 = smul.addr %s781, 8
    %s783 = scalar_lea.vmem [#allocation2], %s782
    %v784 = vld [vmem:[%s783 + $0x8] sm:$0xff]
    %s785 = scalar_lea.vmem %s1, 24
    %v786 = vld [vmem:[%s785] sm:$0xff]
    %s787 = scalar_lea.vmem %s1, 32
    %v788 = vld [vmem:[%s787] sm:$0xff]
    %790 = vrot.lane.b32.xlu0 %v720, 32
    %v791 = vpop.permute.xlu0 %790
    %794 = vrot.lane.b32.xlu0 %v752, 64
    %v795 = vpop.permute.xlu0 %794
    %v797 = vsel %vm393, %v791, %v795
    %v799 = vsel %vm62, %v797, 0
    %801 = vmatprep.subr.mxu0 %v217
    %802 = vmatpush1.msra.mxu0 %v216
    %803 = vmatprep.subr.mxu0 %v219
    %804 = vmatpush1.msra.mxu0 %v218
    %805 = vmatprep.subr.mxu0 %v221
    %806 = vmatpush1.msra.mxu0 %v220
    %807 = vmatprep.subr.mxu0 %v223
    %808 = vmatpush1.msra.mxu0 %v222
    %809 = vmatprep.subr.mxu0 %v225
    %810 = vmatpush1.msra.mxu0 %v224
    %811 = vmatprep.subr.mxu0 %v227
    %812 = vmatpush1.msra.mxu0 %v226
    %813 = vmatprep.subr.mxu0 %v229
    %814 = vmatpush1.msra.mxu0 %v228
    %815 = vmatprep.subr.mxu0 %v231
    %816 = vmatpush1.msra.mxu0 %v230
    %817 = vmatprep.subr.mxu0 0.0
    %818 = vmatpush1.msra.mxu0 0.0
    %819 = vmatprep.subr.mxu0 0.0
    %820 = vmatpush1.msra.mxu0 0.0
    %821 = vmatprep.subr.mxu0 0.0
    %822 = vmatpush1.msra.mxu0 0.0
    %823 = vmatprep.subr.mxu0 0.0
    %824 = vmatpush1.msra.mxu0 0.0
    %825 = vmatprep.subr.mxu0 0.0
    %826 = vmatpush1.msra.mxu0 0.0
    %827 = vmatprep.subr.mxu0 0.0
    %828 = vmatpush1.msra.mxu0 0.0
    %829 = vmatprep.subr.mxu0 0.0
    %830 = vmatpush1.msra.mxu0 0.0
    %831 = vmatprep.subr.mxu0 0.0
    %832 = vmatpush1.msra.mxu0 0.0
    %833 = vmatprep.subr.mxu0 0.0
    %834 = vmatpush1.msra.mxu0 0.0
    %835 = vmatprep.subr.mxu0 0.0
    %836 = vmatpush1.msra.mxu0 0.0
    %837 = vmatprep.subr.mxu0 0.0
    %838 = vmatpush1.msra.mxu0 0.0
    %839 = vmatprep.subr.mxu0 0.0
    %840 = vmatpush1.msra.mxu0 0.0
    %841 = vmatprep.subr.mxu0 0.0
    %842 = vmatpush1.msra.mxu0 0.0
    %843 = vmatprep.subr.mxu0 0.0
    %844 = vmatpush1.msra.mxu0 0.0
    %845 = vmatprep.subr.mxu0 0.0
    %846 = vmatpush1.msra.mxu0 0.0
    %847 = vmatprep.subr.mxu0 0.0
    %848 = vmatpush1.msra.mxu0 0.0
    %849 = vmatprep.subr.mxu0 0.0
    %850 = vmatpush1.msra.mxu0 0.0
    %851 = vmatprep.subr.mxu0 0.0
    %852 = vmatpush1.msra.mxu0 0.0
    %853 = vmatprep.subr.mxu0 0.0
    %854 = vmatpush1.msra.mxu0 0.0
    %855 = vmatprep.subr.mxu0 0.0
    %856 = vmatpush1.msra.mxu0 0.0
    %857 = vmatprep.subr.mxu0 0.0
    %858 = vmatpush1.msra.mxu0 0.0
    %859 = vmatprep.subr.mxu0 0.0
    %860 = vmatpush1.msra.mxu0 0.0
    %861 = vmatprep.subr.mxu0 0.0
    %862 = vmatpush1.msra.mxu0 0.0
    %863 = vmatprep.subr.mxu0 0.0
    %864 = vmatpush1.msra.mxu0 0.0
    %865 = vmatprep.mubr.f32.mxu0 0.0
    %866 = vmatmul.mubr.f32.gmra.mrb[0].mxu0 %v799
    %v867 = vpop.f32.mrb[0].mxu0
    %v868 = vadd.f32 0.0, %v867
    %v869 = vpop.f32.mrb[0].mxu0
    %v870 = vadd.f32 0.0, %v869
    %871 = vdwg.mxu0
    %v872 = vadd.f32 %v780, %v868
    %v873 = vadd.f32 %v784, %v870
    %v874 = vxor.u32 %v872, 2147483648
    %v875 = vmul.f32 %v874, 1.442695
    %v876 = vpow.pop %v875
    %v877 = vadd.f32 %v876, 1.0
    %v878 = vrcp.pop %v877
    %v879 = vmul.f32 1.0, %v878
    %v880 = vtanh.pop %v872
    %v881 = vmul.f32 %v879, %v719
    %883 = vrot.lane.b32.xlu0 %v880, 64
    %v884 = vpop.permute.xlu0 %883
    %v886 = vmul.f32 %v879, %v884
    %888 = vrot.lane.b32.xlu0 %v886, 32
    %v889 = vpop.permute.xlu0 %888
    %v891 = vadd.f32 %v881, %v889
    %v892 = vtanh.pop %v891
    %894 = vrot.lane.b32.xlu0 %v892, 64
    %v895 = vpop.permute.xlu0 %894
    %v897 = vmul.f32 %v879, %v895
    %vm898 = vcmp.gt.f32.partialorder %v786, 0.5
    %v899 = vsel %vm898, 1, 0
    %900 = vset.pattern.permute.xlu0 0
    %901 = vperm.xlu0 %900, %v899
    %v902 = vpop.permute.xlu0 %901
    %vm903 = vcmp.eq.s32.totalorder %v902, 1
    %v904 = vsel %vm903, %v891, %v719
    %v905 = vsel %vm903, %v897, %v720
    %v906 = vxor.u32 %v873, 2147483648
    %v907 = vmul.f32 %v906, 1.442695
    %v908 = vpow.pop %v907
    %v909 = vadd.f32 %v908, 1.0
    %v910 = vrcp.pop %v909
    %v911 = vmul.f32 1.0, %v910
    %v912 = vtanh.pop %v873
    %v913 = vmul.f32 %v911, %v751
    %915 = vrot.lane.b32.xlu0 %v912, 64
    %v916 = vpop.permute.xlu0 %915
    %v918 = vmul.f32 %v911, %v916
    %920 = vrot.lane.b32.xlu0 %v918, 32
    %v921 = vpop.permute.xlu0 %920
    %v923 = vadd.f32 %v913, %v921
    %v924 = vtanh.pop %v923
    %926 = vrot.lane.b32.xlu0 %v924, 64
    %v927 = vpop.permute.xlu0 %926
    %v929 = vmul.f32 %v911, %v927
    %vm930 = vcmp.gt.f32.partialorder %v788, 0.5
    %v931 = vsel %vm930, 1, 0
    %932 = vset.pattern.permute.xlu0 0
    %933 = vperm.xlu0 %932, %v931
    %v934 = vpop.permute.xlu0 %933
    %vm935 = vcmp.eq.s32.totalorder %v934, 1
    %v936 = vsel %vm935, %v923, %v751
    %v937 = vsel %vm935, %v929, %v752
    %939 = vset.pattern.permute.xlu0 0
    %940 = vperm.xlu0 %939, %v786
    %v941 = vpop.permute.xlu0 %940
    %v943 = vmul.f32 %v905, %v941
    %945 = vrot.lane.b32.xlu0 %v943, 32
    %v946 = vpop.permute.xlu0 %945
    %s948 = scalar_lea.vmem [#allocation3], 24
    %949 = vst.msk [vmem:[%s948] sm:$0xff] %vm393, %v946
    %951 = vset.pattern.permute.xlu0 0
    %952 = vperm.xlu0 %951, %v788
    %v953 = vpop.permute.xlu0 %952
    %v955 = vmul.f32 %v937, %v953
    %957 = vrot.lane.b32.xlu0 %v955, 32
    %v958 = vpop.permute.xlu0 %957
    %s960 = scalar_lea.vmem [#allocation5], 32
    %961 = vst.msk [vmem:[%s960] sm:$0xff] %vm393, %v958
    %v962 = vld [vmem:[%s783] sm:$0xff]
    %v963 = vld [vmem:[%s779 + $0x8] sm:$0xff]
    %v964 = vld [vmem:[%s787] sm:$0xff]
    %v965 = vld [vmem:[%s785] sm:$0xff]
    %967 = vrot.lane.b32.xlu0 %v905, 32
    %v968 = vpop.permute.xlu0 %967
    %971 = vrot.lane.b32.xlu0 %v937, 64
    %v972 = vpop.permute.xlu0 %971
    %v974 = vsel %vm393, %v968, %v972
    %v976 = vsel %vm62, %v974, 0
    %978 = vmatprep.subr.mxu0 %v217
    %979 = vmatpush1.msra.mxu0 %v216
    %980 = vmatprep.subr.mxu0 %v219
    %981 = vmatpush1.msra.mxu0 %v218
    %982 = vmatprep.subr.mxu0 %v221
    %983 = vmatpush1.msra.mxu0 %v220
    %984 = vmatprep.subr.mxu0 %v223
    %985 = vmatpush1.msra.mxu0 %v222
    %986 = vmatprep.subr.mxu0 %v225
    %987 = vmatpush1.msra.mxu0 %v224
    %988 = vmatprep.subr.mxu0 %v227
    %989 = vmatpush1.msra.mxu0 %v226
    %990 = vmatprep.subr.mxu0 %v229
    %991 = vmatpush1.msra.mxu0 %v228
    %992 = vmatprep.subr.mxu0 %v231
    %993 = vmatpush1.msra.mxu0 %v230
    %994 = vmatprep.subr.mxu0 0.0
    %995 = vmatpush1.msra.mxu0 0.0
    %996 = vmatprep.subr.mxu0 0.0
    %997 = vmatpush1.msra.mxu0 0.0
    %998 = vmatprep.subr.mxu0 0.0
    %999 = vmatpush1.msra.mxu0 0.0
    %1000 = vmatprep.subr.mxu0 0.0
    %1001 = vmatpush1.msra.mxu0 0.0
    %1002 = vmatprep.subr.mxu0 0.0
    %1003 = vmatpush1.msra.mxu0 0.0
    %1004 = vmatprep.subr.mxu0 0.0
    %1005 = vmatpush1.msra.mxu0 0.0
    %1006 = vmatprep.subr.mxu0 0.0
    %1007 = vmatpush1.msra.mxu0 0.0
    %1008 = vmatprep.subr.mxu0 0.0
    %1009 = vmatpush1.msra.mxu0 0.0
    %1010 = vmatprep.subr.mxu0 0.0
    %1011 = vmatpush1.msra.mxu0 0.0
    %1012 = vmatprep.subr.mxu0 0.0
    %1013 = vmatpush1.msra.mxu0 0.0
    %1014 = vmatprep.subr.mxu0 0.0
    %1015 = vmatpush1.msra.mxu0 0.0
    %1016 = vmatprep.subr.mxu0 0.0
    %1017 = vmatpush1.msra.mxu0 0.0
    %1018 = vmatprep.subr.mxu0 0.0
    %1019 = vmatpush1.msra.mxu0 0.0
    %1020 = vmatprep.subr.mxu0 0.0
    %1021 = vmatpush1.msra.mxu0 0.0
    %1022 = vmatprep.subr.mxu0 0.0
    %1023 = vmatpush1.msra.mxu0 0.0
    %1024 = vmatprep.subr.mxu0 0.0
    %1025 = vmatpush1.msra.mxu0 0.0
    %1026 = vmatprep.subr.mxu0 0.0
    %1027 = vmatpush1.msra.mxu0 0.0
    %1028 = vmatprep.subr.mxu0 0.0
    %1029 = vmatpush1.msra.mxu0 0.0
    %1030 = vmatprep.subr.mxu0 0.0
    %1031 = vmatpush1.msra.mxu0 0.0
    %1032 = vmatprep.subr.mxu0 0.0
    %1033 = vmatpush1.msra.mxu0 0.0
    %1034 = vmatprep.subr.mxu0 0.0
    %1035 = vmatpush1.msra.mxu0 0.0
    %1036 = vmatprep.subr.mxu0 0.0
    %1037 = vmatpush1.msra.mxu0 0.0
    %1038 = vmatprep.subr.mxu0 0.0
    %1039 = vmatpush1.msra.mxu0 0.0
    %1040 = vmatprep.subr.mxu0 0.0
    %1041 = vmatpush1.msra.mxu0 0.0
    %1042 = vmatprep.mubr.f32.mxu0 0.0
    %1043 = vmatmul.mubr.f32.gmra.mrb[0].mxu0 %v976
    %v1044 = vpop.f32.mrb[0].mxu0
    %v1045 = vadd.f32 0.0, %v1044
    %v1046 = vpop.f32.mrb[0].mxu0
    %v1047 = vadd.f32 0.0, %v1046
    %1048 = vdwg.mxu0
    %v1049 = vadd.f32 %v962, %v1045
    %v1050 = vadd.f32 %v963, %v1047
    %v1051 = vxor.u32 %v1049, 2147483648
    %v1052 = vmul.f32 %v1051, 1.442695
    %v1053 = vpow.pop %v1052
    %v1054 = vadd.f32 %v1053, 1.0
    %v1055 = vrcp.pop %v1054
    %v1056 = vmul.f32 1.0, %v1055
    %v1057 = vtanh.pop %v1049
    %v1058 = vmul.f32 %v1056, %v904
    %1060 = vrot.lane.b32.xlu0 %v1057, 64
    %v1061 = vpop.permute.xlu0 %1060
    %v1063 = vmul.f32 %v1056, %v1061
    %1065 = vrot.lane.b32.xlu0 %v1063, 32
    %v1066 = vpop.permute.xlu0 %1065
    %v1068 = vadd.f32 %v1058, %v1066
    %v1069 = vtanh.pop %v1068
    %1071 = vrot.lane.b32.xlu0 %v1069, 64
    %v1072 = vpop.permute.xlu0 %1071
    %v1074 = vmul.f32 %v1056, %v1072
    %vm1075 = vcmp.gt.f32.partialorder %v964, 0.5
    %v1076 = vsel %vm1075, 1, 0
    %1077 = vset.pattern.permute.xlu0 0
    %1078 = vperm.xlu0 %1077, %v1076
    %v1079 = vpop.permute.xlu0 %1078
    %vm1080 = vcmp.eq.s32.totalorder %v1079, 1
    %v1081 = vsel %vm1080, %v1068, %v904
    %v1082 = vsel %vm1080, %v1074, %v905
    %v1083 = vxor.u32 %v1050, 2147483648
    %v1084 = vmul.f32 %v1083, 1.442695
    %v1085 = vpow.pop %v1084
    %v1086 = vadd.f32 %v1085, 1.0
    %v1087 = vrcp.pop %v1086
    %v1088 = vmul.f32 1.0, %v1087
    %v1089 = vtanh.pop %v1050
    %v1090 = vmul.f32 %v1088, %v936
    %1092 = vrot.lane.b32.xlu0 %v1089, 64
    %v1093 = vpop.permute.xlu0 %1092
    %v1095 = vmul.f32 %v1088, %v1093
    %1097 = vrot.lane.b32.xlu0 %v1095, 32
    %v1098 = vpop.permute.xlu0 %1097
    %v1100 = vadd.f32 %v1090, %v1098
    %v1101 = vtanh.pop %v1100
    %1103 = vrot.lane.b32.xlu0 %v1101, 64
    %v1104 = vpop.permute.xlu0 %1103
    %v1106 = vmul.f32 %v1088, %v1104
    %vm1107 = vcmp.gt.f32.partialorder %v965, 0.5
    %v1108 = vsel %vm1107, 1, 0
    %1109 = vset.pattern.permute.xlu0 0
    %1110 = vperm.xlu0 %1109, %v1108
    %v1111 = vpop.permute.xlu0 %1110
    %vm1112 = vcmp.eq.s32.totalorder %v1111, 1
    %v1113 = vsel %vm1112, %v1100, %v936
    %v1114 = vsel %vm1112, %v1106, %v937
    %1116 = vset.pattern.permute.xlu0 0
    %1117 = vperm.xlu0 %1116, %v964
    %v1118 = vpop.permute.xlu0 %1117
    %v1120 = vmul.f32 %v1082, %v1118
    %1122 = vrot.lane.b32.xlu0 %v1120, 32
    %v1123 = vpop.permute.xlu0 %1122
    %s1125 = scalar_lea.vmem [#allocation3], 32
    %1126 = vst.msk [vmem:[%s1125] sm:$0xff] %vm393, %v1123
    %1128 = vset.pattern.permute.xlu0 0
    %1129 = vperm.xlu0 %1128, %v965
    %v1130 = vpop.permute.xlu0 %1129
    %v1132 = vmul.f32 %v1114, %v1130
    %1134 = vrot.lane.b32.xlu0 %v1132, 32
    %v1135 = vpop.permute.xlu0 %1134
    %s1137 = scalar_lea.vmem [#allocation5], 24
    %1138 = vst.msk [vmem:[%s1137] sm:$0xff] %vm393, %v1135
    %v1139 = vld [vmem:[%s598] sm:$0xff]
    %v1140 = vld [vmem:[%s594 + $0x8] sm:$0xff]
    %v1141 = vld [vmem:[%s602] sm:$0xff]
    %v1142 = vld [vmem:[%s600] sm:$0xff]
    %1144 = vrot.lane.b32.xlu0 %v1082, 32
    %v1145 = vpop.permute.xlu0 %1144
    %1148 = vrot.lane.b32.xlu0 %v1114, 64
    %v1149 = vpop.permute.xlu0 %1148
    %v1151 = vsel %vm393, %v1145, %v1149
    %v1153 = vsel %vm62, %v1151, 0
    %1155 = vmatprep.subr.mxu0 %v217
    %1156 = vmatpush1.msra.mxu0 %v216
    %1157 = vmatprep.subr.mxu0 %v219
    %1158 = vmatpush1.msra.mxu0 %v218
    %1159 = vmatprep.subr.mxu0 %v221
    %1160 = vmatpush1.msra.mxu0 %v220
    %1161 = vmatprep.subr.mxu0 %v223
    %1162 = vmatpush1.msra.mxu0 %v222
    %1163 = vmatprep.subr.mxu0 %v225
    %1164 = vmatpush1.msra.mxu0 %v224
    %1165 = vmatprep.subr.mxu0 %v227
    %1166 = vmatpush1.msra.mxu0 %v226
    %1167 = vmatprep.subr.mxu0 %v229
    %1168 = vmatpush1.msra.mxu0 %v228
    %1169 = vmatprep.subr.mxu0 %v231
    %1170 = vmatpush1.msra.mxu0 %v230
    %1171 = vmatprep.subr.mxu0 0.0
    %1172 = vmatpush1.msra.mxu0 0.0
    %1173 = vmatprep.subr.mxu0 0.0
    %1174 = vmatpush1.msra.mxu0 0.0
    %1175 = vmatprep.subr.mxu0 0.0
    %1176 = vmatpush1.msra.mxu0 0.0
    %1177 = vmatprep.subr.mxu0 0.0
    %1178 = vmatpush1.msra.mxu0 0.0
    %1179 = vmatprep.subr.mxu0 0.0
    %1180 = vmatpush1.msra.mxu0 0.0
    %1181 = vmatprep.subr.mxu0 0.0
    %1182 = vmatpush1.msra.mxu0 0.0
    %1183 = vmatprep.subr.mxu0 0.0
    %1184 = vmatpush1.msra.mxu0 0.0
    %1185 = vmatprep.subr.mxu0 0.0
    %1186 = vmatpush1.msra.mxu0 0.0
    %1187 = vmatprep.subr.mxu0 0.0
    %1188 = vmatpush1.msra.mxu0 0.0
    %1189 = vmatprep.subr.mxu0 0.0
    %1190 = vmatpush1.msra.mxu0 0.0
    %1191 = vmatprep.subr.mxu0 0.0
    %1192 = vmatpush1.msra.mxu0 0.0
    %1193 = vmatprep.subr.mxu0 0.0
    %1194 = vmatpush1.msra.mxu0 0.0
    %1195 = vmatprep.subr.mxu0 0.0
    %1196 = vmatpush1.msra.mxu0 0.0
    %1197 = vmatprep.subr.mxu0 0.0
    %1198 = vmatpush1.msra.mxu0 0.0
    %1199 = vmatprep.subr.mxu0 0.0
    %1200 = vmatpush1.msra.mxu0 0.0
    %1201 = vmatprep.subr.mxu0 0.0
    %1202 = vmatpush1.msra.mxu0 0.0
    %1203 = vmatprep.subr.mxu0 0.0
    %1204 = vmatpush1.msra.mxu0 0.0
    %1205 = vmatprep.subr.mxu0 0.0
    %1206 = vmatpush1.msra.mxu0 0.0
    %1207 = vmatprep.subr.mxu0 0.0
    %1208 = vmatpush1.msra.mxu0 0.0
    %1209 = vmatprep.subr.mxu0 0.0
    %1210 = vmatpush1.msra.mxu0 0.0
    %1211 = vmatprep.subr.mxu0 0.0
    %1212 = vmatpush1.msra.mxu0 0.0
    %1213 = vmatprep.subr.mxu0 0.0
    %1214 = vmatpush1.msra.mxu0 0.0
    %1215 = vmatprep.subr.mxu0 0.0
    %1216 = vmatpush1.msra.mxu0 0.0
    %1217 = vmatprep.subr.mxu0 0.0
    %1218 = vmatpush1.msra.mxu0 0.0
    %1219 = vmatprep.mubr.f32.mxu0 0.0
    %1220 = vmatmul.mubr.f32.gmra.mrb[0].mxu0 %v1153
    %v1221 = vpop.f32.mrb[0].mxu0
    %v1222 = vadd.f32 0.0, %v1221
    %v1223 = vpop.f32.mrb[0].mxu0
    %v1224 = vadd.f32 0.0, %v1223
    %1225 = vdwg.mxu0
    %v1226 = vadd.f32 %v1139, %v1222
    %v1227 = vadd.f32 %v1140, %v1224
    %v1228 = vxor.u32 %v1226, 2147483648
    %v1229 = vmul.f32 %v1228, 1.442695
    %v1230 = vpow.pop %v1229
    %v1231 = vadd.f32 %v1230, 1.0
    %v1232 = vrcp.pop %v1231
    %v1233 = vmul.f32 1.0, %v1232
    %v1234 = vtanh.pop %v1226
    %v1235 = vmul.f32 %v1233, %v1081
    %1237 = vrot.lane.b32.xlu0 %v1234, 64
    %v1238 = vpop.permute.xlu0 %1237
    %v1240 = vmul.f32 %v1233, %v1238
    %1242 = vrot.lane.b32.xlu0 %v1240, 32
    %v1243 = vpop.permute.xlu0 %1242
    %v1245 = vadd.f32 %v1235, %v1243
    %v1246 = vtanh.pop %v1245
    %1248 = vrot.lane.b32.xlu0 %v1246, 64
    %v1249 = vpop.permute.xlu0 %1248
    %v1251 = vmul.f32 %v1233, %v1249
    %vm1252 = vcmp.gt.f32.partialorder %v1141, 0.5
    %v1253 = vsel %vm1252, 1, 0
    %1254 = vset.pattern.permute.xlu0 0
    %1255 = vperm.xlu0 %1254, %v1253
    %v1256 = vpop.permute.xlu0 %1255
    %vm1257 = vcmp.eq.s32.totalorder %v1256, 1
    %v1258 = vsel %vm1257, %v1245, %v1081
    %v1259 = vsel %vm1257, %v1251, %v1082
    %v1260 = vxor.u32 %v1227, 2147483648
    %v1261 = vmul.f32 %v1260, 1.442695
    %v1262 = vpow.pop %v1261
    %v1263 = vadd.f32 %v1262, 1.0
    %v1264 = vrcp.pop %v1263
    %v1265 = vmul.f32 1.0, %v1264
    %v1266 = vtanh.pop %v1227
    %v1267 = vmul.f32 %v1265, %v1113
    %1269 = vrot.lane.b32.xlu0 %v1266, 64
    %v1270 = vpop.permute.xlu0 %1269
    %v1272 = vmul.f32 %v1265, %v1270
    %1274 = vrot.lane.b32.xlu0 %v1272, 32
    %v1275 = vpop.permute.xlu0 %1274
    %v1277 = vadd.f32 %v1267, %v1275
    %v1278 = vtanh.pop %v1277
    %1280 = vrot.lane.b32.xlu0 %v1278, 64
    %v1281 = vpop.permute.xlu0 %1280
    %v1283 = vmul.f32 %v1265, %v1281
    %vm1284 = vcmp.gt.f32.partialorder %v1142, 0.5
    %v1285 = vsel %vm1284, 1, 0
    %1286 = vset.pattern.permute.xlu0 0
    %1287 = vperm.xlu0 %1286, %v1285
    %v1288 = vpop.permute.xlu0 %1287
    %vm1289 = vcmp.eq.s32.totalorder %v1288, 1
    %v1290 = vsel %vm1289, %v1277, %v1113
    %v1291 = vsel %vm1289, %v1283, %v1114
    %1293 = vset.pattern.permute.xlu0 0
    %1294 = vperm.xlu0 %1293, %v1141
    %v1295 = vpop.permute.xlu0 %1294
    %v1297 = vmul.f32 %v1259, %v1295
    %1299 = vrot.lane.b32.xlu0 %v1297, 32
    %v1300 = vpop.permute.xlu0 %1299
    %s1302 = scalar_lea.vmem [#allocation3], 40
    %1303 = vst.msk [vmem:[%s1302] sm:$0xff] %vm393, %v1300
    %1305 = vset.pattern.permute.xlu0 0
    %1306 = vperm.xlu0 %1305, %v1142
    %v1307 = vpop.permute.xlu0 %1306
    %v1309 = vmul.f32 %v1291, %v1307
    %1311 = vrot.lane.b32.xlu0 %v1309, 32
    %v1312 = vpop.permute.xlu0 %1311
    %s1314 = scalar_lea.vmem [#allocation5], 16
    %1315 = vst.msk [vmem:[%s1314] sm:$0xff] %vm393, %v1312
    %v1316 = vld [vmem:[%s413] sm:$0xff]
    %v1317 = vld [vmem:[%s409 + $0x8] sm:$0xff]
    %v1318 = vld [vmem:[%s417] sm:$0xff]
    %v1319 = vld [vmem:[%s415] sm:$0xff]
    %1321 = vrot.lane.b32.xlu0 %v1259, 32
    %v1322 = vpop.permute.xlu0 %1321
    %1325 = vrot.lane.b32.xlu0 %v1291, 64
    %v1326 = vpop.permute.xlu0 %1325
    %v1328 = vsel %vm393, %v1322, %v1326
    %v1330 = vsel %vm62, %v1328, 0
    %1332 = vmatprep.subr.mxu0 %v217
    %1333 = vmatpush1.msra.mxu0 %v216
    %1334 = vmatprep.subr.mxu0 %v219
    %1335 = vmatpush1.msra.mxu0 %v218
    %1336 = vmatprep.subr.mxu0 %v221
    %1337 = vmatpush1.msra.mxu0 %v220
    %1338 = vmatprep.subr.mxu0 %v223
    %1339 = vmatpush1.msra.mxu0 %v222
    %1340 = vmatprep.subr.mxu0 %v225
    %1341 = vmatpush1.msra.mxu0 %v224
    %1342 = vmatprep.subr.mxu0 %v227
    %1343 = vmatpush1.msra.mxu0 %v226
    %1344 = vmatprep.subr.mxu0 %v229
    %1345 = vmatpush1.msra.mxu0 %v228
    %1346 = vmatprep.subr.mxu0 %v231
    %1347 = vmatpush1.msra.mxu0 %v230
    %1348 = vmatprep.subr.mxu0 0.0
    %1349 = vmatpush1.msra.mxu0 0.0
    %1350 = vmatprep.subr.mxu0 0.0
    %1351 = vmatpush1.msra.mxu0 0.0
    %1352 = vmatprep.subr.mxu0 0.0
    %1353 = vmatpush1.msra.mxu0 0.0
    %1354 = vmatprep.subr.mxu0 0.0
    %1355 = vmatpush1.msra.mxu0 0.0
    %1356 = vmatprep.subr.mxu0 0.0
    %1357 = vmatpush1.msra.mxu0 0.0
    %1358 = vmatprep.subr.mxu0 0.0
    %1359 = vmatpush1.msra.mxu0 0.0
    %1360 = vmatprep.subr.mxu0 0.0
    %1361 = vmatpush1.msra.mxu0 0.0
    %1362 = vmatprep.subr.mxu0 0.0
    %1363 = vmatpush1.msra.mxu0 0.0
    %1364 = vmatprep.subr.mxu0 0.0
    %1365 = vmatpush1.msra.mxu0 0.0
    %1366 = vmatprep.subr.mxu0 0.0
    %1367 = vmatpush1.msra.mxu0 0.0
    %1368 = vmatprep.subr.mxu0 0.0
    %1369 = vmatpush1.msra.mxu0 0.0
    %1370 = vmatprep.subr.mxu0 0.0
    %1371 = vmatpush1.msra.mxu0 0.0
    %1372 = vmatprep.subr.mxu0 0.0
    %1373 = vmatpush1.msra.mxu0 0.0
    %1374 = vmatprep.subr.mxu0 0.0
    %1375 = vmatpush1.msra.mxu0 0.0
    %1376 = vmatprep.subr.mxu0 0.0
    %1377 = vmatpush1.msra.mxu0 0.0
    %1378 = vmatprep.subr.mxu0 0.0
    %1379 = vmatpush1.msra.mxu0 0.0
    %1380 = vmatprep.subr.mxu0 0.0
    %1381 = vmatpush1.msra.mxu0 0.0
    %1382 = vmatprep.subr.mxu0 0.0
    %1383 = vmatpush1.msra.mxu0 0.0
    %1384 = vmatprep.subr.mxu0 0.0
    %1385 = vmatpush1.msra.mxu0 0.0
    %1386 = vmatprep.subr.mxu0 0.0
    %1387 = vmatpush1.msra.mxu0 0.0
    %1388 = vmatprep.subr.mxu0 0.0
    %1389 = vmatpush1.msra.mxu0 0.0
    %1390 = vmatprep.subr.mxu0 0.0
    %1391 = vmatpush1.msra.mxu0 0.0
    %1392 = vmatprep.subr.mxu0 0.0
    %1393 = vmatpush1.msra.mxu0 0.0
    %1394 = vmatprep.subr.mxu0 0.0
    %1395 = vmatpush1.msra.mxu0 0.0
    %1396 = vmatprep.mubr.f32.mxu0 0.0
    %1397 = vmatmul.mubr.f32.gmra.mrb[0].mxu0 %v1330
    %v1398 = vpop.f32.mrb[0].mxu0
    %v1399 = vadd.f32 0.0, %v1398
    %v1400 = vpop.f32.mrb[0].mxu0
    %v1401 = vadd.f32 0.0, %v1400
    %1402 = vdwg.mxu0
    %v1403 = vadd.f32 %v1316, %v1399
    %v1404 = vadd.f32 %v1317, %v1401
    %v1405 = vxor.u32 %v1403, 2147483648
    %v1406 = vmul.f32 %v1405, 1.442695
    %v1407 = vpow.pop %v1406
    %v1408 = vadd.f32 %v1407, 1.0
    %v1409 = vrcp.pop %v1408
    %v1410 = vmul.f32 1.0, %v1409
    %v1411 = vtanh.pop %v1403
    %v1412 = vmul.f32 %v1410, %v1258
    %1414 = vrot.lane.b32.xlu0 %v1411, 64
    %v1415 = vpop.permute.xlu0 %1414
    %v1417 = vmul.f32 %v1410, %v1415
    %1419 = vrot.lane.b32.xlu0 %v1417, 32
    %v1420 = vpop.permute.xlu0 %1419
    %v1422 = vadd.f32 %v1412, %v1420
    %v1423 = vtanh.pop %v1422
    %1425 = vrot.lane.b32.xlu0 %v1423, 64
    %v1426 = vpop.permute.xlu0 %1425
    %v1428 = vmul.f32 %v1410, %v1426
    %vm1429 = vcmp.gt.f32.partialorder %v1318, 0.5
    %v1430 = vsel %vm1429, 1, 0
    %1431 = vset.pattern.permute.xlu0 0
    %1432 = vperm.xlu0 %1431, %v1430
    %v1433 = vpop.permute.xlu0 %1432
    %vm1434 = vcmp.eq.s32.totalorder %v1433, 1
    %v1435 = vsel %vm1434, %v1422, %v1258
    %v1436 = vsel %vm1434, %v1428, %v1259
    %v1437 = vxor.u32 %v1404, 2147483648
    %v1438 = vmul.f32 %v1437, 1.442695
    %v1439 = vpow.pop %v1438
    %v1440 = vadd.f32 %v1439, 1.0
    %v1441 = vrcp.pop %v1440
    %v1442 = vmul.f32 1.0, %v1441
    %v1443 = vtanh.pop %v1404
    %v1444 = vmul.f32 %v1442, %v1290
    %1446 = vrot.lane.b32.xlu0 %v1443, 64
    %v1447 = vpop.permute.xlu0 %1446
    %v1449 = vmul.f32 %v1442, %v1447
    %1451 = vrot.lane.b32.xlu0 %v1449, 32
    %v1452 = vpop.permute.xlu0 %1451
    %v1454 = vadd.f32 %v1444, %v1452
    %v1455 = vtanh.pop %v1454
    %1457 = vrot.lane.b32.xlu0 %v1455, 64
    %v1458 = vpop.permute.xlu0 %1457
    %v1460 = vmul.f32 %v1442, %v1458
    %vm1461 = vcmp.gt.f32.partialorder %v1319, 0.5
    %v1462 = vsel %vm1461, 1, 0
    %1463 = vset.pattern.permute.xlu0 0
    %1464 = vperm.xlu0 %1463, %v1462
    %v1465 = vpop.permute.xlu0 %1464
    %vm1466 = vcmp.eq.s32.totalorder %v1465, 1
    %v1467 = vsel %vm1466, %v1454, %v1290
    %v1468 = vsel %vm1466, %v1460, %v1291
    %1470 = vset.pattern.permute.xlu0 0
    %1471 = vperm.xlu0 %1470, %v1318
    %v1472 = vpop.permute.xlu0 %1471
    %v1474 = vmul.f32 %v1436, %v1472
    %1476 = vrot.lane.b32.xlu0 %v1474, 32
    %v1477 = vpop.permute.xlu0 %1476
    %s1479 = scalar_lea.vmem [#allocation3], 48
    %1480 = vst.msk [vmem:[%s1479] sm:$0xff] %vm393, %v1477
    %1482 = vset.pattern.permute.xlu0 0
    %1483 = vperm.xlu0 %1482, %v1319
    %v1484 = vpop.permute.xlu0 %1483
    %v1486 = vmul.f32 %v1468, %v1484
    %1488 = vrot.lane.b32.xlu0 %v1486, 32
    %v1489 = vpop.permute.xlu0 %1488
    %s1491 = scalar_lea.vmem [#allocation5], 8
    %1492 = vst.msk [vmem:[%s1491] sm:$0xff] %vm393, %v1489
    %v1493 = vld [vmem:[%s238] sm:$0xff]
    %v1494 = vld [vmem:[%s234 + $0x8] sm:$0xff]
    %v1495 = vld [vmem:[%s241] sm:$0xff]
    %v1496 = vld [vmem:[%s1] sm:$0xff]
    %1498 = vrot.lane.b32.xlu0 %v1436, 32
    %v1499 = vpop.permute.xlu0 %1498
    %1502 = vrot.lane.b32.xlu0 %v1468, 64
    %v1503 = vpop.permute.xlu0 %1502
    %v1505 = vsel %vm393, %v1499, %v1503
    %v1507 = vsel %vm62, %v1505, 0
    %1509 = vmatprep.subr.mxu0 %v217
    %1510 = vmatpush1.msra.mxu0 %v216
    %1511 = vmatprep.subr.mxu0 %v219
    %1512 = vmatpush1.msra.mxu0 %v218
    %1513 = vmatprep.subr.mxu0 %v221
    %1514 = vmatpush1.msra.mxu0 %v220
    %1515 = vmatprep.subr.mxu0 %v223
    %1516 = vmatpush1.msra.mxu0 %v222
    %1517 = vmatprep.subr.mxu0 %v225
    %1518 = vmatpush1.msra.mxu0 %v224
    %1519 = vmatprep.subr.mxu0 %v227
    %1520 = vmatpush1.msra.mxu0 %v226
    %1521 = vmatprep.subr.mxu0 %v229
    %1522 = vmatpush1.msra.mxu0 %v228
    %1523 = vmatprep.subr.mxu0 %v231
    %1524 = vmatpush1.msra.mxu0 %v230
    %1525 = vmatprep.subr.mxu0 0.0
    %1526 = vmatpush1.msra.mxu0 0.0
    %1527 = vmatprep.subr.mxu0 0.0
    %1528 = vmatpush1.msra.mxu0 0.0
    %1529 = vmatprep.subr.mxu0 0.0
    %1530 = vmatpush1.msra.mxu0 0.0
    %1531 = vmatprep.subr.mxu0 0.0
    %1532 = vmatpush1.msra.mxu0 0.0
    %1533 = vmatprep.subr.mxu0 0.0
    %1534 = vmatpush1.msra.mxu0 0.0
    %1535 = vmatprep.subr.mxu0 0.0
    %1536 = vmatpush1.msra.mxu0 0.0
    %1537 = vmatprep.subr.mxu0 0.0
    %1538 = vmatpush1.msra.mxu0 0.0
    %1539 = vmatprep.subr.mxu0 0.0
    %1540 = vmatpush1.msra.mxu0 0.0
    %1541 = vmatprep.subr.mxu0 0.0
    %1542 = vmatpush1.msra.mxu0 0.0
    %1543 = vmatprep.subr.mxu0 0.0
    %1544 = vmatpush1.msra.mxu0 0.0
    %1545 = vmatprep.subr.mxu0 0.0
    %1546 = vmatpush1.msra.mxu0 0.0
    %1547 = vmatprep.subr.mxu0 0.0
    %1548 = vmatpush1.msra.mxu0 0.0
    %1549 = vmatprep.subr.mxu0 0.0
    %1550 = vmatpush1.msra.mxu0 0.0
    %1551 = vmatprep.subr.mxu0 0.0
    %1552 = vmatpush1.msra.mxu0 0.0
    %1553 = vmatprep.subr.mxu0 0.0
    %1554 = vmatpush1.msra.mxu0 0.0
    %1555 = vmatprep.subr.mxu0 0.0
    %1556 = vmatpush1.msra.mxu0 0.0
    %1557 = vmatprep.subr.mxu0 0.0
    %1558 = vmatpush1.msra.mxu0 0.0
    %1559 = vmatprep.subr.mxu0 0.0
    %1560 = vmatpush1.msra.mxu0 0.0
    %1561 = vmatprep.subr.mxu0 0.0
    %1562 = vmatpush1.msra.mxu0 0.0
    %1563 = vmatprep.subr.mxu0 0.0
    %1564 = vmatpush1.msra.mxu0 0.0
    %1565 = vmatprep.subr.mxu0 0.0
    %1566 = vmatpush1.msra.mxu0 0.0
    %1567 = vmatprep.subr.mxu0 0.0
    %1568 = vmatpush1.msra.mxu0 0.0
    %1569 = vmatprep.subr.mxu0 0.0
    %1570 = vmatpush1.msra.mxu0 0.0
    %1571 = vmatprep.subr.mxu0 0.0
    %1572 = vmatpush1.msra.mxu0 0.0
    %1573 = vmatprep.mubr.f32.mxu0 0.0
    %1574 = vmatmul.mubr.f32.gmra.mrb[0].mxu0 %v1507
    %v1575 = vpop.f32.mrb[0].mxu0
    %v1576 = vadd.f32 0.0, %v1575
    %v1577 = vpop.f32.mrb[0].mxu0
    %v1578 = vadd.f32 0.0, %v1577
    %1579 = vdwg.mxu0
    %v1580 = vadd.f32 %v1493, %v1576
    %v1581 = vadd.f32 %v1494, %v1578
    %v1582 = vxor.u32 %v1580, 2147483648
    %v1583 = vmul.f32 %v1582, 1.442695
    %v1584 = vpow.pop %v1583
    %v1585 = vadd.f32 %v1584, 1.0
    %v1586 = vrcp.pop %v1585
    %v1587 = vmul.f32 1.0, %v1586
    %v1588 = vtanh.pop %v1580
    %v1589 = vmul.f32 %v1587, %v1435
    %1591 = vrot.lane.b32.xlu0 %v1588, 64
    %v1592 = vpop.permute.xlu0 %1591
    %v1594 = vmul.f32 %v1587, %v1592
    %1596 = vrot.lane.b32.xlu0 %v1594, 32
    %v1597 = vpop.permute.xlu0 %1596
    %v1599 = vadd.f32 %v1589, %v1597
    %v1600 = vtanh.pop %v1599
    %1602 = vrot.lane.b32.xlu0 %v1600, 64
    %v1603 = vpop.permute.xlu0 %1602
    %v1605 = vmul.f32 %v1587, %v1603
    %vm1606 = vcmp.gt.f32.partialorder %v1495, 0.5
    %v1607 = vsel %vm1606, 1, 0
    %1608 = vset.pattern.permute.xlu0 0
    %1609 = vperm.xlu0 %1608, %v1607
    %v1610 = vpop.permute.xlu0 %1609
    %vm1611 = vcmp.eq.s32.totalorder %v1610, 1
    %v1612 = vsel %vm1611, %v1605, %v1436
    %v1613 = vxor.u32 %v1581, 2147483648
    %v1614 = vmul.f32 %v1613, 1.442695
    %v1615 = vpow.pop %v1614
    %v1616 = vadd.f32 %v1615, 1.0
    %v1617 = vrcp.pop %v1616
    %v1618 = vmul.f32 1.0, %v1617
    %v1619 = vtanh.pop %v1581
    %v1620 = vmul.f32 %v1618, %v1467
    %1622 = vrot.lane.b32.xlu0 %v1619, 64
    %v1623 = vpop.permute.xlu0 %1622
    %v1625 = vmul.f32 %v1618, %v1623
    %1627 = vrot.lane.b32.xlu0 %v1625, 32
    %v1628 = vpop.permute.xlu0 %1627
    %v1630 = vadd.f32 %v1620, %v1628
    %v1631 = vtanh.pop %v1630
    %1633 = vrot.lane.b32.xlu0 %v1631, 64
    %v1634 = vpop.permute.xlu0 %1633
    %v1636 = vmul.f32 %v1618, %v1634
    %vm1637 = vcmp.gt.f32.partialorder %v1496, 0.5
    %v1638 = vsel %vm1637, 1, 0
    %1639 = vset.pattern.permute.xlu0 0
    %1640 = vperm.xlu0 %1639, %v1638
    %v1641 = vpop.permute.xlu0 %1640
    %vm1642 = vcmp.eq.s32.totalorder %v1641, 1
    %v1643 = vsel %vm1642, %v1636, %v1468
    %1645 = vset.pattern.permute.xlu0 0
    %1646 = vperm.xlu0 %1645, %v1495
    %v1647 = vpop.permute.xlu0 %1646
    %v1649 = vmul.f32 %v1612, %v1647
    %1651 = vrot.lane.b32.xlu0 %v1649, 32
    %v1652 = vpop.permute.xlu0 %1651
    %s1654 = scalar_lea.vmem [#allocation3], 56
    %1655 = vst.msk [vmem:[%s1654] sm:$0xff] %vm393, %v1652
    %1657 = vset.pattern.permute.xlu0 0
    %1658 = vperm.xlu0 %1657, %v1496
    %v1659 = vpop.permute.xlu0 %1658
    %v1661 = vmul.f32 %v1643, %v1659
    %1663 = vrot.lane.b32.xlu0 %v1661, 32
    %v1664 = vpop.permute.xlu0 %1663
    %1666 = vst.msk [vmem:[#allocation5] sm:$0xff] %vm393, %v1664
    %1668 = vrot.lane.b32.xlu0 %v1612, 32
    %v1669 = vpop.permute.xlu0 %1668
    %1671 = vst.msk [vmem:[%s7] sm:$0xff] %vm393, %v1669
    %1673 = vrot.lane.b32.xlu0 %v1643, 32
    %v1674 = vpop.permute.xlu0 %1673
    %1676 = vst.msk [vmem:[%s8] sm:$0xff] %vm393, %v1674
    // Predicated region
    $region22: #{rnn_forward.3} parent=1 // pred_check
      _
    $region23: #{rnn_forward.3} parent=1 // pred_check_branch
      %1678 = sbr.rel (0) target = $region25
    $region24: #{rnn_forward.3} parent=1 // pred_region
      %s1680 = ssub.s32 1024, 1024
      %1681 = vsyncadd [#allocation4], %s1680
      %s1682 = sshll.u32 [#allocation3], 4
      %s1683 = int_to_ptr.vmem [resolvable:$true] %s1682
      %1688 = dma.vmem_to_hbm [thread:$0]  %s1683, 1024, %s5, [#allocation4], 128, 128, 8
    $region25: #{rnn_forward.3} parent=1 // pred_fallthru
      _
    // Predicated region
    $region26: #{rnn_forward.3} parent=1 // pred_check
      _
    $region27: #{rnn_forward.3} parent=1 // pred_check_branch
      %1690 = sbr.rel (0) target = $region29
    $region28: #{rnn_forward.3} parent=1 // pred_region
      %s1692 = ssub.s32 1024, 1024
      %1693 = vsyncadd [#allocation6], %s1692
      %s1694 = sshll.u32 [#allocation5], 4
      %s1695 = int_to_ptr.vmem [resolvable:$true] %s1694
      %1700 = dma.vmem_to_hbm [thread:$0]  %s1695, 1024, %s6, [#allocation6], 128, 128, 8
    $region29: #{rnn_forward.3} parent=1 // pred_fallthru
      _
    // Predicated region
    $region30: #{rnn_forward.3} parent=1 // pred_check
      _
    $region31: #{rnn_forward.3} parent=1 // pred_check_branch
      %1702 = sbr.rel (0) target = $region33
    $region32: #{rnn_forward.3} parent=1 // pred_region
      _
    $region33: #{rnn_forward.3} parent=1 // pred_fallthru
      _
    // Predicated region
    $region34: #{rnn_forward.3} parent=1 // pred_check
      _
    $region35: #{rnn_forward.3} parent=1 // pred_check_branch
      %1704 = sbr.rel (0) target = $region37
    $region36: #{rnn_forward.3} parent=1 // pred_region
      _
    $region37: #{rnn_forward.3} parent=1 // pred_fallthru
      _
    // Predicated region
    $region38: #{rnn_forward.3} parent=1 // pred_check
      _
    $region39: #{rnn_forward.3} parent=1 // pred_check_branch
      %1706 = sbr.rel (0) target = $region41
    $region40: #{rnn_forward.3} parent=1 // pred_region
      %1707 = dma.done [#allocation4], 1024
    $region41: #{rnn_forward.3} parent=1 // pred_fallthru
      _
    // Predicated region
    $region42: #{rnn_forward.3} parent=1 // pred_check
      _
    $region43: #{rnn_forward.3} parent=1 // pred_check_branch
      %1709 = sbr.rel (0) target = $region45
    $region44: #{rnn_forward.3} parent=1 // pred_region
      %1710 = dma.done [#allocation6], 1024
    $region45: #{rnn_forward.3} parent=1 // pred_fallthru
      _
    // Predicated region
    $region46: #{rnn_forward.3} parent=1 // pred_check
      _
    $region47: #{rnn_forward.3} parent=1 // pred_check_branch
      %1712 = sbr.rel (0) target = $region49
    $region48: #{rnn_forward.3} parent=1 // pred_region
      _
    $region49: #{rnn_forward.3} parent=1 // pred_fallthru
      _
    // Predicated region
    $region50: #{rnn_forward.3} parent=1 // pred_check
      _
    $region51: #{rnn_forward.3} parent=1 // pred_check_branch
      %1714 = sbr.rel (0) target = $region53
    $region52: #{rnn_forward.3} parent=1 // pred_region
      _
    $region53: #{rnn_forward.3} parent=1 // pred_fallthru
      _
    %1715 = vsyncpa [#allocation4], 1
    %1716 = vsyncpa [#allocation6], 1

// kernel: rnn_forward.2
$region0: #{rnn_forward.2}
  #allocation0 [shape = 'u32[]', space=smem, size = 0x4, offset = 0x4, fixed_abs, tag = 'smem constant byte address 0x4 - core index']
  #allocation1 [shape = 'u32[144,128]{1,0:T(1,128)}', space=vmem, size = 0x12000, scoped, tag = 'internal scratch']
  #allocation2 [shape = 'f32[64,256]{1,0:T(8,128)}', space=vmem, size = 0x10000, scoped, tag = 'scratch operand']
  %s0 = inlined_call_operand.vmem [shape: f32[64,16], index: 0, kind: input, shape index: {}]
  %s1 = inlined_call_operand.vmem [shape: f32[8,8,1], index: 1, kind: input, shape index: {}]
  %s2 = inlined_call_operand.vmem [shape: f32[16,256], index: 2, kind: input, shape index: {}]
  %s3 = inlined_call_operand.vmem [shape: f32[64,256], index: 3, kind: input, shape index: {}]
  %s4 = inlined_call_operand.vmem [shape: f32[1,256], index: 4, kind: input, shape index: {}]
  %s5 = inlined_call_operand.vmem [shape: f32[8,8,32], index: 5, kind: output, shape index: {0}]
  %s6 = inlined_call_operand.vmem [shape: f32[8,8,32], index: 6, kind: output, shape index: {1}]
  %s7 = inlined_call_operand.hbm [shape: f32[8,32], index: 7, kind: output, shape index: {2}]
  %s8 = inlined_call_operand.hbm [shape: f32[8,32], index: 8, kind: output, shape index: {3}]
  %9 = xla_tuple %s5, %s6, %s7, %s8
  %s10 = sld [smem:[#allocation0]]
  $region54: #{rnn_forward.2} parent=0
    _
  %s12 = ssub.s32 1, %s10
  %s13 = scalar_select 0, %s12, %s10
  $region1: #{rnn_forward.2} parent=0
    #allocation3 [shape = 'u8[4096]{0}', space=vmem, size = 0x1000, scoped, tag = 'output window, operand 2, single buffered']
    #allocation4 [shape = 's32[1]{0}', space=sflag, size = 0x4, scoped, tag = 'scoped memory for rnn_forward.2']
    #allocation5 [shape = 'u8[4096]{0}', space=vmem, size = 0x1000, scoped, tag = 'output window, operand 3, single buffered']
    #allocation6 [shape = 's32[1]{0}', space=sflag, size = 0x4, scoped, tag = 'scoped memory for rnn_forward.2']
    %14 = vsyncpa [#allocation4], 0
    %15 = vsyncpa [#allocation6], 0
    // Predicated region
    $region2: #{rnn_forward.2} parent=1 // pred_check
      _
    $region3: #{rnn_forward.2} parent=1 // pred_check_branch
      %17 = sbr.rel (0) target = $region5
    $region4: #{rnn_forward.2} parent=1 // pred_region
      _
    $region5: #{rnn_forward.2} parent=1 // pred_fallthru
      _
    // Predicated region
    $region6: #{rnn_forward.2} parent=1 // pred_check
      _
    $region7: #{rnn_forward.2} parent=1 // pred_check_branch
      %19 = sbr.rel (0) target = $region9
    $region8: #{rnn_forward.2} parent=1 // pred_region
      _
    $region9: #{rnn_forward.2} parent=1 // pred_fallthru
      _
    // Predicated region
    $region10: #{rnn_forward.2} parent=1 // pred_check
      _
    $region11: #{rnn_forward.2} parent=1 // pred_check_branch
      %21 = sbr.rel (0) target = $region13
    $region12: #{rnn_forward.2} parent=1 // pred_region
      _
    $region13: #{rnn_forward.2} parent=1 // pred_fallthru
      _
    // Predicated region
    $region14: #{rnn_forward.2} parent=1 // pred_check
      _
    $region15: #{rnn_forward.2} parent=1 // pred_check_branch
      %23 = sbr.rel (0) target = $region17
    $region16: #{rnn_forward.2} parent=1 // pred_region
      _
    $region17: #{rnn_forward.2} parent=1 // pred_fallthru
      _
    // Predicated region
    $region18: #{rnn_forward.2} parent=1 // pred_check
      _
    $region19: #{rnn_forward.2} parent=1 // pred_check_branch
      %25 = sbr.rel (0) target = $region21
    $region20: #{rnn_forward.2} parent=1 // pred_region
      _
    $region21: #{rnn_forward.2} parent=1 // pred_fallthru
      _
    %v26 = vld [vmem:[%s0] sm:$0xff]
    %v27 = vld [vmem:[%s0 + $0x8] sm:$0xff]
    %v28 = vld [vmem:[%s0 + $0x10] sm:$0xff]
    %v29 = vld [vmem:[%s0 + $0x18] sm:$0xff]
    %v30 = vld [vmem:[%s0 + $0x20] sm:$0xff]
    %v31 = vld [vmem:[%s0 + $0x28] sm:$0xff]
    %v32 = vld [vmem:[%s0 + $0x30] sm:$0xff]
    %v33 = vld [vmem:[%s0 + $0x38] sm:$0xff]
    %v34 = vld [vmem:[%s2] sm:$0xff]
    %v35 = vld [vmem:[%s2 + $0x8] sm:$0xff]
    %v36 = vld [vmem:[%s2 + $0x10] sm:$0xff]
    %v37 = vld [vmem:[%s2 + $0x18] sm:$0xff]
    %v38 = vld [vmem:[%s4] sm:$0x3]
    %v40 = vlaneseq
    %v41 = vshrl.u32 %v40, 7
    %v42 = vsub.s32 0, %v41
    %v43 = vrot.slane %v38, %v42
    %v44 = vlaneseq
    %v45 = vshrl.u32 %v44, 7
    %v46 = vsub.s32 1, %v45
    %v47 = vrot.slane %v38, %v46
    %vm50 = vcmask 130048
    %v52 = vsel %vm50, %v26, 0
    %v55 = vsel %vm50, %v27, 0
    %v58 = vsel %vm50, %v28, 0
    %v61 = vsel %vm50, %v29, 0
    %v64 = vsel %vm50, %v30, 0
    %v67 = vsel %vm50, %v31, 0
    %v70 = vsel %vm50, %v32, 0
    %v73 = vsel %vm50, %v33, 0
    %75 = vmatprep.subr.mxu0 %v35
    %76 = vmatpush1.msra.mxu0 %v34
    %77 = vmatprep.subr.mxu0 %v37
    %78 = vmatpush1.msra.mxu0 %v36
    %79 = vmatprep.subr.mxu0 0.0
    %80 = vmatpush1.msra.mxu0 0.0
    %81 = vmatprep.subr.mxu0 0.0
    %82 = vmatpush1.msra.mxu0 0.0
    %83 = vmatprep.subr.mxu0 0.0
    %84 = vmatpush1.msra.mxu0 0.0
    %85 = vmatprep.subr.mxu0 0.0
    %86 = vmatpush1.msra.mxu0 0.0
    %87 = vmatprep.subr.mxu0 0.0
    %88 = vmatpush1.msra.mxu0 0.0
    %89 = vmatprep.subr.mxu0 0.0
    %90 = vmatpush1.msra.mxu0 0.0
    %91 = vmatprep.subr.mxu0 0.0
    %92 = vmatpush1.msra.mxu0 0.0
    %93 = vmatprep.subr.mxu0 0.0
    %94 = vmatpush1.msra.mxu0 0.0
    %95 = vmatprep.subr.mxu0 0.0
    %96 = vmatpush1.msra.mxu0 0.0
    %97 = vmatprep.subr.mxu0 0.0
    %98 = vmatpush1.msra.mxu0 0.0
    %99 = vmatprep.subr.mxu0 0.0
    %100 = vmatpush1.msra.mxu0 0.0
    %101 = vmatprep.subr.mxu0 0.0
    %102 = vmatpush1.msra.mxu0 0.0
    %103 = vmatprep.subr.mxu0 0.0
    %104 = vmatpush1.msra.mxu0 0.0
    %105 = vmatprep.subr.mxu0 0.0
    %106 = vmatpush1.msra.mxu0 0.0
    %107 = vmatprep.subr.mxu0 0.0
    %108 = vmatpush1.msra.mxu0 0.0
    %109 = vmatprep.subr.mxu0 0.0
    %110 = vmatpush1.msra.mxu0 0.0
    %111 = vmatprep.subr.mxu0 0.0
    %112 = vmatpush1.msra.mxu0 0.0
    %113 = vmatprep.subr.mxu0 0.0
    %114 = vmatpush1.msra.mxu0 0.0
    %115 = vmatprep.subr.mxu0 0.0
    %116 = vmatpush1.msra.mxu0 0.0
    %117 = vmatprep.subr.mxu0 0.0
    %118 = vmatpush1.msra.mxu0 0.0
    %119 = vmatprep.subr.mxu0 0.0
    %120 = vmatpush1.msra.mxu0 0.0
    %121 = vmatprep.subr.mxu0 0.0
    %122 = vmatpush1.msra.mxu0 0.0
    %123 = vmatprep.subr.mxu0 0.0
    %124 = vmatpush1.msra.mxu0 0.0
    %125 = vmatprep.subr.mxu0 0.0
    %126 = vmatpush1.msra.mxu0 0.0
    %127 = vmatprep.subr.mxu0 0.0
    %128 = vmatpush1.msra.mxu0 0.0
    %129 = vmatprep.subr.mxu0 0.0
    %130 = vmatpush1.msra.mxu0 0.0
    %131 = vmatprep.subr.mxu0 0.0
    %132 = vmatpush1.msra.mxu0 0.0
    %133 = vmatprep.subr.mxu0 0.0
    %134 = vmatpush1.msra.mxu0 0.0
    %135 = vmatprep.subr.mxu0 0.0
    %136 = vmatpush1.msra.mxu0 0.0
    %137 = vmatprep.subr.mxu0 0.0
    %138 = vmatpush1.msra.mxu0 0.0
    %139 = vmatprep.mubr.f32.mxu0 0.0
    %140 = vmatmul.mubr.f32.gmra.mrb[0].mxu0 %v52
    %v141 = vpop.f32.mrb[0].mxu0
    %v142 = vadd.f32 %v43, %v141
    %v143 = vpop.f32.mrb[0].mxu0
    %v144 = vadd.f32 %v47, %v143
    %145 = vmatprep.mubr.f32.mxu0 0.0
    %146 = vmatmul.mubr.f32.gmra.mrb[0].mxu0 %v55
    %v147 = vpop.f32.mrb[0].mxu0
    %v148 = vadd.f32 %v43, %v147
    %v149 = vpop.f32.mrb[0].mxu0
    %v150 = vadd.f32 %v47, %v149
    %151 = vmatprep.mubr.f32.mxu0 0.0
    %152 = vmatmul.mubr.f32.gmra.mrb[0].mxu0 %v58
    %v153 = vpop.f32.mrb[0].mxu0
    %v154 = vadd.f32 %v43, %v153
    %v155 = vpop.f32.mrb[0].mxu0
    %v156 = vadd.f32 %v47, %v155
    %157 = vmatprep.mubr.f32.mxu0 0.0
    %158 = vmatmul.mubr.f32.gmra.mrb[0].mxu0 %v61
    %v159 = vpop.f32.mrb[0].mxu0
    %v160 = vadd.f32 %v43, %v159
    %v161 = vpop.f32.mrb[0].mxu0
    %v162 = vadd.f32 %v47, %v161
    %163 = vmatprep.mubr.f32.mxu0 0.0
    %164 = vmatmul.mubr.f32.gmra.mrb[0].mxu0 %v64
    %v165 = vpop.f32.mrb[0].mxu0
    %v166 = vadd.f32 %v43, %v165
    %v167 = vpop.f32.mrb[0].mxu0
    %v168 = vadd.f32 %v47, %v167
    %169 = vmatprep.mubr.f32.mxu0 0.0
    %170 = vmatmul.mubr.f32.gmra.mrb[0].mxu0 %v67
    %v171 = vpop.f32.mrb[0].mxu0
    %v172 = vadd.f32 %v43, %v171
    %v173 = vpop.f32.mrb[0].mxu0
    %v174 = vadd.f32 %v47, %v173
    %175 = vmatprep.mubr.f32.mxu0 0.0
    %176 = vmatmul.mubr.f32.gmra.mrb[0].mxu0 %v70
    %v177 = vpop.f32.mrb[0].mxu0
    %v178 = vadd.f32 %v43, %v177
    %v179 = vpop.f32.mrb[0].mxu0
    %v180 = vadd.f32 %v47, %v179
    %181 = vmatprep.mubr.f32.mxu0 0.0
    %182 = vmatmul.mubr.f32.gmra.mrb[0].mxu0 %v73
    %v183 = vpop.f32.mrb[0].mxu0
    %v184 = vadd.f32 %v43, %v183
    %v185 = vpop.f32.mrb[0].mxu0
    %v186 = vadd.f32 %v47, %v185
    %187 = vdwg.mxu0
    %188 = vst [vmem:[#allocation2] sm:$0xff] %v142
    %189 = vst [vmem:[#allocation2 + $0x8] sm:$0xff] %v144
    %190 = vst [vmem:[#allocation2 + $0x10] sm:$0xff] %v148
    %191 = vst [vmem:[#allocation2 + $0x18] sm:$0xff] %v150
    %192 = vst [vmem:[#allocation2 + $0x20] sm:$0xff] %v154
    %193 = vst [vmem:[#allocation2 + $0x28] sm:$0xff] %v156
    %194 = vst [vmem:[#allocation2 + $0x30] sm:$0xff] %v160
    %195 = vst [vmem:[#allocation2 + $0x38] sm:$0xff] %v162
    %196 = vst [vmem:[#allocation2 + $0x40] sm:$0xff] %v166
    %197 = vst [vmem:[#allocation2 + $0x48] sm:$0xff] %v168
    %198 = vst [vmem:[#allocation2 + $0x50] sm:$0xff] %v172
    %199 = vst [vmem:[#allocation2 + $0x58] sm:$0xff] %v174
    %200 = vst [vmem:[#allocation2 + $0x60] sm:$0xff] %v178
    %201 = vst [vmem:[#allocation2 + $0x68] sm:$0xff] %v180
    %202 = vst [vmem:[#allocation2 + $0x70] sm:$0xff] %v184
    %203 = vst [vmem:[#allocation2 + $0x78] sm:$0xff] %v186
    %v204 = vld [vmem:[%s3] sm:$0xff]
    %v205 = vld [vmem:[%s3 + $0x8] sm:$0xff]
    %v206 = vld [vmem:[%s3 + $0x10] sm:$0xff]
    %v207 = vld [vmem:[%s3 + $0x18] sm:$0xff]
    %v208 = vld [vmem:[%s3 + $0x20] sm:$0xff]
    %v209 = vld [vmem:[%s3 + $0x28] sm:$0xff]
    %v210 = vld [vmem:[%s3 + $0x30] sm:$0xff]
    %v211 = vld [vmem:[%s3 + $0x38] sm:$0xff]
    %v212 = vld [vmem:[%s3 + $0x40] sm:$0xff]
    %v213 = vld [vmem:[%s3 + $0x48] sm:$0xff]
    %v214 = vld [vmem:[%s3 + $0x50] sm:$0xff]
    %v215 = vld [vmem:[%s3 + $0x58] sm:$0xff]
    %v216 = vld [vmem:[%s3 + $0x60] sm:$0xff]
    %v217 = vld [vmem:[%s3 + $0x68] sm:$0xff]
    %v218 = vld [vmem:[%s3 + $0x70] sm:$0xff]
    %v219 = vld [vmem:[%s3 + $0x78] sm:$0xff]
    %s220 = smul.u32 0, 2
    %s221 = smul.addr %s220, 8
    %s222 = scalar_lea.vmem [#allocation2], %s221
    %v223 = vld [vmem:[%s222] sm:$0xff]
    %s224 = smul.u32 7, 2
    %s225 = smul.addr %s224, 8
    %s226 = scalar_lea.vmem [#allocation2], %s225
    %v227 = vld [vmem:[%s226 + $0x8] sm:$0xff]
    %v228 = vld [vmem:[%s1] sm:$0xff]
    %s229 = scalar_lea.vmem %s1, 56
    %v230 = vld [vmem:[%s229] sm:$0xff]
    %vm231 = vcmask 523264
    %v233 = vsel %vm231, 0.0, 0
    %235 = vmatprep.subr.mxu0 %v205
    %236 = vmatpush1.msra.mxu0 %v204
    %237 = vmatprep.subr.mxu0 %v207
    %238 = vmatpush1.msra.mxu0 %v206
    %239 = vmatprep.subr.mxu0 %v209
    %240 = vmatpush1.msra.mxu0 %v208
    %241 = vmatprep.subr.mxu0 %v211
    %242 = vmatpush1.msra.mxu0 %v210
    %243 = vmatprep.subr.mxu0 %v213
    %244 = vmatpush1.msra.mxu0 %v212
    %245 = vmatprep.subr.mxu0 %v215
    %246 = vmatpush1.msra.mxu0 %v214
    %247 = vmatprep.subr.mxu0 %v217
    %248 = vmatpush1.msra.mxu0 %v216
    %249 = vmatprep.subr.mxu0 %v219
    %250 = vmatpush1.msra.mxu0 %v218
    %251 = vmatprep.subr.mxu0 0.0
    %252 = vmatpush1.msra.mxu0 0.0
    %253 = vmatprep.subr.mxu0 0.0
    %254 = vmatpush1.msra.mxu0 0.0
    %255 = vmatprep.subr.mxu0 0.0
    %256 = vmatpush1.msra.mxu0 0.0
    %257 = vmatprep.subr.mxu0 0.0
    %258 = vmatpush1.msra.mxu0 0.0
    %259 = vmatprep.subr.mxu0 0.0
    %260 = vmatpush1.msra.mxu0 0.0
    %261 = vmatprep.subr.mxu0 0.0
    %262 = vmatpush1.msra.mxu0 0.0
    %263 = vmatprep.subr.mxu0 0.0
    %264 = vmatpush1.msra.mxu0 0.0
    %265 = vmatprep.subr.mxu0 0.0
    %266 = vmatpush1.msra.mxu0 0.0
    %267 = vmatprep.subr.mxu0 0.0
    %268 = vmatpush1.msra.mxu0 0.0
    %269 = vmatprep.subr.mxu0 0.0
    %270 = vmatpush1.msra.mxu0 0.0
    %271 = vmatprep.subr.mxu0 0.0
    %272 = vmatpush1.msra.mxu0 0.0
    %273 = vmatprep.subr.mxu0 0.0
    %274 = vmatpush1.msra.mxu0 0.0
    %275 = vmatprep.subr.mxu0 0.0
    %276 = vmatpush1.msra.mxu0 0.0
    %277 = vmatprep.subr.mxu0 0.0
    %278 = vmatpush1.msra.mxu0 0.0
    %279 = vmatprep.subr.mxu0 0.0
    %280 = vmatpush1.msra.mxu0 0.0
    %281 = vmatprep.subr.mxu0 0.0
    %282 = vmatpush1.msra.mxu0 0.0
    %283 = vmatprep.subr.mxu0 0.0
    %284 = vmatpush1.msra.mxu0 0.0
    %285 = vmatprep.subr.mxu0 0.0
    %286 = vmatpush1.msra.mxu0 0.0
    %287 = vmatprep.subr.mxu0 0.0
    %288 = vmatpush1.msra.mxu0 0.0
    %289 = vmatprep.subr.mxu0 0.0
    %290 = vmatpush1.msra.mxu0 0.0
    %291 = vmatprep.subr.mxu0 0.0
    %292 = vmatpush1.msra.mxu0 0.0
    %293 = vmatprep.subr.mxu0 0.0
    %294 = vmatpush1.msra.mxu0 0.0
    %295 = vmatprep.subr.mxu0 0.0
    %296 = vmatpush1.msra.mxu0 0.0
    %297 = vmatprep.subr.mxu0 0.0
    %298 = vmatpush1.msra.mxu0 0.0
    %299 = vmatprep.mubr.f32.mxu0 0.0
    %300 = vmatmul.mubr.f32.gmra.mrb[0].mxu0 %v233
    %v301 = vpop.f32.mrb[0].mxu0
    %v302 = vadd.f32 0.0, %v301
    %v303 = vpop.f32.mrb[0].mxu0
    %v304 = vadd.f32 0.0, %v303
    %305 = vdwg.mxu0
    %v306 = vadd.f32 %v223, %v302
    %v307 = vadd.f32 %v227, %v304
    %v308 = vxor.u32 %v306, 2147483648
    %v309 = vmul.f32 %v308, 1.442695
    %v310 = vpow.pop %v309
    %v311 = vadd.f32 %v310, 1.0
    %v312 = vrcp.pop %v311
    %v313 = vmul.f32 1.0, %v312
    %v314 = vtanh.pop %v306
    %v315 = vmul.f32 %v313, 0.0
    %317 = vrot.lane.b32.xlu0 %v314, 64
    %v318 = vpop.permute.xlu0 %317
    %v320 = vmul.f32 %v313, %v318
    %322 = vrot.lane.b32.xlu0 %v320, 32
    %v323 = vpop.permute.xlu0 %322
    %v325 = vadd.f32 %v315, %v323
    %v326 = vtanh.pop %v325
    %328 = vrot.lane.b32.xlu0 %v326, 64
    %v329 = vpop.permute.xlu0 %328
    %v331 = vmul.f32 %v313, %v329
    %vm332 = vcmp.gt.f32.partialorder %v228, 0.5
    %v333 = vsel %vm332, 1, 0
    %334 = vset.pattern.permute.xlu0 0
    %335 = vperm.xlu0 %334, %v333
    %v336 = vpop.permute.xlu0 %335
    %vm337 = vcmp.eq.s32.totalorder %v336, 1
    %v338 = vsel %vm337, %v325, 0.0
    %v339 = vsel %vm337, %v331, 0.0
    %v340 = vxor.u32 %v307, 2147483648
    %v341 = vmul.f32 %v340, 1.442695
    %v342 = vpow.pop %v341
    %v343 = vadd.f32 %v342, 1.0
    %v344 = vrcp.pop %v343
    %v345 = vmul.f32 1.0, %v344
    %v346 = vtanh.pop %v307
    %v347 = vmul.f32 %v345, 0.0
    %349 = vrot.lane.b32.xlu0 %v346, 64
    %v350 = vpop.permute.xlu0 %349
    %v352 = vmul.f32 %v345, %v350
    %354 = vrot.lane.b32.xlu0 %v352, 32
    %v355 = vpop.permute.xlu0 %354
    %v357 = vadd.f32 %v347, %v355
    %v358 = vtanh.pop %v357
    %360 = vrot.lane.b32.xlu0 %v358, 64
    %v361 = vpop.permute.xlu0 %360
    %v363 = vmul.f32 %v345, %v361
    %vm364 = vcmp.gt.f32.partialorder %v230, 0.5
    %v365 = vsel %vm364, 1, 0
    %366 = vset.pattern.permute.xlu0 0
    %367 = vperm.xlu0 %366, %v365
    %v368 = vpop.permute.xlu0 %367
    %vm369 = vcmp.eq.s32.totalorder %v368, 1
    %v370 = vsel %vm369, %v357, 0.0
    %v371 = vsel %vm369, %v363, 0.0
    %373 = vset.pattern.permute.xlu0 0
    %374 = vperm.xlu0 %373, %v228
    %v375 = vpop.permute.xlu0 %374
    %v377 = vmul.f32 %v339, %v375
    %379 = vrot.lane.b32.xlu0 %v377, 32
    %v380 = vpop.permute.xlu0 %379
    %vm382 = vcmask 261120
    %383 = vst.msk [vmem:[%s5] sm:$0xff] %vm382, %v380
    %385 = vset.pattern.permute.xlu0 0
    %386 = vperm.xlu0 %385, %v230
    %v387 = vpop.permute.xlu0 %386
    %v389 = vmul.f32 %v371, %v387
    %391 = vrot.lane.b32.xlu0 %v389, 32
    %v392 = vpop.permute.xlu0 %391
    %s394 = scalar_lea.vmem %s6, 56
    %395 = vst.msk [vmem:[%s394] sm:$0xff] %vm382, %v392
    %s396 = smul.u32 1, 2
    %s397 = smul.addr %s396, 8
    %s398 = scalar_lea.vmem [#allocation2], %s397
    %v399 = vld [vmem:[%s398] sm:$0xff]
    %s400 = smul.u32 6, 2
    %s401 = smul.addr %s400, 8
    %s402 = scalar_lea.vmem [#allocation2], %s401
    %v403 = vld [vmem:[%s402 + $0x8] sm:$0xff]
    %s404 = scalar_lea.vmem %s1, 8
    %v405 = vld [vmem:[%s404] sm:$0xff]
    %s406 = scalar_lea.vmem %s1, 48
    %v407 = vld [vmem:[%s406] sm:$0xff]
    %409 = vrot.lane.b32.xlu0 %v339, 32
    %v410 = vpop.permute.xlu0 %409
    %413 = vrot.lane.b32.xlu0 %v371, 64
    %v414 = vpop.permute.xlu0 %413
    %v416 = vsel %vm382, %v410, %v414
    %v418 = vsel %vm231, %v416, 0
    %420 = vmatprep.subr.mxu0 %v205
    %421 = vmatpush1.msra.mxu0 %v204
    %422 = vmatprep.subr.mxu0 %v207
    %423 = vmatpush1.msra.mxu0 %v206
    %424 = vmatprep.subr.mxu0 %v209
    %425 = vmatpush1.msra.mxu0 %v208
    %426 = vmatprep.subr.mxu0 %v211
    %427 = vmatpush1.msra.mxu0 %v210
    %428 = vmatprep.subr.mxu0 %v213
    %429 = vmatpush1.msra.mxu0 %v212
    %430 = vmatprep.subr.mxu0 %v215
    %431 = vmatpush1.msra.mxu0 %v214
    %432 = vmatprep.subr.mxu0 %v217
    %433 = vmatpush1.msra.mxu0 %v216
    %434 = vmatprep.subr.mxu0 %v219
    %435 = vmatpush1.msra.mxu0 %v218
    %436 = vmatprep.subr.mxu0 0.0
    %437 = vmatpush1.msra.mxu0 0.0
    %438 = vmatprep.subr.mxu0 0.0
    %439 = vmatpush1.msra.mxu0 0.0
    %440 = vmatprep.subr.mxu0 0.0
    %441 = vmatpush1.msra.mxu0 0.0
    %442 = vmatprep.subr.mxu0 0.0
    %443 = vmatpush1.msra.mxu0 0.0
    %444 = vmatprep.subr.mxu0 0.0
    %445 = vmatpush1.msra.mxu0 0.0
    %446 = vmatprep.subr.mxu0 0.0
    %447 = vmatpush1.msra.mxu0 0.0
    %448 = vmatprep.subr.mxu0 0.0
    %449 = vmatpush1.msra.mxu0 0.0
    %450 = vmatprep.subr.mxu0 0.0
    %451 = vmatpush1.msra.mxu0 0.0
    %452 = vmatprep.subr.mxu0 0.0
    %453 = vmatpush1.msra.mxu0 0.0
    %454 = vmatprep.subr.mxu0 0.0
    %455 = vmatpush1.msra.mxu0 0.0
    %456 = vmatprep.subr.mxu0 0.0
    %457 = vmatpush1.msra.mxu0 0.0
    %458 = vmatprep.subr.mxu0 0.0
    %459 = vmatpush1.msra.mxu0 0.0
    %460 = vmatprep.subr.mxu0 0.0
    %461 = vmatpush1.msra.mxu0 0.0
    %462 = vmatprep.subr.mxu0 0.0
    %463 = vmatpush1.msra.mxu0 0.0
    %464 = vmatprep.subr.mxu0 0.0
    %465 = vmatpush1.msra.mxu0 0.0
    %466 = vmatprep.subr.mxu0 0.0
    %467 = vmatpush1.msra.mxu0 0.0
    %468 = vmatprep.subr.mxu0 0.0
    %469 = vmatpush1.msra.mxu0 0.0
    %470 = vmatprep.subr.mxu0 0.0
    %471 = vmatpush1.msra.mxu0 0.0
    %472 = vmatprep.subr.mxu0 0.0
    %473 = vmatpush1.msra.mxu0 0.0
    %474 = vmatprep.subr.mxu0 0.0
    %475 = vmatpush1.msra.mxu0 0.0
    %476 = vmatprep.subr.mxu0 0.0
    %477 = vmatpush1.msra.mxu0 0.0
    %478 = vmatprep.subr.mxu0 0.0
    %479 = vmatpush1.msra.mxu0 0.0
    %480 = vmatprep.subr.mxu0 0.0
    %481 = vmatpush1.msra.mxu0 0.0
    %482 = vmatprep.subr.mxu0 0.0
    %483 = vmatpush1.msra.mxu0 0.0
    %484 = vmatprep.mubr.f32.mxu0 0.0
    %485 = vmatmul.mubr.f32.gmra.mrb[0].mxu0 %v418
    %v486 = vpop.f32.mrb[0].mxu0
    %v487 = vadd.f32 0.0, %v486
    %v488 = vpop.f32.mrb[0].mxu0
    %v489 = vadd.f32 0.0, %v488
    %490 = vdwg.mxu0
    %v491 = vadd.f32 %v399, %v487
    %v492 = vadd.f32 %v403, %v489
    %v493 = vxor.u32 %v491, 2147483648
    %v494 = vmul.f32 %v493, 1.442695
    %v495 = vpow.pop %v494
    %v496 = vadd.f32 %v495, 1.0
    %v497 = vrcp.pop %v496
    %v498 = vmul.f32 1.0, %v497
    %v499 = vtanh.pop %v491
    %v500 = vmul.f32 %v498, %v338
    %502 = vrot.lane.b32.xlu0 %v499, 64
    %v503 = vpop.permute.xlu0 %502
    %v505 = vmul.f32 %v498, %v503
    %507 = vrot.lane.b32.xlu0 %v505, 32
    %v508 = vpop.permute.xlu0 %507
    %v510 = vadd.f32 %v500, %v508
    %v511 = vtanh.pop %v510
    %513 = vrot.lane.b32.xlu0 %v511, 64
    %v514 = vpop.permute.xlu0 %513
    %v516 = vmul.f32 %v498, %v514
    %vm517 = vcmp.gt.f32.partialorder %v405, 0.5
    %v518 = vsel %vm517, 1, 0
    %519 = vset.pattern.permute.xlu0 0
    %520 = vperm.xlu0 %519, %v518
    %v521 = vpop.permute.xlu0 %520
    %vm522 = vcmp.eq.s32.totalorder %v521, 1
    %v523 = vsel %vm522, %v510, %v338
    %v524 = vsel %vm522, %v516, %v339
    %v525 = vxor.u32 %v492, 2147483648
    %v526 = vmul.f32 %v525, 1.442695
    %v527 = vpow.pop %v526
    %v528 = vadd.f32 %v527, 1.0
    %v529 = vrcp.pop %v528
    %v530 = vmul.f32 1.0, %v529
    %v531 = vtanh.pop %v492
    %v532 = vmul.f32 %v530, %v370
    %534 = vrot.lane.b32.xlu0 %v531, 64
    %v535 = vpop.permute.xlu0 %534
    %v537 = vmul.f32 %v530, %v535
    %539 = vrot.lane.b32.xlu0 %v537, 32
    %v540 = vpop.permute.xlu0 %539
    %v542 = vadd.f32 %v532, %v540
    %v543 = vtanh.pop %v542
    %545 = vrot.lane.b32.xlu0 %v543, 64
    %v546 = vpop.permute.xlu0 %545
    %v548 = vmul.f32 %v530, %v546
    %vm549 = vcmp.gt.f32.partialorder %v407, 0.5
    %v550 = vsel %vm549, 1, 0
    %551 = vset.pattern.permute.xlu0 0
    %552 = vperm.xlu0 %551, %v550
    %v553 = vpop.permute.xlu0 %552
    %vm554 = vcmp.eq.s32.totalorder %v553, 1
    %v555 = vsel %vm554, %v542, %v370
    %v556 = vsel %vm554, %v548, %v371
    %558 = vset.pattern.permute.xlu0 0
    %559 = vperm.xlu0 %558, %v405
    %v560 = vpop.permute.xlu0 %559
    %v562 = vmul.f32 %v524, %v560
    %564 = vrot.lane.b32.xlu0 %v562, 32
    %v565 = vpop.permute.xlu0 %564
    %s567 = scalar_lea.vmem %s5, 8
    %568 = vst.msk [vmem:[%s567] sm:$0xff] %vm382, %v565
    %570 = vset.pattern.permute.xlu0 0
    %571 = vperm.xlu0 %570, %v407
    %v572 = vpop.permute.xlu0 %571
    %v574 = vmul.f32 %v556, %v572
    %576 = vrot.lane.b32.xlu0 %v574, 32
    %v577 = vpop.permute.xlu0 %576
    %s579 = scalar_lea.vmem %s6, 48
    %580 = vst.msk [vmem:[%s579] sm:$0xff] %vm382, %v577
    %s581 = smul.u32 2, 2
    %s582 = smul.addr %s581, 8
    %s583 = scalar_lea.vmem [#allocation2], %s582
    %v584 = vld [vmem:[%s583] sm:$0xff]
    %s585 = smul.u32 5, 2
    %s586 = smul.addr %s585, 8
    %s587 = scalar_lea.vmem [#allocation2], %s586
    %v588 = vld [vmem:[%s587 + $0x8] sm:$0xff]
    %s589 = scalar_lea.vmem %s1, 16
    %v590 = vld [vmem:[%s589] sm:$0xff]
    %s591 = scalar_lea.vmem %s1, 40
    %v592 = vld [vmem:[%s591] sm:$0xff]
    %594 = vrot.lane.b32.xlu0 %v524, 32
    %v595 = vpop.permute.xlu0 %594
    %598 = vrot.lane.b32.xlu0 %v556, 64
    %v599 = vpop.permute.xlu0 %598
    %v601 = vsel %vm382, %v595, %v599
    %v603 = vsel %vm231, %v601, 0
    %605 = vmatprep.subr.mxu0 %v205
    %606 = vmatpush1.msra.mxu0 %v204
    %607 = vmatprep.subr.mxu0 %v207
    %608 = vmatpush1.msra.mxu0 %v206
    %609 = vmatprep.subr.mxu0 %v209
    %610 = vmatpush1.msra.mxu0 %v208
    %611 = vmatprep.subr.mxu0 %v211
    %612 = vmatpush1.msra.mxu0 %v210
    %613 = vmatprep.subr.mxu0 %v213
    %614 = vmatpush1.msra.mxu0 %v212
    %615 = vmatprep.subr.mxu0 %v215
    %616 = vmatpush1.msra.mxu0 %v214
    %617 = vmatprep.subr.mxu0 %v217
    %618 = vmatpush1.msra.mxu0 %v216
    %619 = vmatprep.subr.mxu0 %v219
    %620 = vmatpush1.msra.mxu0 %v218
    %621 = vmatprep.subr.mxu0 0.0
    %622 = vmatpush1.msra.mxu0 0.0
    %623 = vmatprep.subr.mxu0 0.0
    %624 = vmatpush1.msra.mxu0 0.0
    %625 = vmatprep.subr.mxu0 0.0
    %626 = vmatpush1.msra.mxu0 0.0
    %627 = vmatprep.subr.mxu0 0.0
    %628 = vmatpush1.msra.mxu0 0.0
    %629 = vmatprep.subr.mxu0 0.0
    %630 = vmatpush1.msra.mxu0 0.0
    %631 = vmatprep.subr.mxu0 0.0
    %632 = vmatpush1.msra.mxu0 0.0
    %633 = vmatprep.subr.mxu0 0.0
    %634 = vmatpush1.msra.mxu0 0.0
    %635 = vmatprep.subr.mxu0 0.0
    %636 = vmatpush1.msra.mxu0 0.0
    %637 = vmatprep.subr.mxu0 0.0
    %638 = vmatpush1.msra.mxu0 0.0
    %639 = vmatprep.subr.mxu0 0.0
    %640 = vmatpush1.msra.mxu0 0.0
    %641 = vmatprep.subr.mxu0 0.0
    %642 = vmatpush1.msra.mxu0 0.0
    %643 = vmatprep.subr.mxu0 0.0
    %644 = vmatpush1.msra.mxu0 0.0
    %645 = vmatprep.subr.mxu0 0.0
    %646 = vmatpush1.msra.mxu0 0.0
    %647 = vmatprep.subr.mxu0 0.0
    %648 = vmatpush1.msra.mxu0 0.0
    %649 = vmatprep.subr.mxu0 0.0
    %650 = vmatpush1.msra.mxu0 0.0
    %651 = vmatprep.subr.mxu0 0.0
    %652 = vmatpush1.msra.mxu0 0.0
    %653 = vmatprep.subr.mxu0 0.0
    %654 = vmatpush1.msra.mxu0 0.0
    %655 = vmatprep.subr.mxu0 0.0
    %656 = vmatpush1.msra.mxu0 0.0
    %657 = vmatprep.subr.mxu0 0.0
    %658 = vmatpush1.msra.mxu0 0.0
    %659 = vmatprep.subr.mxu0 0.0
    %660 = vmatpush1.msra.mxu0 0.0
    %661 = vmatprep.subr.mxu0 0.0
    %662 = vmatpush1.msra.mxu0 0.0
    %663 = vmatprep.subr.mxu0 0.0
    %664 = vmatpush1.msra.mxu0 0.0
    %665 = vmatprep.subr.mxu0 0.0
    %666 = vmatpush1.msra.mxu0 0.0
    %667 = vmatprep.subr.mxu0 0.0
    %668 = vmatpush1.msra.mxu0 0.0
    %669 = vmatprep.mubr.f32.mxu0 0.0
    %670 = vmatmul.mubr.f32.gmra.mrb[0].mxu0 %v603
    %v671 = vpop.f32.mrb[0].mxu0
    %v672 = vadd.f32 0.0, %v671
    %v673 = vpop.f32.mrb[0].mxu0
    %v674 = vadd.f32 0.0, %v673
    %675 = vdwg.mxu0
    %v676 = vadd.f32 %v584, %v672
    %v677 = vadd.f32 %v588, %v674
    %v678 = vxor.u32 %v676, 2147483648
    %v679 = vmul.f32 %v678, 1.442695
    %v680 = vpow.pop %v679
    %v681 = vadd.f32 %v680, 1.0
    %v682 = vrcp.pop %v681
    %v683 = vmul.f32 1.0, %v682
    %v684 = vtanh.pop %v676
    %v685 = vmul.f32 %v683, %v523
    %687 = vrot.lane.b32.xlu0 %v684, 64
    %v688 = vpop.permute.xlu0 %687
    %v690 = vmul.f32 %v683, %v688
    %692 = vrot.lane.b32.xlu0 %v690, 32
    %v693 = vpop.permute.xlu0 %692
    %v695 = vadd.f32 %v685, %v693
    %v696 = vtanh.pop %v695
    %698 = vrot.lane.b32.xlu0 %v696, 64
    %v699 = vpop.permute.xlu0 %698
    %v701 = vmul.f32 %v683, %v699
    %vm702 = vcmp.gt.f32.partialorder %v590, 0.5
    %v703 = vsel %vm702, 1, 0
    %704 = vset.pattern.permute.xlu0 0
    %705 = vperm.xlu0 %704, %v703
    %v706 = vpop.permute.xlu0 %705
    %vm707 = vcmp.eq.s32.totalorder %v706, 1
    %v708 = vsel %vm707, %v695, %v523
    %v709 = vsel %vm707, %v701, %v524
    %v710 = vxor.u32 %v677, 2147483648
    %v711 = vmul.f32 %v710, 1.442695
    %v712 = vpow.pop %v711
    %v713 = vadd.f32 %v712, 1.0
    %v714 = vrcp.pop %v713
    %v715 = vmul.f32 1.0, %v714
    %v716 = vtanh.pop %v677
    %v717 = vmul.f32 %v715, %v555
    %719 = vrot.lane.b32.xlu0 %v716, 64
    %v720 = vpop.permute.xlu0 %719
    %v722 = vmul.f32 %v715, %v720
    %724 = vrot.lane.b32.xlu0 %v722, 32
    %v725 = vpop.permute.xlu0 %724
    %v727 = vadd.f32 %v717, %v725
    %v728 = vtanh.pop %v727
    %730 = vrot.lane.b32.xlu0 %v728, 64
    %v731 = vpop.permute.xlu0 %730
    %v733 = vmul.f32 %v715, %v731
    %vm734 = vcmp.gt.f32.partialorder %v592, 0.5
    %v735 = vsel %vm734, 1, 0
    %736 = vset.pattern.permute.xlu0 0
    %737 = vperm.xlu0 %736, %v735
    %v738 = vpop.permute.xlu0 %737
    %vm739 = vcmp.eq.s32.totalorder %v738, 1
    %v740 = vsel %vm739, %v727, %v555
    %v741 = vsel %vm739, %v733, %v556
    %743 = vset.pattern.permute.xlu0 0
    %744 = vperm.xlu0 %743, %v590
    %v745 = vpop.permute.xlu0 %744
    %v747 = vmul.f32 %v709, %v745
    %749 = vrot.lane.b32.xlu0 %v747, 32
    %v750 = vpop.permute.xlu0 %749
    %s752 = scalar_lea.vmem %s5, 16
    %753 = vst.msk [vmem:[%s752] sm:$0xff] %vm382, %v750
    %755 = vset.pattern.permute.xlu0 0
    %756 = vperm.xlu0 %755, %v592
    %v757 = vpop.permute.xlu0 %756
    %v759 = vmul.f32 %v741, %v757
    %761 = vrot.lane.b32.xlu0 %v759, 32
    %v762 = vpop.permute.xlu0 %761
    %s764 = scalar_lea.vmem %s6, 40
    %765 = vst.msk [vmem:[%s764] sm:$0xff] %vm382, %v762
    %s766 = smul.u32 3, 2
    %s767 = smul.addr %s766, 8
    %s768 = scalar_lea.vmem [#allocation2], %s767
    %v769 = vld [vmem:[%s768] sm:$0xff]
    %s770 = smul.u32 4, 2
    %s771 = smul.addr %s770, 8
    %s772 = scalar_lea.vmem [#allocation2], %s771
    %v773 = vld [vmem:[%s772 + $0x8] sm:$0xff]
    %s774 = scalar_lea.vmem %s1, 24
    %v775 = vld [vmem:[%s774] sm:$0xff]
    %s776 = scalar_lea.vmem %s1, 32
    %v777 = vld [vmem:[%s776] sm:$0xff]
    %779 = vrot.lane.b32.xlu0 %v709, 32
    %v780 = vpop.permute.xlu0 %779
    %783 = vrot.lane.b32.xlu0 %v741, 64
    %v784 = vpop.permute.xlu0 %783
    %v786 = vsel %vm382, %v780, %v784
    %v788 = vsel %vm231, %v786, 0
    %790 = vmatprep.subr.mxu0 %v205
    %791 = vmatpush1.msra.mxu0 %v204
    %792 = vmatprep.subr.mxu0 %v207
    %793 = vmatpush1.msra.mxu0 %v206
    %794 = vmatprep.subr.mxu0 %v209
    %795 = vmatpush1.msra.mxu0 %v208
    %796 = vmatprep.subr.mxu0 %v211
    %797 = vmatpush1.msra.mxu0 %v210
    %798 = vmatprep.subr.mxu0 %v213
    %799 = vmatpush1.msra.mxu0 %v212
    %800 = vmatprep.subr.mxu0 %v215
    %801 = vmatpush1.msra.mxu0 %v214
    %802 = vmatprep.subr.mxu0 %v217
    %803 = vmatpush1.msra.mxu0 %v216
    %804 = vmatprep.subr.mxu0 %v219
    %805 = vmatpush1.msra.mxu0 %v218
    %806 = vmatprep.subr.mxu0 0.0
    %807 = vmatpush1.msra.mxu0 0.0
    %808 = vmatprep.subr.mxu0 0.0
    %809 = vmatpush1.msra.mxu0 0.0
    %810 = vmatprep.subr.mxu0 0.0
    %811 = vmatpush1.msra.mxu0 0.0
    %812 = vmatprep.subr.mxu0 0.0
    %813 = vmatpush1.msra.mxu0 0.0
    %814 = vmatprep.subr.mxu0 0.0
    %815 = vmatpush1.msra.mxu0 0.0
    %816 = vmatprep.subr.mxu0 0.0
    %817 = vmatpush1.msra.mxu0 0.0
    %818 = vmatprep.subr.mxu0 0.0
    %819 = vmatpush1.msra.mxu0 0.0
    %820 = vmatprep.subr.mxu0 0.0
    %821 = vmatpush1.msra.mxu0 0.0
    %822 = vmatprep.subr.mxu0 0.0
    %823 = vmatpush1.msra.mxu0 0.0
    %824 = vmatprep.subr.mxu0 0.0
    %825 = vmatpush1.msra.mxu0 0.0
    %826 = vmatprep.subr.mxu0 0.0
    %827 = vmatpush1.msra.mxu0 0.0
    %828 = vmatprep.subr.mxu0 0.0
    %829 = vmatpush1.msra.mxu0 0.0
    %830 = vmatprep.subr.mxu0 0.0
    %831 = vmatpush1.msra.mxu0 0.0
    %832 = vmatprep.subr.mxu0 0.0
    %833 = vmatpush1.msra.mxu0 0.0
    %834 = vmatprep.subr.mxu0 0.0
    %835 = vmatpush1.msra.mxu0 0.0
    %836 = vmatprep.subr.mxu0 0.0
    %837 = vmatpush1.msra.mxu0 0.0
    %838 = vmatprep.subr.mxu0 0.0
    %839 = vmatpush1.msra.mxu0 0.0
    %840 = vmatprep.subr.mxu0 0.0
    %841 = vmatpush1.msra.mxu0 0.0
    %842 = vmatprep.subr.mxu0 0.0
    %843 = vmatpush1.msra.mxu0 0.0
    %844 = vmatprep.subr.mxu0 0.0
    %845 = vmatpush1.msra.mxu0 0.0
    %846 = vmatprep.subr.mxu0 0.0
    %847 = vmatpush1.msra.mxu0 0.0
    %848 = vmatprep.subr.mxu0 0.0
    %849 = vmatpush1.msra.mxu0 0.0
    %850 = vmatprep.subr.mxu0 0.0
    %851 = vmatpush1.msra.mxu0 0.0
    %852 = vmatprep.subr.mxu0 0.0
    %853 = vmatpush1.msra.mxu0 0.0
    %854 = vmatprep.mubr.f32.mxu0 0.0
    %855 = vmatmul.mubr.f32.gmra.mrb[0].mxu0 %v788
    %v856 = vpop.f32.mrb[0].mxu0
    %v857 = vadd.f32 0.0, %v856
    %v858 = vpop.f32.mrb[0].mxu0
    %v859 = vadd.f32 0.0, %v858
    %860 = vdwg.mxu0
    %v861 = vadd.f32 %v769, %v857
    %v862 = vadd.f32 %v773, %v859
    %v863 = vxor.u32 %v861, 2147483648
    %v864 = vmul.f32 %v863, 1.442695
    %v865 = vpow.pop %v864
    %v866 = vadd.f32 %v865, 1.0
    %v867 = vrcp.pop %v866
    %v868 = vmul.f32 1.0, %v867
    %v869 = vtanh.pop %v861
    %v870 = vmul.f32 %v868, %v708
    %872 = vrot.lane.b32.xlu0 %v869, 64
    %v873 = vpop.permute.xlu0 %872
    %v875 = vmul.f32 %v868, %v873
    %877 = vrot.lane.b32.xlu0 %v875, 32
    %v878 = vpop.permute.xlu0 %877
    %v880 = vadd.f32 %v870, %v878
    %v881 = vtanh.pop %v880
    %883 = vrot.lane.b32.xlu0 %v881, 64
    %v884 = vpop.permute.xlu0 %883
    %v886 = vmul.f32 %v868, %v884
    %vm887 = vcmp.gt.f32.partialorder %v775, 0.5
    %v888 = vsel %vm887, 1, 0
    %889 = vset.pattern.permute.xlu0 0
    %890 = vperm.xlu0 %889, %v888
    %v891 = vpop.permute.xlu0 %890
    %vm892 = vcmp.eq.s32.totalorder %v891, 1
    %v893 = vsel %vm892, %v880, %v708
    %v894 = vsel %vm892, %v886, %v709
    %v895 = vxor.u32 %v862, 2147483648
    %v896 = vmul.f32 %v895, 1.442695
    %v897 = vpow.pop %v896
    %v898 = vadd.f32 %v897, 1.0
    %v899 = vrcp.pop %v898
    %v900 = vmul.f32 1.0, %v899
    %v901 = vtanh.pop %v862
    %v902 = vmul.f32 %v900, %v740
    %904 = vrot.lane.b32.xlu0 %v901, 64
    %v905 = vpop.permute.xlu0 %904
    %v907 = vmul.f32 %v900, %v905
    %909 = vrot.lane.b32.xlu0 %v907, 32
    %v910 = vpop.permute.xlu0 %909
    %v912 = vadd.f32 %v902, %v910
    %v913 = vtanh.pop %v912
    %915 = vrot.lane.b32.xlu0 %v913, 64
    %v916 = vpop.permute.xlu0 %915
    %v918 = vmul.f32 %v900, %v916
    %vm919 = vcmp.gt.f32.partialorder %v777, 0.5
    %v920 = vsel %vm919, 1, 0
    %921 = vset.pattern.permute.xlu0 0
    %922 = vperm.xlu0 %921, %v920
    %v923 = vpop.permute.xlu0 %922
    %vm924 = vcmp.eq.s32.totalorder %v923, 1
    %v925 = vsel %vm924, %v912, %v740
    %v926 = vsel %vm924, %v918, %v741
    %928 = vset.pattern.permute.xlu0 0
    %929 = vperm.xlu0 %928, %v775
    %v930 = vpop.permute.xlu0 %929
    %v932 = vmul.f32 %v894, %v930
    %934 = vrot.lane.b32.xlu0 %v932, 32
    %v935 = vpop.permute.xlu0 %934
    %s937 = scalar_lea.vmem %s5, 24
    %938 = vst.msk [vmem:[%s937] sm:$0xff] %vm382, %v935
    %940 = vset.pattern.permute.xlu0 0
    %941 = vperm.xlu0 %940, %v777
    %v942 = vpop.permute.xlu0 %941
    %v944 = vmul.f32 %v926, %v942
    %946 = vrot.lane.b32.xlu0 %v944, 32
    %v947 = vpop.permute.xlu0 %946
    %s949 = scalar_lea.vmem %s6, 32
    %950 = vst.msk [vmem:[%s949] sm:$0xff] %vm382, %v947
    %v951 = vld [vmem:[%s772] sm:$0xff]
    %v952 = vld [vmem:[%s768 + $0x8] sm:$0xff]
    %v953 = vld [vmem:[%s776] sm:$0xff]
    %v954 = vld [vmem:[%s774] sm:$0xff]
    %956 = vrot.lane.b32.xlu0 %v894, 32
    %v957 = vpop.permute.xlu0 %956
    %960 = vrot.lane.b32.xlu0 %v926, 64
    %v961 = vpop.permute.xlu0 %960
    %v963 = vsel %vm382, %v957, %v961
    %v965 = vsel %vm231, %v963, 0
    %967 = vmatprep.subr.mxu0 %v205
    %968 = vmatpush1.msra.mxu0 %v204
    %969 = vmatprep.subr.mxu0 %v207
    %970 = vmatpush1.msra.mxu0 %v206
    %971 = vmatprep.subr.mxu0 %v209
    %972 = vmatpush1.msra.mxu0 %v208
    %973 = vmatprep.subr.mxu0 %v211
    %974 = vmatpush1.msra.mxu0 %v210
    %975 = vmatprep.subr.mxu0 %v213
    %976 = vmatpush1.msra.mxu0 %v212
    %977 = vmatprep.subr.mxu0 %v215
    %978 = vmatpush1.msra.mxu0 %v214
    %979 = vmatprep.subr.mxu0 %v217
    %980 = vmatpush1.msra.mxu0 %v216
    %981 = vmatprep.subr.mxu0 %v219
    %982 = vmatpush1.msra.mxu0 %v218
    %983 = vmatprep.subr.mxu0 0.0
    %984 = vmatpush1.msra.mxu0 0.0
    %985 = vmatprep.subr.mxu0 0.0
    %986 = vmatpush1.msra.mxu0 0.0
    %987 = vmatprep.subr.mxu0 0.0
    %988 = vmatpush1.msra.mxu0 0.0
    %989 = vmatprep.subr.mxu0 0.0
    %990 = vmatpush1.msra.mxu0 0.0
    %991 = vmatprep.subr.mxu0 0.0
    %992 = vmatpush1.msra.mxu0 0.0
    %993 = vmatprep.subr.mxu0 0.0
    %994 = vmatpush1.msra.mxu0 0.0
    %995 = vmatprep.subr.mxu0 0.0
    %996 = vmatpush1.msra.mxu0 0.0
    %997 = vmatprep.subr.mxu0 0.0
    %998 = vmatpush1.msra.mxu0 0.0
    %999 = vmatprep.subr.mxu0 0.0
    %1000 = vmatpush1.msra.mxu0 0.0
    %1001 = vmatprep.subr.mxu0 0.0
    %1002 = vmatpush1.msra.mxu0 0.0
    %1003 = vmatprep.subr.mxu0 0.0
    %1004 = vmatpush1.msra.mxu0 0.0
    %1005 = vmatprep.subr.mxu0 0.0
    %1006 = vmatpush1.msra.mxu0 0.0
    %1007 = vmatprep.subr.mxu0 0.0
    %1008 = vmatpush1.msra.mxu0 0.0
    %1009 = vmatprep.subr.mxu0 0.0
    %1010 = vmatpush1.msra.mxu0 0.0
    %1011 = vmatprep.subr.mxu0 0.0
    %1012 = vmatpush1.msra.mxu0 0.0
    %1013 = vmatprep.subr.mxu0 0.0
    %1014 = vmatpush1.msra.mxu0 0.0
    %1015 = vmatprep.subr.mxu0 0.0
    %1016 = vmatpush1.msra.mxu0 0.0
    %1017 = vmatprep.subr.mxu0 0.0
    %1018 = vmatpush1.msra.mxu0 0.0
    %1019 = vmatprep.subr.mxu0 0.0
    %1020 = vmatpush1.msra.mxu0 0.0
    %1021 = vmatprep.subr.mxu0 0.0
    %1022 = vmatpush1.msra.mxu0 0.0
    %1023 = vmatprep.subr.mxu0 0.0
    %1024 = vmatpush1.msra.mxu0 0.0
    %1025 = vmatprep.subr.mxu0 0.0
    %1026 = vmatpush1.msra.mxu0 0.0
    %1027 = vmatprep.subr.mxu0 0.0
    %1028 = vmatpush1.msra.mxu0 0.0
    %1029 = vmatprep.subr.mxu0 0.0
    %1030 = vmatpush1.msra.mxu0 0.0
    %1031 = vmatprep.mubr.f32.mxu0 0.0
    %1032 = vmatmul.mubr.f32.gmra.mrb[0].mxu0 %v965
    %v1033 = vpop.f32.mrb[0].mxu0
    %v1034 = vadd.f32 0.0, %v1033
    %v1035 = vpop.f32.mrb[0].mxu0
    %v1036 = vadd.f32 0.0, %v1035
    %1037 = vdwg.mxu0
    %v1038 = vadd.f32 %v951, %v1034
    %v1039 = vadd.f32 %v952, %v1036
    %v1040 = vxor.u32 %v1038, 2147483648
    %v1041 = vmul.f32 %v1040, 1.442695
    %v1042 = vpow.pop %v1041
    %v1043 = vadd.f32 %v1042, 1.0
    %v1044 = vrcp.pop %v1043
    %v1045 = vmul.f32 1.0, %v1044
    %v1046 = vtanh.pop %v1038
    %v1047 = vmul.f32 %v1045, %v893
    %1049 = vrot.lane.b32.xlu0 %v1046, 64
    %v1050 = vpop.permute.xlu0 %1049
    %v1052 = vmul.f32 %v1045, %v1050
    %1054 = vrot.lane.b32.xlu0 %v1052, 32
    %v1055 = vpop.permute.xlu0 %1054
    %v1057 = vadd.f32 %v1047, %v1055
    %v1058 = vtanh.pop %v1057
    %1060 = vrot.lane.b32.xlu0 %v1058, 64
    %v1061 = vpop.permute.xlu0 %1060
    %v1063 = vmul.f32 %v1045, %v1061
    %vm1064 = vcmp.gt.f32.partialorder %v953, 0.5
    %v1065 = vsel %vm1064, 1, 0
    %1066 = vset.pattern.permute.xlu0 0
    %1067 = vperm.xlu0 %1066, %v1065
    %v1068 = vpop.permute.xlu0 %1067
    %vm1069 = vcmp.eq.s32.totalorder %v1068, 1
    %v1070 = vsel %vm1069, %v1057, %v893
    %v1071 = vsel %vm1069, %v1063, %v894
    %v1072 = vxor.u32 %v1039, 2147483648
    %v1073 = vmul.f32 %v1072, 1.442695
    %v1074 = vpow.pop %v1073
    %v1075 = vadd.f32 %v1074, 1.0
    %v1076 = vrcp.pop %v1075
    %v1077 = vmul.f32 1.0, %v1076
    %v1078 = vtanh.pop %v1039
    %v1079 = vmul.f32 %v1077, %v925
    %1081 = vrot.lane.b32.xlu0 %v1078, 64
    %v1082 = vpop.permute.xlu0 %1081
    %v1084 = vmul.f32 %v1077, %v1082
    %1086 = vrot.lane.b32.xlu0 %v1084, 32
    %v1087 = vpop.permute.xlu0 %1086
    %v1089 = vadd.f32 %v1079, %v1087
    %v1090 = vtanh.pop %v1089
    %1092 = vrot.lane.b32.xlu0 %v1090, 64
    %v1093 = vpop.permute.xlu0 %1092
    %v1095 = vmul.f32 %v1077, %v1093
    %vm1096 = vcmp.gt.f32.partialorder %v954, 0.5
    %v1097 = vsel %vm1096, 1, 0
    %1098 = vset.pattern.permute.xlu0 0
    %1099 = vperm.xlu0 %1098, %v1097
    %v1100 = vpop.permute.xlu0 %1099
    %vm1101 = vcmp.eq.s32.totalorder %v1100, 1
    %v1102 = vsel %vm1101, %v1089, %v925
    %v1103 = vsel %vm1101, %v1095, %v926
    %1105 = vset.pattern.permute.xlu0 0
    %1106 = vperm.xlu0 %1105, %v953
    %v1107 = vpop.permute.xlu0 %1106
    %v1109 = vmul.f32 %v1071, %v1107
    %1111 = vrot.lane.b32.xlu0 %v1109, 32
    %v1112 = vpop.permute.xlu0 %1111
    %s1114 = scalar_lea.vmem %s5, 32
    %1115 = vst.msk [vmem:[%s1114] sm:$0xff] %vm382, %v1112
    %1117 = vset.pattern.permute.xlu0 0
    %1118 = vperm.xlu0 %1117, %v954
    %v1119 = vpop.permute.xlu0 %1118
    %v1121 = vmul.f32 %v1103, %v1119
    %1123 = vrot.lane.b32.xlu0 %v1121, 32
    %v1124 = vpop.permute.xlu0 %1123
    %s1126 = scalar_lea.vmem %s6, 24
    %1127 = vst.msk [vmem:[%s1126] sm:$0xff] %vm382, %v1124
    %v1128 = vld [vmem:[%s587] sm:$0xff]
    %v1129 = vld [vmem:[%s583 + $0x8] sm:$0xff]
    %v1130 = vld [vmem:[%s591] sm:$0xff]
    %v1131 = vld [vmem:[%s589] sm:$0xff]
    %1133 = vrot.lane.b32.xlu0 %v1071, 32
    %v1134 = vpop.permute.xlu0 %1133
    %1137 = vrot.lane.b32.xlu0 %v1103, 64
    %v1138 = vpop.permute.xlu0 %1137
    %v1140 = vsel %vm382, %v1134, %v1138
    %v1142 = vsel %vm231, %v1140, 0
    %1144 = vmatprep.subr.mxu0 %v205
    %1145 = vmatpush1.msra.mxu0 %v204
    %1146 = vmatprep.subr.mxu0 %v207
    %1147 = vmatpush1.msra.mxu0 %v206
    %1148 = vmatprep.subr.mxu0 %v209
    %1149 = vmatpush1.msra.mxu0 %v208
    %1150 = vmatprep.subr.mxu0 %v211
    %1151 = vmatpush1.msra.mxu0 %v210
    %1152 = vmatprep.subr.mxu0 %v213
    %1153 = vmatpush1.msra.mxu0 %v212
    %1154 = vmatprep.subr.mxu0 %v215
    %1155 = vmatpush1.msra.mxu0 %v214
    %1156 = vmatprep.subr.mxu0 %v217
    %1157 = vmatpush1.msra.mxu0 %v216
    %1158 = vmatprep.subr.mxu0 %v219
    %1159 = vmatpush1.msra.mxu0 %v218
    %1160 = vmatprep.subr.mxu0 0.0
    %1161 = vmatpush1.msra.mxu0 0.0
    %1162 = vmatprep.subr.mxu0 0.0
    %1163 = vmatpush1.msra.mxu0 0.0
    %1164 = vmatprep.subr.mxu0 0.0
    %1165 = vmatpush1.msra.mxu0 0.0
    %1166 = vmatprep.subr.mxu0 0.0
    %1167 = vmatpush1.msra.mxu0 0.0
    %1168 = vmatprep.subr.mxu0 0.0
    %1169 = vmatpush1.msra.mxu0 0.0
    %1170 = vmatprep.subr.mxu0 0.0
    %1171 = vmatpush1.msra.mxu0 0.0
    %1172 = vmatprep.subr.mxu0 0.0
    %1173 = vmatpush1.msra.mxu0 0.0
    %1174 = vmatprep.subr.mxu0 0.0
    %1175 = vmatpush1.msra.mxu0 0.0
    %1176 = vmatprep.subr.mxu0 0.0
    %1177 = vmatpush1.msra.mxu0 0.0
    %1178 = vmatprep.subr.mxu0 0.0
    %1179 = vmatpush1.msra.mxu0 0.0
    %1180 = vmatprep.subr.mxu0 0.0
    %1181 = vmatpush1.msra.mxu0 0.0
    %1182 = vmatprep.subr.mxu0 0.0
    %1183 = vmatpush1.msra.mxu0 0.0
    %1184 = vmatprep.subr.mxu0 0.0
    %1185 = vmatpush1.msra.mxu0 0.0
    %1186 = vmatprep.subr.mxu0 0.0
    %1187 = vmatpush1.msra.mxu0 0.0
    %1188 = vmatprep.subr.mxu0 0.0
    %1189 = vmatpush1.msra.mxu0 0.0
    %1190 = vmatprep.subr.mxu0 0.0
    %1191 = vmatpush1.msra.mxu0 0.0
    %1192 = vmatprep.subr.mxu0 0.0
    %1193 = vmatpush1.msra.mxu0 0.0
    %1194 = vmatprep.subr.mxu0 0.0
    %1195 = vmatpush1.msra.mxu0 0.0
    %1196 = vmatprep.subr.mxu0 0.0
    %1197 = vmatpush1.msra.mxu0 0.0
    %1198 = vmatprep.subr.mxu0 0.0
    %1199 = vmatpush1.msra.mxu0 0.0
    %1200 = vmatprep.subr.mxu0 0.0
    %1201 = vmatpush1.msra.mxu0 0.0
    %1202 = vmatprep.subr.mxu0 0.0
    %1203 = vmatpush1.msra.mxu0 0.0
    %1204 = vmatprep.subr.mxu0 0.0
    %1205 = vmatpush1.msra.mxu0 0.0
    %1206 = vmatprep.subr.mxu0 0.0
    %1207 = vmatpush1.msra.mxu0 0.0
    %1208 = vmatprep.mubr.f32.mxu0 0.0
    %1209 = vmatmul.mubr.f32.gmra.mrb[0].mxu0 %v1142
    %v1210 = vpop.f32.mrb[0].mxu0
    %v1211 = vadd.f32 0.0, %v1210
    %v1212 = vpop.f32.mrb[0].mxu0
    %v1213 = vadd.f32 0.0, %v1212
    %1214 = vdwg.mxu0
    %v1215 = vadd.f32 %v1128, %v1211
    %v1216 = vadd.f32 %v1129, %v1213
    %v1217 = vxor.u32 %v1215, 2147483648
    %v1218 = vmul.f32 %v1217, 1.442695
    %v1219 = vpow.pop %v1218
    %v1220 = vadd.f32 %v1219, 1.0
    %v1221 = vrcp.pop %v1220
    %v1222 = vmul.f32 1.0, %v1221
    %v1223 = vtanh.pop %v1215
    %v1224 = vmul.f32 %v1222, %v1070
    %1226 = vrot.lane.b32.xlu0 %v1223, 64
    %v1227 = vpop.permute.xlu0 %1226
    %v1229 = vmul.f32 %v1222, %v1227
    %1231 = vrot.lane.b32.xlu0 %v1229, 32
    %v1232 = vpop.permute.xlu0 %1231
    %v1234 = vadd.f32 %v1224, %v1232
    %v1235 = vtanh.pop %v1234
    %1237 = vrot.lane.b32.xlu0 %v1235, 64
    %v1238 = vpop.permute.xlu0 %1237
    %v1240 = vmul.f32 %v1222, %v1238
    %vm1241 = vcmp.gt.f32.partialorder %v1130, 0.5
    %v1242 = vsel %vm1241, 1, 0
    %1243 = vset.pattern.permute.xlu0 0
    %1244 = vperm.xlu0 %1243, %v1242
    %v1245 = vpop.permute.xlu0 %1244
    %vm1246 = vcmp.eq.s32.totalorder %v1245, 1
    %v1247 = vsel %vm1246, %v1234, %v1070
    %v1248 = vsel %vm1246, %v1240, %v1071
    %v1249 = vxor.u32 %v1216, 2147483648
    %v1250 = vmul.f32 %v1249, 1.442695
    %v1251 = vpow.pop %v1250
    %v1252 = vadd.f32 %v1251, 1.0
    %v1253 = vrcp.pop %v1252
    %v1254 = vmul.f32 1.0, %v1253
    %v1255 = vtanh.pop %v1216
    %v1256 = vmul.f32 %v1254, %v1102
    %1258 = vrot.lane.b32.xlu0 %v1255, 64
    %v1259 = vpop.permute.xlu0 %1258
    %v1261 = vmul.f32 %v1254, %v1259
    %1263 = vrot.lane.b32.xlu0 %v1261, 32
    %v1264 = vpop.permute.xlu0 %1263
    %v1266 = vadd.f32 %v1256, %v1264
    %v1267 = vtanh.pop %v1266
    %1269 = vrot.lane.b32.xlu0 %v1267, 64
    %v1270 = vpop.permute.xlu0 %1269
    %v1272 = vmul.f32 %v1254, %v1270
    %vm1273 = vcmp.gt.f32.partialorder %v1131, 0.5
    %v1274 = vsel %vm1273, 1, 0
    %1275 = vset.pattern.permute.xlu0 0
    %1276 = vperm.xlu0 %1275, %v1274
    %v1277 = vpop.permute.xlu0 %1276
    %vm1278 = vcmp.eq.s32.totalorder %v1277, 1
    %v1279 = vsel %vm1278, %v1266, %v1102
    %v1280 = vsel %vm1278, %v1272, %v1103
    %1282 = vset.pattern.permute.xlu0 0
    %1283 = vperm.xlu0 %1282, %v1130
    %v1284 = vpop.permute.xlu0 %1283
    %v1286 = vmul.f32 %v1248, %v1284
    %1288 = vrot.lane.b32.xlu0 %v1286, 32
    %v1289 = vpop.permute.xlu0 %1288
    %s1291 = scalar_lea.vmem %s5, 40
    %1292 = vst.msk [vmem:[%s1291] sm:$0xff] %vm382, %v1289
    %1294 = vset.pattern.permute.xlu0 0
    %1295 = vperm.xlu0 %1294, %v1131
    %v1296 = vpop.permute.xlu0 %1295
    %v1298 = vmul.f32 %v1280, %v1296
    %1300 = vrot.lane.b32.xlu0 %v1298, 32
    %v1301 = vpop.permute.xlu0 %1300
    %s1303 = scalar_lea.vmem %s6, 16
    %1304 = vst.msk [vmem:[%s1303] sm:$0xff] %vm382, %v1301
    %v1305 = vld [vmem:[%s402] sm:$0xff]
    %v1306 = vld [vmem:[%s398 + $0x8] sm:$0xff]
    %v1307 = vld [vmem:[%s406] sm:$0xff]
    %v1308 = vld [vmem:[%s404] sm:$0xff]
    %1310 = vrot.lane.b32.xlu0 %v1248, 32
    %v1311 = vpop.permute.xlu0 %1310
    %1314 = vrot.lane.b32.xlu0 %v1280, 64
    %v1315 = vpop.permute.xlu0 %1314
    %v1317 = vsel %vm382, %v1311, %v1315
    %v1319 = vsel %vm231, %v1317, 0
    %1321 = vmatprep.subr.mxu0 %v205
    %1322 = vmatpush1.msra.mxu0 %v204
    %1323 = vmatprep.subr.mxu0 %v207
    %1324 = vmatpush1.msra.mxu0 %v206
    %1325 = vmatprep.subr.mxu0 %v209
    %1326 = vmatpush1.msra.mxu0 %v208
    %1327 = vmatprep.subr.mxu0 %v211
    %1328 = vmatpush1.msra.mxu0 %v210
    %1329 = vmatprep.subr.mxu0 %v213
    %1330 = vmatpush1.msra.mxu0 %v212
    %1331 = vmatprep.subr.mxu0 %v215
    %1332 = vmatpush1.msra.mxu0 %v214
    %1333 = vmatprep.subr.mxu0 %v217
    %1334 = vmatpush1.msra.mxu0 %v216
    %1335 = vmatprep.subr.mxu0 %v219
    %1336 = vmatpush1.msra.mxu0 %v218
    %1337 = vmatprep.subr.mxu0 0.0
    %1338 = vmatpush1.msra.mxu0 0.0
    %1339 = vmatprep.subr.mxu0 0.0
    %1340 = vmatpush1.msra.mxu0 0.0
    %1341 = vmatprep.subr.mxu0 0.0
    %1342 = vmatpush1.msra.mxu0 0.0
    %1343 = vmatprep.subr.mxu0 0.0
    %1344 = vmatpush1.msra.mxu0 0.0
    %1345 = vmatprep.subr.mxu0 0.0
    %1346 = vmatpush1.msra.mxu0 0.0
    %1347 = vmatprep.subr.mxu0 0.0
    %1348 = vmatpush1.msra.mxu0 0.0
    %1349 = vmatprep.subr.mxu0 0.0
    %1350 = vmatpush1.msra.mxu0 0.0
    %1351 = vmatprep.subr.mxu0 0.0
    %1352 = vmatpush1.msra.mxu0 0.0
    %1353 = vmatprep.subr.mxu0 0.0
    %1354 = vmatpush1.msra.mxu0 0.0
    %1355 = vmatprep.subr.mxu0 0.0
    %1356 = vmatpush1.msra.mxu0 0.0
    %1357 = vmatprep.subr.mxu0 0.0
    %1358 = vmatpush1.msra.mxu0 0.0
    %1359 = vmatprep.subr.mxu0 0.0
    %1360 = vmatpush1.msra.mxu0 0.0
    %1361 = vmatprep.subr.mxu0 0.0
    %1362 = vmatpush1.msra.mxu0 0.0
    %1363 = vmatprep.subr.mxu0 0.0
    %1364 = vmatpush1.msra.mxu0 0.0
    %1365 = vmatprep.subr.mxu0 0.0
    %1366 = vmatpush1.msra.mxu0 0.0
    %1367 = vmatprep.subr.mxu0 0.0
    %1368 = vmatpush1.msra.mxu0 0.0
    %1369 = vmatprep.subr.mxu0 0.0
    %1370 = vmatpush1.msra.mxu0 0.0
    %1371 = vmatprep.subr.mxu0 0.0
    %1372 = vmatpush1.msra.mxu0 0.0
    %1373 = vmatprep.subr.mxu0 0.0
    %1374 = vmatpush1.msra.mxu0 0.0
    %1375 = vmatprep.subr.mxu0 0.0
    %1376 = vmatpush1.msra.mxu0 0.0
    %1377 = vmatprep.subr.mxu0 0.0
    %1378 = vmatpush1.msra.mxu0 0.0
    %1379 = vmatprep.subr.mxu0 0.0
    %1380 = vmatpush1.msra.mxu0 0.0
    %1381 = vmatprep.subr.mxu0 0.0
    %1382 = vmatpush1.msra.mxu0 0.0
    %1383 = vmatprep.subr.mxu0 0.0
    %1384 = vmatpush1.msra.mxu0 0.0
    %1385 = vmatprep.mubr.f32.mxu0 0.0
    %1386 = vmatmul.mubr.f32.gmra.mrb[0].mxu0 %v1319
    %v1387 = vpop.f32.mrb[0].mxu0
    %v1388 = vadd.f32 0.0, %v1387
    %v1389 = vpop.f32.mrb[0].mxu0
    %v1390 = vadd.f32 0.0, %v1389
    %1391 = vdwg.mxu0
    %v1392 = vadd.f32 %v1305, %v1388
    %v1393 = vadd.f32 %v1306, %v1390
    %v1394 = vxor.u32 %v1392, 2147483648
    %v1395 = vmul.f32 %v1394, 1.442695
    %v1396 = vpow.pop %v1395
    %v1397 = vadd.f32 %v1396, 1.0
    %v1398 = vrcp.pop %v1397
    %v1399 = vmul.f32 1.0, %v1398
    %v1400 = vtanh.pop %v1392
    %v1401 = vmul.f32 %v1399, %v1247
    %1403 = vrot.lane.b32.xlu0 %v1400, 64
    %v1404 = vpop.permute.xlu0 %1403
    %v1406 = vmul.f32 %v1399, %v1404
    %1408 = vrot.lane.b32.xlu0 %v1406, 32
    %v1409 = vpop.permute.xlu0 %1408
    %v1411 = vadd.f32 %v1401, %v1409
    %v1412 = vtanh.pop %v1411
    %1414 = vrot.lane.b32.xlu0 %v1412, 64
    %v1415 = vpop.permute.xlu0 %1414
    %v1417 = vmul.f32 %v1399, %v1415
    %vm1418 = vcmp.gt.f32.partialorder %v1307, 0.5
    %v1419 = vsel %vm1418, 1, 0
    %1420 = vset.pattern.permute.xlu0 0
    %1421 = vperm.xlu0 %1420, %v1419
    %v1422 = vpop.permute.xlu0 %1421
    %vm1423 = vcmp.eq.s32.totalorder %v1422, 1
    %v1424 = vsel %vm1423, %v1411, %v1247
    %v1425 = vsel %vm1423, %v1417, %v1248
    %v1426 = vxor.u32 %v1393, 2147483648
    %v1427 = vmul.f32 %v1426, 1.442695
    %v1428 = vpow.pop %v1427
    %v1429 = vadd.f32 %v1428, 1.0
    %v1430 = vrcp.pop %v1429
    %v1431 = vmul.f32 1.0, %v1430
    %v1432 = vtanh.pop %v1393
    %v1433 = vmul.f32 %v1431, %v1279
    %1435 = vrot.lane.b32.xlu0 %v1432, 64
    %v1436 = vpop.permute.xlu0 %1435
    %v1438 = vmul.f32 %v1431, %v1436
    %1440 = vrot.lane.b32.xlu0 %v1438, 32
    %v1441 = vpop.permute.xlu0 %1440
    %v1443 = vadd.f32 %v1433, %v1441
    %v1444 = vtanh.pop %v1443
    %1446 = vrot.lane.b32.xlu0 %v1444, 64
    %v1447 = vpop.permute.xlu0 %1446
    %v1449 = vmul.f32 %v1431, %v1447
    %vm1450 = vcmp.gt.f32.partialorder %v1308, 0.5
    %v1451 = vsel %vm1450, 1, 0
    %1452 = vset.pattern.permute.xlu0 0
    %1453 = vperm.xlu0 %1452, %v1451
    %v1454 = vpop.permute.xlu0 %1453
    %vm1455 = vcmp.eq.s32.totalorder %v1454, 1
    %v1456 = vsel %vm1455, %v1443, %v1279
    %v1457 = vsel %vm1455, %v1449, %v1280
    %1459 = vset.pattern.permute.xlu0 0
    %1460 = vperm.xlu0 %1459, %v1307
    %v1461 = vpop.permute.xlu0 %1460
    %v1463 = vmul.f32 %v1425, %v1461
    %1465 = vrot.lane.b32.xlu0 %v1463, 32
    %v1466 = vpop.permute.xlu0 %1465
    %s1468 = scalar_lea.vmem %s5, 48
    %1469 = vst.msk [vmem:[%s1468] sm:$0xff] %vm382, %v1466
    %1471 = vset.pattern.permute.xlu0 0
    %1472 = vperm.xlu0 %1471, %v1308
    %v1473 = vpop.permute.xlu0 %1472
    %v1475 = vmul.f32 %v1457, %v1473
    %1477 = vrot.lane.b32.xlu0 %v1475, 32
    %v1478 = vpop.permute.xlu0 %1477
    %s1480 = scalar_lea.vmem %s6, 8
    %1481 = vst.msk [vmem:[%s1480] sm:$0xff] %vm382, %v1478
    %v1482 = vld [vmem:[%s226] sm:$0xff]
    %v1483 = vld [vmem:[%s222 + $0x8] sm:$0xff]
    %v1484 = vld [vmem:[%s229] sm:$0xff]
    %v1485 = vld [vmem:[%s1] sm:$0xff]
    %1487 = vrot.lane.b32.xlu0 %v1425, 32
    %v1488 = vpop.permute.xlu0 %1487
    %1491 = vrot.lane.b32.xlu0 %v1457, 64
    %v1492 = vpop.permute.xlu0 %1491
    %v1494 = vsel %vm382, %v1488, %v1492
    %v1496 = vsel %vm231, %v1494, 0
    %1498 = vmatprep.subr.mxu0 %v205
    %1499 = vmatpush1.msra.mxu0 %v204
    %1500 = vmatprep.subr.mxu0 %v207
    %1501 = vmatpush1.msra.mxu0 %v206
    %1502 = vmatprep.subr.mxu0 %v209
    %1503 = vmatpush1.msra.mxu0 %v208
    %1504 = vmatprep.subr.mxu0 %v211
    %1505 = vmatpush1.msra.mxu0 %v210
    %1506 = vmatprep.subr.mxu0 %v213
    %1507 = vmatpush1.msra.mxu0 %v212
    %1508 = vmatprep.subr.mxu0 %v215
    %1509 = vmatpush1.msra.mxu0 %v214
    %1510 = vmatprep.subr.mxu0 %v217
    %1511 = vmatpush1.msra.mxu0 %v216
    %1512 = vmatprep.subr.mxu0 %v219
    %1513 = vmatpush1.msra.mxu0 %v218
    %1514 = vmatprep.subr.mxu0 0.0
    %1515 = vmatpush1.msra.mxu0 0.0
    %1516 = vmatprep.subr.mxu0 0.0
    %1517 = vmatpush1.msra.mxu0 0.0
    %1518 = vmatprep.subr.mxu0 0.0
    %1519 = vmatpush1.msra.mxu0 0.0
    %1520 = vmatprep.subr.mxu0 0.0
    %1521 = vmatpush1.msra.mxu0 0.0
    %1522 = vmatprep.subr.mxu0 0.0
    %1523 = vmatpush1.msra.mxu0 0.0
    %1524 = vmatprep.subr.mxu0 0.0
    %1525 = vmatpush1.msra.mxu0 0.0
    %1526 = vmatprep.subr.mxu0 0.0
    %1527 = vmatpush1.msra.mxu0 0.0
    %1528 = vmatprep.subr.mxu0 0.0
    %1529 = vmatpush1.msra.mxu0 0.0
    %1530 = vmatprep.subr.mxu0 0.0
    %1531 = vmatpush1.msra.mxu0 0.0
    %1532 = vmatprep.subr.mxu0 0.0
    %1533 = vmatpush1.msra.mxu0 0.0
    %1534 = vmatprep.subr.mxu0 0.0
    %1535 = vmatpush1.msra.mxu0 0.0
    %1536 = vmatprep.subr.mxu0 0.0
    %1537 = vmatpush1.msra.mxu0 0.0
    %1538 = vmatprep.subr.mxu0 0.0
    %1539 = vmatpush1.msra.mxu0 0.0
    %1540 = vmatprep.subr.mxu0 0.0
    %1541 = vmatpush1.msra.mxu0 0.0
    %1542 = vmatprep.subr.mxu0 0.0
    %1543 = vmatpush1.msra.mxu0 0.0
    %1544 = vmatprep.subr.mxu0 0.0
    %1545 = vmatpush1.msra.mxu0 0.0
    %1546 = vmatprep.subr.mxu0 0.0
    %1547 = vmatpush1.msra.mxu0 0.0
    %1548 = vmatprep.subr.mxu0 0.0
    %1549 = vmatpush1.msra.mxu0 0.0
    %1550 = vmatprep.subr.mxu0 0.0
    %1551 = vmatpush1.msra.mxu0 0.0
    %1552 = vmatprep.subr.mxu0 0.0
    %1553 = vmatpush1.msra.mxu0 0.0
    %1554 = vmatprep.subr.mxu0 0.0
    %1555 = vmatpush1.msra.mxu0 0.0
    %1556 = vmatprep.subr.mxu0 0.0
    %1557 = vmatpush1.msra.mxu0 0.0
    %1558 = vmatprep.subr.mxu0 0.0
    %1559 = vmatpush1.msra.mxu0 0.0
    %1560 = vmatprep.subr.mxu0 0.0
    %1561 = vmatpush1.msra.mxu0 0.0
    %1562 = vmatprep.mubr.f32.mxu0 0.0
    %1563 = vmatmul.mubr.f32.gmra.mrb[0].mxu0 %v1496
    %v1564 = vpop.f32.mrb[0].mxu0
    %v1565 = vadd.f32 0.0, %v1564
    %v1566 = vpop.f32.mrb[0].mxu0
    %v1567 = vadd.f32 0.0, %v1566
    %1568 = vdwg.mxu0
    %v1569 = vadd.f32 %v1482, %v1565
    %v1570 = vadd.f32 %v1483, %v1567
    %v1571 = vxor.u32 %v1569, 2147483648
    %v1572 = vmul.f32 %v1571, 1.442695
    %v1573 = vpow.pop %v1572
    %v1574 = vadd.f32 %v1573, 1.0
    %v1575 = vrcp.pop %v1574
    %v1576 = vmul.f32 1.0, %v1575
    %v1577 = vtanh.pop %v1569
    %v1578 = vmul.f32 %v1576, %v1424
    %1580 = vrot.lane.b32.xlu0 %v1577, 64
    %v1581 = vpop.permute.xlu0 %1580
    %v1583 = vmul.f32 %v1576, %v1581
    %1585 = vrot.lane.b32.xlu0 %v1583, 32
    %v1586 = vpop.permute.xlu0 %1585
    %v1588 = vadd.f32 %v1578, %v1586
    %v1589 = vtanh.pop %v1588
    %1591 = vrot.lane.b32.xlu0 %v1589, 64
    %v1592 = vpop.permute.xlu0 %1591
    %v1594 = vmul.f32 %v1576, %v1592
    %vm1595 = vcmp.gt.f32.partialorder %v1484, 0.5
    %v1596 = vsel %vm1595, 1, 0
    %1597 = vset.pattern.permute.xlu0 0
    %1598 = vperm.xlu0 %1597, %v1596
    %v1599 = vpop.permute.xlu0 %1598
    %vm1600 = vcmp.eq.s32.totalorder %v1599, 1
    %v1601 = vsel %vm1600, %v1594, %v1425
    %v1602 = vxor.u32 %v1570, 2147483648
    %v1603 = vmul.f32 %v1602, 1.442695
    %v1604 = vpow.pop %v1603
    %v1605 = vadd.f32 %v1604, 1.0
    %v1606 = vrcp.pop %v1605
    %v1607 = vmul.f32 1.0, %v1606
    %v1608 = vtanh.pop %v1570
    %v1609 = vmul.f32 %v1607, %v1456
    %1611 = vrot.lane.b32.xlu0 %v1608, 64
    %v1612 = vpop.permute.xlu0 %1611
    %v1614 = vmul.f32 %v1607, %v1612
    %1616 = vrot.lane.b32.xlu0 %v1614, 32
    %v1617 = vpop.permute.xlu0 %1616
    %v1619 = vadd.f32 %v1609, %v1617
    %v1620 = vtanh.pop %v1619
    %1622 = vrot.lane.b32.xlu0 %v1620, 64
    %v1623 = vpop.permute.xlu0 %1622
    %v1625 = vmul.f32 %v1607, %v1623
    %vm1626 = vcmp.gt.f32.partialorder %v1485, 0.5
    %v1627 = vsel %vm1626, 1, 0
    %1628 = vset.pattern.permute.xlu0 0
    %1629 = vperm.xlu0 %1628, %v1627
    %v1630 = vpop.permute.xlu0 %1629
    %vm1631 = vcmp.eq.s32.totalorder %v1630, 1
    %v1632 = vsel %vm1631, %v1625, %v1457
    %1634 = vset.pattern.permute.xlu0 0
    %1635 = vperm.xlu0 %1634, %v1484
    %v1636 = vpop.permute.xlu0 %1635
    %v1638 = vmul.f32 %v1601, %v1636
    %1640 = vrot.lane.b32.xlu0 %v1638, 32
    %v1641 = vpop.permute.xlu0 %1640
    %s1643 = scalar_lea.vmem %s5, 56
    %1644 = vst.msk [vmem:[%s1643] sm:$0xff] %vm382, %v1641
    %1646 = vset.pattern.permute.xlu0 0
    %1647 = vperm.xlu0 %1646, %v1485
    %v1648 = vpop.permute.xlu0 %1647
    %v1650 = vmul.f32 %v1632, %v1648
    %1652 = vrot.lane.b32.xlu0 %v1650, 32
    %v1653 = vpop.permute.xlu0 %1652
    %1655 = vst.msk [vmem:[%s6] sm:$0xff] %vm382, %v1653
    %1657 = vrot.lane.b32.xlu0 %v1601, 32
    %v1658 = vpop.permute.xlu0 %1657
    %1660 = vst.msk [vmem:[#allocation3] sm:$0xff] %vm382, %v1658
    %1662 = vrot.lane.b32.xlu0 %v1632, 32
    %v1663 = vpop.permute.xlu0 %1662
    %1665 = vst.msk [vmem:[#allocation5] sm:$0xff] %vm382, %v1663
    // Predicated region
    $region22: #{rnn_forward.2} parent=1 // pred_check
      _
    $region23: #{rnn_forward.2} parent=1 // pred_check_branch
      %1667 = sbr.rel (0) target = $region25
    $region24: #{rnn_forward.2} parent=1 // pred_region
      _
    $region25: #{rnn_forward.2} parent=1 // pred_fallthru
      _
    // Predicated region
    $region26: #{rnn_forward.2} parent=1 // pred_check
      _
    $region27: #{rnn_forward.2} parent=1 // pred_check_branch
      %1669 = sbr.rel (0) target = $region29
    $region28: #{rnn_forward.2} parent=1 // pred_region
      _
    $region29: #{rnn_forward.2} parent=1 // pred_fallthru
      _
    // Predicated region
    $region30: #{rnn_forward.2} parent=1 // pred_check
      _
    $region31: #{rnn_forward.2} parent=1 // pred_check_branch
      %1671 = sbr.rel (0) target = $region33
    $region32: #{rnn_forward.2} parent=1 // pred_region
      %s1673 = ssub.s32 128, 128
      %1674 = vsyncadd [#allocation4], %s1673
      %s1676 = sshll.u32 [#allocation3], 4
      %s1677 = int_to_ptr.vmem [resolvable:$true] %s1676
      %1679 = dma.vmem_to_hbm [thread:$0]  %s1677, 128, %s7, [#allocation4]
    $region33: #{rnn_forward.2} parent=1 // pred_fallthru
      _
    // Predicated region
    $region34: #{rnn_forward.2} parent=1 // pred_check
      _
    $region35: #{rnn_forward.2} parent=1 // pred_check_branch
      %1681 = sbr.rel (0) target = $region37
    $region36: #{rnn_forward.2} parent=1 // pred_region
      %s1683 = ssub.s32 128, 128
      %1684 = vsyncadd [#allocation6], %s1683
      %s1686 = sshll.u32 [#allocation5], 4
      %s1687 = int_to_ptr.vmem [resolvable:$true] %s1686
      %1689 = dma.vmem_to_hbm [thread:$0]  %s1687, 128, %s8, [#allocation6]
    $region37: #{rnn_forward.2} parent=1 // pred_fallthru
      _
    // Predicated region
    $region38: #{rnn_forward.2} parent=1 // pred_check
      _
    $region39: #{rnn_forward.2} parent=1 // pred_check_branch
      %1691 = sbr.rel (0) target = $region41
    $region40: #{rnn_forward.2} parent=1 // pred_region
      _
    $region41: #{rnn_forward.2} parent=1 // pred_fallthru
      _
    // Predicated region
    $region42: #{rnn_forward.2} parent=1 // pred_check
      _
    $region43: #{rnn_forward.2} parent=1 // pred_check_branch
      %1693 = sbr.rel (0) target = $region45
    $region44: #{rnn_forward.2} parent=1 // pred_region
      _
    $region45: #{rnn_forward.2} parent=1 // pred_fallthru
      _
    // Predicated region
    $region46: #{rnn_forward.2} parent=1 // pred_check
      _
    $region47: #{rnn_forward.2} parent=1 // pred_check_branch
      %1695 = sbr.rel (0) target = $region49
    $region48: #{rnn_forward.2} parent=1 // pred_region
      %1696 = dma.done [#allocation4], 128
    $region49: #{rnn_forward.2} parent=1 // pred_fallthru
      _
    // Predicated region
    $region50: #{rnn_forward.2} parent=1 // pred_check
      _
    $region51: #{rnn_forward.2} parent=1 // pred_check_branch
      %1698 = sbr.rel (0) target = $region53
    $region52: #{rnn_forward.2} parent=1 // pred_region
      %1699 = dma.done [#allocation6], 128
    $region53: #{rnn_forward.2} parent=1 // pred_fallthru
      _
    %1700 = vsyncpa [#allocation4], 1
    %1701 = vsyncpa [#allocation6], 1

</llo_original>
